<compile_context>
chip_gen: v5e
topology: v5e:2x2
jax: 0.10.0
libtpu: 0.0.40
codegen_flags: <defaults>
</compile_context>

<pallas_src>
import functools

import jax
import jax.numpy as jnp
from jax import lax
from jax.experimental import pallas as pl
from jax.experimental.pallas import tpu as pltpu


def bottleneck_kernel(x_ref, w1_ref, b1_ref, w2_ref, b2_ref, w3_ref, b3_ref,
                      o_ref, pad_ref, *, H, W, Bt):
    """conv1+bn1+relu -> conv2+bn2+relu -> conv3+bn3 -> +identity -> relu.

    BN scales pre-folded into weights.  1x1 convs batched over Bt images,
    3x3 conv per image as 9 accumulating shifted matmuls over a persistent
    bf16 zero-padded VMEM scratch.
    """
    Wc = w1_ref.shape[1]          # padded "width" channel count
    Cout = w3_ref.shape[1]
    HW = H * W
    HP = H + 2                    # padded rows per image in the scratch

    f32 = jnp.float32
    bf16 = jnp.bfloat16

    # ---- conv1 (1x1) + bias + ReLU over all Bt images at once (M = Bt*HW) --
    x_flat = x_ref[...].reshape(Bt * HW, x_ref.shape[2])
    h1 = jnp.dot(x_flat.astype(bf16), w1_ref[...], preferred_element_type=f32)
    h1 = jnp.maximum(h1 + b1_ref[...], 0.0)
    h1r = h1.reshape(Bt * H, W, Wc)                    # f32, H rows per image

    zrow = jnp.zeros((1, W + 2, Wc), bf16)
    zcol = jnp.zeros((H, 1, Wc), f32)

    h2_parts = []
    for b in range(Bt):                                # unrolled, static offsets
        r0 = b * HP                                    # first padded row of image b

        # -- stage conv1 output of image b into the bf16 zero-padded scratch.
        #    Column padding happens on the f32 value (one cheap copy), the
        #    single bf16 cast happens at the store.  Ref stores touch only
        #    full (W+2, Wc) slabs at leading-dim offsets.  Borders are
        #    re-zeroed every step (safe under megacore per-core scratch).
        h1p = jnp.concatenate([zcol, h1r[b * H:(b + 1) * H], zcol], axis=1)
        pad_ref[r0:r0 + 1, :, :] = zrow                        # top border
        pad_ref[r0 + H + 1:r0 + H + 2, :, :] = zrow            # bottom border
        pad_ref[r0 + 1:r0 + H + 1, :, :] = h1p.astype(bf16)    # interior

        # -- conv2 (3x3, stride 1, pad 1): 9 accumulating shifted matmuls.
        #    No (HW, 9*Wc) patch, no lane-axis concatenate.
        acc = None
        for dh in range(3):
            # full-width slab load (bf16, leading-dim offset only), upcast once
            slab = pad_ref[r0 + dh:r0 + dh + H, :, :].astype(f32)  # (H, W+2, Wc)
            for dw in range(3):
                tap = slab[:, dw:dw + W, :].reshape(HW, Wc).astype(bf16)
                d = jnp.dot(tap, w2_ref[dh * 3 + dw],
                            preferred_element_type=f32)
                acc = d if acc is None else acc + d
        h2_parts.append(jnp.maximum(acc + b2_ref[...], 0.0).astype(bf16))

    # ---- conv3 (1x1) + bias + residual + ReLU, one (Bt*HW, C) matmul -------
    h2 = jnp.concatenate(h2_parts, axis=0)             # (Bt*HW, Wc) bf16
    h3 = jnp.dot(h2, w3_ref[...], preferred_element_type=f32)
    res = x_ref[...].reshape(Bt * HW, x_ref.shape[2])  # re-read: short live range
    out = jnp.maximum(h3 + b3_ref[...] + res, 0.0)
    o_ref[...] = out.reshape(Bt, HW, Cout).astype(o_ref.dtype)


def _round_up(v, m):
    return ((v + m - 1) // m) * m


def bottleneck_forward(x_nchw, w1, s1, b1, w2, s2, b2, w3, s3, b3,
                       *, images_per_step=8):
    """Fused Bottleneck forward.

    x_nchw : (N, Cin, H, W) float32
    w1     : (Cin, width)              1x1 conv, channels-last
    w2     : (3, 3, width, width)      3x3 conv, HWIO
    w3     : (width, Cout)             1x1 conv, channels-last
    sN/bN  : folded BatchNorm scale / bias, shape (C,)
    """
    N, Cin, H, W = x_nchw.shape
    width = w1.shape[1]
    Cout = w3.shape[1]
    assert Cin == Cout, "downsample=None requires inplanes == planes * expansion"
    HW = H * W

    # Images per grid step: raises matmul M (Bt*HW rows per 1x1 conv) and
    # amortizes the ~0.35us fixed per-step pipeline overhead.  Must divide N.
    Bt = max(1, min(N, images_per_step))
    while N % Bt:
        Bt -= 1

    LANES = 128
    Cin_p = _round_up(Cin, LANES)
    Wc_p = _round_up(width, LANES)
    Cout_p = _round_up(Cout, LANES)

    f32 = jnp.float32

    # NCHW -> (N, H*W, C), zero-pad channels to a lane multiple.
    # TODO(synk): on v5e, feed x / emit out as bf16 to halve HBM traffic
    # (changes residual-add precision vs this f32 reference path).
    x = jnp.transpose(x_nchw, (0, 2, 3, 1)).reshape(N, HW, Cin).astype(f32)
    xp = jnp.pad(x, ((0, 0), (0, 0), (0, Cin_p - Cin)))

    # Fold BN scale into conv weights (wrapper-side), pad, cast to bf16.
    w1p = jnp.zeros((Cin_p, Wc_p), f32).at[:Cin, :width].set(w1 * s1)
    w2p = jnp.zeros((3, 3, Wc_p, Wc_p), f32).at[:, :, :width, :width].set(w2 * s2)
    w2p = w2p.reshape(9, Wc_p, Wc_p)          # one (Wc, Wc) matrix per 3x3 tap
    w3p = jnp.zeros((Wc_p, Cout_p), f32).at[:width, :Cout].set(w3 * s3)
    w1p = w1p.astype(jnp.bfloat16)
    w2p = w2p.astype(jnp.bfloat16)
    w3p = w3p.astype(jnp.bfloat16)

    b1p = jnp.zeros((1, Wc_p), f32).at[0, :width].set(b1)
    b2p = jnp.zeros((1, Wc_p), f32).at[0, :width].set(b2)
    b3p = jnp.zeros((1, Cout_p), f32).at[0, :Cout].set(b3)

    def _full(a):
        nd = a.ndim
        return pl.BlockSpec(a.shape, lambda n, _nd=nd: (0,) * _nd)

    kernel = functools.partial(bottleneck_kernel, H=H, W=W, Bt=Bt)

    # TODO(synk): for large H*W add a spatial row-tile grid axis (1-row halo,
    # marked "parallel") so per-step VMEM stays within v7x's 64 MiB and both
    # TensorCores stay busy for small N.
    out = pl.pallas_call(
        kernel,
        out_shape=jax.ShapeDtypeStruct((N, HW, Cout_p), f32),
        grid=(N // Bt,),
        in_specs=[
            pl.BlockSpec((Bt, HW, Cin_p), lambda n: (n, 0, 0)),
            _full(w1p), _full(b1p),
            _full(w2p), _full(b2p),
            _full(w3p), _full(b3p),
        ],
        out_specs=pl.BlockSpec((Bt, HW, Cout_p), lambda n: (n, 0, 0)),
        scratch_shapes=[pltpu.VMEM((Bt * (H + 2), W + 2, Wc_p), jnp.bfloat16)],
        compiler_params=pltpu.CompilerParams(
            dimension_semantics=("parallel",),
            vmem_limit_bytes=64 * 1024 * 1024),
    )(xp, w1p, b1p, w2p, b2p, w3p, b3p)

    out = out[:, :, :Cout].reshape(N, H, W, Cout)
    return jnp.transpose(out, (0, 3, 1, 2)).astype(x_nchw.dtype)


def ref_forward(x_nchw, w1, s1, b1, w2, s2, b2, w3, s3, b3):
    """Pure-JAX reference with the same numerics contract as the kernel:
    BN scale folded into weights, bf16 operands into the convolutions, f32
    accumulation, f32 elementwise/bias/residual math."""
    x = jnp.transpose(x_nchw, (0, 2, 3, 1)).astype(jnp.float32)   # NHWC

    w1f = (w1 * s1).astype(jnp.bfloat16)
    w2f = (w2 * s2).astype(jnp.bfloat16)
    w3f = (w3 * s3).astype(jnp.bfloat16)

    def conv(inp, w, pad):
        dn = lax.conv_dimension_numbers(inp.shape, w.shape, ('NHWC', 'HWIO', 'NHWC'))
        return lax.conv_general_dilated(inp.astype(jnp.bfloat16), w, (1, 1), pad,
                                        dimension_numbers=dn,
                                        preferred_element_type=jnp.float32)

    h = jax.nn.relu(conv(x, w1f.reshape(1, 1, *w1.shape), 'VALID') + b1)
    h = jax.nn.relu(conv(h, w2f, 'SAME') + b2)
    h = conv(h, w3f.reshape(1, 1, *w3.shape), 'VALID') + b3
    out = jax.nn.relu(h + x)
    return jnp.transpose(out, (0, 3, 1, 2))


if __name__ == "__main__":
    key = jax.random.PRNGKey(0)
    keys = jax.random.split(key, 8)

    # Bottleneck(inplanes=16, planes=4): width=4, out_channels=planes*4=16
    N, inplanes, H, W = 2, 16, 8, 8
    planes = 4
    width = planes                 # base_width=64, groups=1
    Cout = planes * 4              # expansion = 4

    x = jax.random.normal(keys[0], (N, inplanes, H, W), jnp.float32)

    def bn_fold(k, C):
        k1, k2, k3, k4 = jax.random.split(k, 4)
        gamma = jax.random.uniform(k1, (C,), jnp.float32, 0.5, 1.5)
        beta = jax.random.normal(k2, (C,), jnp.float32) * 0.1
        mean = jax.random.normal(k3, (C,), jnp.float32) * 0.1
        var = jax.random.uniform(k4, (C,), jnp.float32, 0.5, 1.5)
        scale = gamma / jnp.sqrt(var + 1e-5)
        bias = beta - mean * scale
        return scale, bias

    w1 = jax.random.normal(keys[1], (inplanes, width), jnp.float32) * 0.2
    w2 = jax.random.normal(keys[2], (3, 3, width, width), jnp.float32) * 0.2
    w3 = jax.random.normal(keys[3], (width, Cout), jnp.float32) * 0.2
    s1, b1 = bn_fold(keys[4], width)
    s2, b2 = bn_fold(keys[5], width)
    s3, b3 = bn_fold(keys[6], Cout)

    out = bottleneck_forward(x, w1, s1, b1, w2, s2, b2, w3, s3, b3)
    out = jax.block_until_ready(out)
    assert out.shape == (N, Cout, H, W)

    # Reference uses identical bf16-into-MXU / f32-accumulate numerics, so
    # remaining differences are only accumulation-order noise.
    ref = ref_forward(x, w1, s1, b1, w2, s2, b2, w3, s3, b3)
    max_err = float(jnp.max(jnp.abs(out - ref)))
    assert jnp.allclose(out, ref, atol=5e-3, rtol=5e-3), max_err

    print("KERNEL_OK")
</pallas_src>

<mosaic_0001>
module attributes {stable_mosaic.version = 11 : i64} {
  func.func @bottleneck_kernel(%arg0: i32, %arg1: memref<2x64x128xf32, #tpu.memory_space<vmem>>, %arg2: memref<128x128xbf16, #tpu.memory_space<vmem>>, %arg3: memref<1x128xf32, #tpu.memory_space<vmem>>, %arg4: memref<9x128x128xbf16, #tpu.memory_space<vmem>>, %arg5: memref<1x128xf32, #tpu.memory_space<vmem>>, %arg6: memref<128x128xbf16, #tpu.memory_space<vmem>>, %arg7: memref<1x128xf32, #tpu.memory_space<vmem>>, %arg8: memref<2x64x128xf32, #tpu.memory_space<vmem>>, %arg9: memref<20x10x128xbf16, #tpu.memory_space<vmem>>) attributes {dimension_semantics = [#tpu.dimension_semantics<parallel>], iteration_bounds = array<i64: 1>, scalar_prefetch = 0 : i64, scratch_operands = 1 : i64, tpu.core_type = #tpu.core_type<tc>, window_params = [{transform_indices = @transform_0, window_bounds = array<i64: 2, 64, 128>}, {pipeline_mode = #tpu.pipeline_mode<synchronous>, transform_indices = @transform_1, window_bounds = array<i64: 128, 128>}, {pipeline_mode = #tpu.pipeline_mode<synchronous>, transform_indices = @transform_2, window_bounds = array<i64: 1, 128>}, {pipeline_mode = #tpu.pipeline_mode<synchronous>, transform_indices = @transform_3, window_bounds = array<i64: 9, 128, 128>}, {pipeline_mode = #tpu.pipeline_mode<synchronous>, transform_indices = @transform_4, window_bounds = array<i64: 1, 128>}, {pipeline_mode = #tpu.pipeline_mode<synchronous>, transform_indices = @transform_5, window_bounds = array<i64: 128, 128>}, {pipeline_mode = #tpu.pipeline_mode<synchronous>, transform_indices = @transform_6, window_bounds = array<i64: 1, 128>}, {transform_indices = @transform_7, window_bounds = array<i64: 2, 64, 128>}]} {
    %c0 = arith.constant 0 : index
    %c0_0 = arith.constant 0 : index
    %c0_1 = arith.constant 0 : index
    %0 = vector.load %arg1[%c0, %c0_0, %c0_1] : memref<2x64x128xf32, #tpu.memory_space<vmem>>, vector<2x64x128xf32>
    %1 = vector.shape_cast %0 : vector<2x64x128xf32> to vector<128x128xf32>
    %2 = arith.truncf %1 : vector<128x128xf32> to vector<128x128xbf16>
    %c0_2 = arith.constant 0 : index
    %c0_3 = arith.constant 0 : index
    %3 = vector.load %arg2[%c0_2, %c0_3] : memref<128x128xbf16, #tpu.memory_space<vmem>>, vector<128x128xbf16>
    %cst = arith.constant dense<0.000000e+00> : vector<128x128xf32>
    %4 = tpu.matmul %2, %3, %cst {dimension_numbers = #tpu.dot_dimension_numbers<[1], [0], [0], [1], [0, 0, 1, 1], [], []>} : vector<128x128xbf16>, vector<128x128xbf16>, vector<128x128xf32> -> vector<128x128xf32>
    %c0_4 = arith.constant 0 : index
    %c0_5 = arith.constant 0 : index
    %5 = vector.load %arg3[%c0_4, %c0_5] : memref<1x128xf32, #tpu.memory_space<vmem>>, vector<1x128xf32>
    %6 = vector.broadcast %5 : vector<1x128xf32> to vector<128x128xf32>
    %7 = arith.addf %4, %6 : vector<128x128xf32>
    %cst_6 = arith.constant 0.000000e+00 : f32
    %8 = vector.broadcast %cst_6 : f32 to vector<128x128xf32>
    %9 = arith.maximumf %7, %8 : vector<128x128xf32>
    %10 = vector.shape_cast %9 : vector<128x128xf32> to vector<16x8x128xf32>
    %cst_7 = arith.constant 0.000000e+00 : bf16
    %11 = vector.broadcast %cst_7 : bf16 to vector<1x10x128xbf16>
    %cst_8 = arith.constant 0.000000e+00 : f32
    %12 = vector.broadcast %cst_8 : f32 to vector<8x1x128xf32>
    %13 = vector.extract_strided_slice %10 {offsets = [0, 0, 0], sizes = [8, 8, 128], strides = [1, 1, 1]} : vector<16x8x128xf32> to vector<8x8x128xf32>
    %14 = tpu.concatenate %12, %13, %12 in 1 : vector<8x1x128xf32>, vector<8x8x128xf32>, vector<8x1x128xf32> -> vector<8x10x128xf32>
    %c0_9 = arith.constant 0 : index
    %c0_10 = arith.constant 0 : index
    %c0_11 = arith.constant 0 : index
    %15 = vector.load %arg9[%c0_9, %c0_10, %c0_11] : memref<20x10x128xbf16, #tpu.memory_space<vmem>>, vector<1x10x128xbf16>
    tpu.vector_store %arg9[%c0_9, %c0_10, %c0_11], %11 {strides = array<i32>} : memref<20x10x128xbf16, #tpu.memory_space<vmem>>, vector<1x10x128xbf16>,
    %c9 = arith.constant 9 : index
    %c0_12 = arith.constant 0 : index
    %c0_13 = arith.constant 0 : index
    %16 = vector.load %arg9[%c9, %c0_12, %c0_13] : memref<20x10x128xbf16, #tpu.memory_space<vmem>>, vector<1x10x128xbf16>
    tpu.vector_store %arg9[%c9, %c0_12, %c0_13], %11 {strides = array<i32>} : memref<20x10x128xbf16, #tpu.memory_space<vmem>>, vector<1x10x128xbf16>,
    %17 = arith.truncf %14 : vector<8x10x128xf32> to vector<8x10x128xbf16>
    %c1 = arith.constant 1 : index
    %c0_14 = arith.constant 0 : index
    %c0_15 = arith.constant 0 : index
    %18 = vector.load %arg9[%c1, %c0_14, %c0_15] : memref<20x10x128xbf16, #tpu.memory_space<vmem>>, vector<8x10x128xbf16>
    tpu.vector_store %arg9[%c1, %c0_14, %c0_15], %17 {strides = array<i32>} : memref<20x10x128xbf16, #tpu.memory_space<vmem>>, vector<8x10x128xbf16>,
    %c0_16 = arith.constant 0 : index
    %c0_17 = arith.constant 0 : index
    %c0_18 = arith.constant 0 : index
    %19 = vector.load %arg9[%c0_16, %c0_17, %c0_18] : memref<20x10x128xbf16, #tpu.memory_space<vmem>>, vector<8x10x128xbf16>
    %20 = arith.extf %19 : vector<8x10x128xbf16> to vector<8x10x128xf32>
    %21 = vector.extract_strided_slice %20 {offsets = [0, 0, 0], sizes = [8, 8, 128], strides = [1, 1, 1]} : vector<8x10x128xf32> to vector<8x8x128xf32>
    %22 = vector.shape_cast %21 : vector<8x8x128xf32> to vector<64x128xf32>
    %23 = arith.truncf %22 : vector<64x128xf32> to vector<64x128xbf16>
    %c0_19 = arith.constant 0 : index
    %c0_20 = arith.constant 0 : index
    %c0_21 = arith.constant 0 : index
    %24 = vector.load %arg4[%c0_19, %c0_20, %c0_21] : memref<9x128x128xbf16, #tpu.memory_space<vmem>>, vector<1x128x128xbf16>
    %25 = vector.shape_cast %24 : vector<1x128x128xbf16> to vector<128x128xbf16>
    %cst_22 = arith.constant dense<0.000000e+00> : vector<64x128xf32>
    %26 = tpu.matmul %23, %25, %cst_22 {dimension_numbers = #tpu.dot_dimension_numbers<[1], [0], [0], [1], [0, 0, 1, 1], [], []>} : vector<64x128xbf16>, vector<128x128xbf16>, vector<64x128xf32> -> vector<64x128xf32>
    %27 = vector.extract_strided_slice %20 {offsets = [0, 1, 0], sizes = [8, 8, 128], strides = [1, 1, 1]} : vector<8x10x128xf32> to vector<8x8x128xf32>
    %28 = vector.shape_cast %27 : vector<8x8x128xf32> to vector<64x128xf32>
    %29 = arith.truncf %28 : vector<64x128xf32> to vector<64x128xbf16>
    %c1_23 = arith.constant 1 : index
    %c0_24 = arith.constant 0 : index
    %c0_25 = arith.constant 0 : index
    %30 = vector.load %arg4[%c1_23, %c0_24, %c0_25] : memref<9x128x128xbf16, #tpu.memory_space<vmem>>, vector<1x128x128xbf16>
    %31 = vector.shape_cast %30 : vector<1x128x128xbf16> to vector<128x128xbf16>
    %cst_26 = arith.constant dense<0.000000e+00> : vector<64x128xf32>
    %32 = tpu.matmul %29, %31, %cst_26 {dimension_numbers = #tpu.dot_dimension_numbers<[1], [0], [0], [1], [0, 0, 1, 1], [], []>} : vector<64x128xbf16>, vector<128x128xbf16>, vector<64x128xf32> -> vector<64x128xf32>
    %33 = arith.addf %26, %32 : vector<64x128xf32>
    %34 = vector.extract_strided_slice %20 {offsets = [0, 2, 0], sizes = [8, 8, 128], strides = [1, 1, 1]} : vector<8x10x128xf32> to vector<8x8x128xf32>
    %35 = vector.shape_cast %34 : vector<8x8x128xf32> to vector<64x128xf32>
    %36 = arith.truncf %35 : vector<64x128xf32> to vector<64x128xbf16>
    %c2 = arith.constant 2 : index
    %c0_27 = arith.constant 0 : index
    %c0_28 = arith.constant 0 : index
    %37 = vector.load %arg4[%c2, %c0_27, %c0_28] : memref<9x128x128xbf16, #tpu.memory_space<vmem>>, vector<1x128x128xbf16>
    %38 = vector.shape_cast %37 : vector<1x128x128xbf16> to vector<128x128xbf16>
    %cst_29 = arith.constant dense<0.000000e+00> : vector<64x128xf32>
    %39 = tpu.matmul %36, %38, %cst_29 {dimension_numbers = #tpu.dot_dimension_numbers<[1], [0], [0], [1], [0, 0, 1, 1], [], []>} : vector<64x128xbf16>, vector<128x128xbf16>, vector<64x128xf32> -> vector<64x128xf32>
    %40 = arith.addf %33, %39 : vector<64x128xf32>
    %c1_30 = arith.constant 1 : index
    %c0_31 = arith.constant 0 : index
    %c0_32 = arith.constant 0 : index
    %41 = vector.load %arg9[%c1_30, %c0_31, %c0_32] : memref<20x10x128xbf16, #tpu.memory_space<vmem>>, vector<8x10x128xbf16>
    %42 = arith.extf %41 : vector<8x10x128xbf16> to vector<8x10x128xf32>
    %43 = vector.extract_strided_slice %42 {offsets = [0, 0, 0], sizes = [8, 8, 128], strides = [1, 1, 1]} : vector<8x10x128xf32> to vector<8x8x128xf32>
    %44 = vector.shape_cast %43 : vector<8x8x128xf32> to vector<64x128xf32>
    %45 = arith.truncf %44 : vector<64x128xf32> to vector<64x128xbf16>
    %c3 = arith.constant 3 : index
    %c0_33 = arith.constant 0 : index
    %c0_34 = arith.constant 0 : index
    %46 = vector.load %arg4[%c3, %c0_33, %c0_34] : memref<9x128x128xbf16, #tpu.memory_space<vmem>>, vector<1x128x128xbf16>
    %47 = vector.shape_cast %46 : vector<1x128x128xbf16> to vector<128x128xbf16>
    %cst_35 = arith.constant dense<0.000000e+00> : vector<64x128xf32>
    %48 = tpu.matmul %45, %47, %cst_35 {dimension_numbers = #tpu.dot_dimension_numbers<[1], [0], [0], [1], [0, 0, 1, 1], [], []>} : vector<64x128xbf16>, vector<128x128xbf16>, vector<64x128xf32> -> vector<64x128xf32>
    %49 = arith.addf %40, %48 : vector<64x128xf32>
    %50 = vector.extract_strided_slice %42 {offsets = [0, 1, 0], sizes = [8, 8, 128], strides = [1, 1, 1]} : vector<8x10x128xf32> to vector<8x8x128xf32>
    %51 = vector.shape_cast %50 : vector<8x8x128xf32> to vector<64x128xf32>
    %52 = arith.truncf %51 : vector<64x128xf32> to vector<64x128xbf16>
    %c4 = arith.constant 4 : index
    %c0_36 = arith.constant 0 : index
    %c0_37 = arith.constant 0 : index
    %53 = vector.load %arg4[%c4, %c0_36, %c0_37] : memref<9x128x128xbf16, #tpu.memory_space<vmem>>, vector<1x128x128xbf16>
    %54 = vector.shape_cast %53 : vector<1x128x128xbf16> to vector<128x128xbf16>
    %cst_38 = arith.constant dense<0.000000e+00> : vector<64x128xf32>
    %55 = tpu.matmul %52, %54, %cst_38 {dimension_numbers = #tpu.dot_dimension_numbers<[1], [0], [0], [1], [0, 0, 1, 1], [], []>} : vector<64x128xbf16>, vector<128x128xbf16>, vector<64x128xf32> -> vector<64x128xf32>
    %56 = arith.addf %49, %55 : vector<64x128xf32>
    %57 = vector.extract_strided_slice %42 {offsets = [0, 2, 0], sizes = [8, 8, 128], strides = [1, 1, 1]} : vector<8x10x128xf32> to vector<8x8x128xf32>
    %58 = vector.shape_cast %57 : vector<8x8x128xf32> to vector<64x128xf32>
    %59 = arith.truncf %58 : vector<64x128xf32> to vector<64x128xbf16>
    %c5 = arith.constant 5 : index
    %c0_39 = arith.constant 0 : index
    %c0_40 = arith.constant 0 : index
    %60 = vector.load %arg4[%c5, %c0_39, %c0_40] : memref<9x128x128xbf16, #tpu.memory_space<vmem>>, vector<1x128x128xbf16>
    %61 = vector.shape_cast %60 : vector<1x128x128xbf16> to vector<128x128xbf16>
    %cst_41 = arith.constant dense<0.000000e+00> : vector<64x128xf32>
    %62 = tpu.matmul %59, %61, %cst_41 {dimension_numbers = #tpu.dot_dimension_numbers<[1], [0], [0], [1], [0, 0, 1, 1], [], []>} : vector<64x128xbf16>, vector<128x128xbf16>, vector<64x128xf32> -> vector<64x128xf32>
    %63 = arith.addf %56, %62 : vector<64x128xf32>
    %c2_42 = arith.constant 2 : index
    %c0_43 = arith.constant 0 : index
    %c0_44 = arith.constant 0 : index
    %64 = vector.load %arg9[%c2_42, %c0_43, %c0_44] : memref<20x10x128xbf16, #tpu.memory_space<vmem>>, vector<8x10x128xbf16>
    %65 = arith.extf %64 : vector<8x10x128xbf16> to vector<8x10x128xf32>
    %66 = vector.extract_strided_slice %65 {offsets = [0, 0, 0], sizes = [8, 8, 128], strides = [1, 1, 1]} : vector<8x10x128xf32> to vector<8x8x128xf32>
    %67 = vector.shape_cast %66 : vector<8x8x128xf32> to vector<64x128xf32>
    %68 = arith.truncf %67 : vector<64x128xf32> to vector<64x128xbf16>
    %c6 = arith.constant 6 : index
    %c0_45 = arith.constant 0 : index
    %c0_46 = arith.constant 0 : index
    %69 = vector.load %arg4[%c6, %c0_45, %c0_46] : memref<9x128x128xbf16, #tpu.memory_space<vmem>>, vector<1x128x128xbf16>
    %70 = vector.shape_cast %69 : vector<1x128x128xbf16> to vector<128x128xbf16>
    %cst_47 = arith.constant dense<0.000000e+00> : vector<64x128xf32>
    %71 = tpu.matmul %68, %70, %cst_47 {dimension_numbers = #tpu.dot_dimension_numbers<[1], [0], [0], [1], [0, 0, 1, 1], [], []>} : vector<64x128xbf16>, vector<128x128xbf16>, vector<64x128xf32> -> vector<64x128xf32>
    %72 = arith.addf %63, %71 : vector<64x128xf32>
    %73 = vector.extract_strided_slice %65 {offsets = [0, 1, 0], sizes = [8, 8, 128], strides = [1, 1, 1]} : vector<8x10x128xf32> to vector<8x8x128xf32>
    %74 = vector.shape_cast %73 : vector<8x8x128xf32> to vector<64x128xf32>
    %75 = arith.truncf %74 : vector<64x128xf32> to vector<64x128xbf16>
    %c7 = arith.constant 7 : index
    %c0_48 = arith.constant 0 : index
    %c0_49 = arith.constant 0 : index
    %76 = vector.load %arg4[%c7, %c0_48, %c0_49] : memref<9x128x128xbf16, #tpu.memory_space<vmem>>, vector<1x128x128xbf16>
    %77 = vector.shape_cast %76 : vector<1x128x128xbf16> to vector<128x128xbf16>
    %cst_50 = arith.constant dense<0.000000e+00> : vector<64x128xf32>
    %78 = tpu.matmul %75, %77, %cst_50 {dimension_numbers = #tpu.dot_dimension_numbers<[1], [0], [0], [1], [0, 0, 1, 1], [], []>} : vector<64x128xbf16>, vector<128x128xbf16>, vector<64x128xf32> -> vector<64x128xf32>
    %79 = arith.addf %72, %78 : vector<64x128xf32>
    %80 = vector.extract_strided_slice %65 {offsets = [0, 2, 0], sizes = [8, 8, 128], strides = [1, 1, 1]} : vector<8x10x128xf32> to vector<8x8x128xf32>
    %81 = vector.shape_cast %80 : vector<8x8x128xf32> to vector<64x128xf32>
    %82 = arith.truncf %81 : vector<64x128xf32> to vector<64x128xbf16>
    %c8 = arith.constant 8 : index
    %c0_51 = arith.constant 0 : index
    %c0_52 = arith.constant 0 : index
    %83 = vector.load %arg4[%c8, %c0_51, %c0_52] : memref<9x128x128xbf16, #tpu.memory_space<vmem>>, vector<1x128x128xbf16>
    %84 = vector.shape_cast %83 : vector<1x128x128xbf16> to vector<128x128xbf16>
    %cst_53 = arith.constant dense<0.000000e+00> : vector<64x128xf32>
    %85 = tpu.matmul %82, %84, %cst_53 {dimension_numbers = #tpu.dot_dimension_numbers<[1], [0], [0], [1], [0, 0, 1, 1], [], []>} : vector<64x128xbf16>, vector<128x128xbf16>, vector<64x128xf32> -> vector<64x128xf32>
    %86 = arith.addf %79, %85 : vector<64x128xf32>
    %c0_54 = arith.constant 0 : index
    %c0_55 = arith.constant 0 : index
    %87 = vector.load %arg5[%c0_54, %c0_55] : memref<1x128xf32, #tpu.memory_space<vmem>>, vector<1x128xf32>
    %88 = vector.broadcast %87 : vector<1x128xf32> to vector<64x128xf32>
    %89 = arith.addf %86, %88 : vector<64x128xf32>
    %cst_56 = arith.constant 0.000000e+00 : f32
    %90 = vector.broadcast %cst_56 : f32 to vector<64x128xf32>
    %91 = arith.maximumf %89, %90 : vector<64x128xf32>
    %92 = arith.truncf %91 : vector<64x128xf32> to vector<64x128xbf16>
    %93 = vector.extract_strided_slice %10 {offsets = [8, 0, 0], sizes = [8, 8, 128], strides = [1, 1, 1]} : vector<16x8x128xf32> to vector<8x8x128xf32>
    %94 = tpu.concatenate %12, %93, %12 in 1 : vector<8x1x128xf32>, vector<8x8x128xf32>, vector<8x1x128xf32> -> vector<8x10x128xf32>
    %c10 = arith.constant 10 : index
    %c0_57 = arith.constant 0 : index
    %c0_58 = arith.constant 0 : index
    %95 = vector.load %arg9[%c10, %c0_57, %c0_58] : memref<20x10x128xbf16, #tpu.memory_space<vmem>>, vector<1x10x128xbf16>
    tpu.vector_store %arg9[%c10, %c0_57, %c0_58], %11 {strides = array<i32>} : memref<20x10x128xbf16, #tpu.memory_space<vmem>>, vector<1x10x128xbf16>,
    %c19 = arith.constant 19 : index
    %c0_59 = arith.constant 0 : index
    %c0_60 = arith.constant 0 : index
    %96 = vector.load %arg9[%c19, %c0_59, %c0_60] : memref<20x10x128xbf16, #tpu.memory_space<vmem>>, vector<1x10x128xbf16>
    tpu.vector_store %arg9[%c19, %c0_59, %c0_60], %11 {strides = array<i32>} : memref<20x10x128xbf16, #tpu.memory_space<vmem>>, vector<1x10x128xbf16>,
    %97 = arith.truncf %94 : vector<8x10x128xf32> to vector<8x10x128xbf16>
    %c11 = arith.constant 11 : index
    %c0_61 = arith.constant 0 : index
    %c0_62 = arith.constant 0 : index
    %98 = vector.load %arg9[%c11, %c0_61, %c0_62] : memref<20x10x128xbf16, #tpu.memory_space<vmem>>, vector<8x10x128xbf16>
    tpu.vector_store %arg9[%c11, %c0_61, %c0_62], %97 {strides = array<i32>} : memref<20x10x128xbf16, #tpu.memory_space<vmem>>, vector<8x10x128xbf16>,
    %c10_63 = arith.constant 10 : index
    %c0_64 = arith.constant 0 : index
    %c0_65 = arith.constant 0 : index
    %99 = vector.load %arg9[%c10_63, %c0_64, %c0_65] : memref<20x10x128xbf16, #tpu.memory_space<vmem>>, vector<8x10x128xbf16>
    %100 = arith.extf %99 : vector<8x10x128xbf16> to vector<8x10x128xf32>
    %101 = vector.extract_strided_slice %100 {offsets = [0, 0, 0], sizes = [8, 8, 128], strides = [1, 1, 1]} : vector<8x10x128xf32> to vector<8x8x128xf32>
    %102 = vector.shape_cast %101 : vector<8x8x128xf32> to vector<64x128xf32>
    %103 = arith.truncf %102 : vector<64x128xf32> to vector<64x128xbf16>
    %c0_66 = arith.constant 0 : index
    %c0_67 = arith.constant 0 : index
    %c0_68 = arith.constant 0 : index
    %104 = vector.load %arg4[%c0_66, %c0_67, %c0_68] : memref<9x128x128xbf16, #tpu.memory_space<vmem>>, vector<1x128x128xbf16>
    %105 = vector.shape_cast %104 : vector<1x128x128xbf16> to vector<128x128xbf16>
    %cst_69 = arith.constant dense<0.000000e+00> : vector<64x128xf32>
    %106 = tpu.matmul %103, %105, %cst_69 {dimension_numbers = #tpu.dot_dimension_numbers<[1], [0], [0], [1], [0, 0, 1, 1], [], []>} : vector<64x128xbf16>, vector<128x128xbf16>, vector<64x128xf32> -> vector<64x128xf32>
    %107 = vector.extract_strided_slice %100 {offsets = [0, 1, 0], sizes = [8, 8, 128], strides = [1, 1, 1]} : vector<8x10x128xf32> to vector<8x8x128xf32>
    %108 = vector.shape_cast %107 : vector<8x8x128xf32> to vector<64x128xf32>
    %109 = arith.truncf %108 : vector<64x128xf32> to vector<64x128xbf16>
    %c1_70 = arith.constant 1 : index
    %c0_71 = arith.constant 0 : index
    %c0_72 = arith.constant 0 : index
    %110 = vector.load %arg4[%c1_70, %c0_71, %c0_72] : memref<9x128x128xbf16, #tpu.memory_space<vmem>>, vector<1x128x128xbf16>
    %111 = vector.shape_cast %110 : vector<1x128x128xbf16> to vector<128x128xbf16>
    %cst_73 = arith.constant dense<0.000000e+00> : vector<64x128xf32>
    %112 = tpu.matmul %109, %111, %cst_73 {dimension_numbers = #tpu.dot_dimension_numbers<[1], [0], [0], [1], [0, 0, 1, 1], [], []>} : vector<64x128xbf16>, vector<128x128xbf16>, vector<64x128xf32> -> vector<64x128xf32>
    %113 = arith.addf %106, %112 : vector<64x128xf32>
    %114 = vector.extract_strided_slice %100 {offsets = [0, 2, 0], sizes = [8, 8, 128], strides = [1, 1, 1]} : vector<8x10x128xf32> to vector<8x8x128xf32>
    %115 = vector.shape_cast %114 : vector<8x8x128xf32> to vector<64x128xf32>
    %116 = arith.truncf %115 : vector<64x128xf32> to vector<64x128xbf16>
    %c2_74 = arith.constant 2 : index
    %c0_75 = arith.constant 0 : index
    %c0_76 = arith.constant 0 : index
    %117 = vector.load %arg4[%c2_74, %c0_75, %c0_76] : memref<9x128x128xbf16, #tpu.memory_space<vmem>>, vector<1x128x128xbf16>
    %118 = vector.shape_cast %117 : vector<1x128x128xbf16> to vector<128x128xbf16>
    %cst_77 = arith.constant dense<0.000000e+00> : vector<64x128xf32>
    %119 = tpu.matmul %116, %118, %cst_77 {dimension_numbers = #tpu.dot_dimension_numbers<[1], [0], [0], [1], [0, 0, 1, 1], [], []>} : vector<64x128xbf16>, vector<128x128xbf16>, vector<64x128xf32> -> vector<64x128xf32>
    %120 = arith.addf %113, %119 : vector<64x128xf32>
    %c11_78 = arith.constant 11 : index
    %c0_79 = arith.constant 0 : index
    %c0_80 = arith.constant 0 : index
    %121 = vector.load %arg9[%c11_78, %c0_79, %c0_80] : memref<20x10x128xbf16, #tpu.memory_space<vmem>>, vector<8x10x128xbf16>
    %122 = arith.extf %121 : vector<8x10x128xbf16> to vector<8x10x128xf32>
    %123 = vector.extract_strided_slice %122 {offsets = [0, 0, 0], sizes = [8, 8, 128], strides = [1, 1, 1]} : vector<8x10x128xf32> to vector<8x8x128xf32>
    %124 = vector.shape_cast %123 : vector<8x8x128xf32> to vector<64x128xf32>
    %125 = arith.truncf %124 : vector<64x128xf32> to vector<64x128xbf16>
    %c3_81 = arith.constant 3 : index
    %c0_82 = arith.constant 0 : index
    %c0_83 = arith.constant 0 : index
    %126 = vector.load %arg4[%c3_81, %c0_82, %c0_83] : memref<9x128x128xbf16, #tpu.memory_space<vmem>>, vector<1x128x128xbf16>
    %127 = vector.shape_cast %126 : vector<1x128x128xbf16> to vector<128x128xbf16>
    %cst_84 = arith.constant dense<0.000000e+00> : vector<64x128xf32>
    %128 = tpu.matmul %125, %127, %cst_84 {dimension_numbers = #tpu.dot_dimension_numbers<[1], [0], [0], [1], [0, 0, 1, 1], [], []>} : vector<64x128xbf16>, vector<128x128xbf16>, vector<64x128xf32> -> vector<64x128xf32>
    %129 = arith.addf %120, %128 : vector<64x128xf32>
    %130 = vector.extract_strided_slice %122 {offsets = [0, 1, 0], sizes = [8, 8, 128], strides = [1, 1, 1]} : vector<8x10x128xf32> to vector<8x8x128xf32>
    %131 = vector.shape_cast %130 : vector<8x8x128xf32> to vector<64x128xf32>
    %132 = arith.truncf %131 : vector<64x128xf32> to vector<64x128xbf16>
    %c4_85 = arith.constant 4 : index
    %c0_86 = arith.constant 0 : index
    %c0_87 = arith.constant 0 : index
    %133 = vector.load %arg4[%c4_85, %c0_86, %c0_87] : memref<9x128x128xbf16, #tpu.memory_space<vmem>>, vector<1x128x128xbf16>
    %134 = vector.shape_cast %133 : vector<1x128x128xbf16> to vector<128x128xbf16>
    %cst_88 = arith.constant dense<0.000000e+00> : vector<64x128xf32>
    %135 = tpu.matmul %132, %134, %cst_88 {dimension_numbers = #tpu.dot_dimension_numbers<[1], [0], [0], [1], [0, 0, 1, 1], [], []>} : vector<64x128xbf16>, vector<128x128xbf16>, vector<64x128xf32> -> vector<64x128xf32>
    %136 = arith.addf %129, %135 : vector<64x128xf32>
    %137 = vector.extract_strided_slice %122 {offsets = [0, 2, 0], sizes = [8, 8, 128], strides = [1, 1, 1]} : vector<8x10x128xf32> to vector<8x8x128xf32>
    %138 = vector.shape_cast %137 : vector<8x8x128xf32> to vector<64x128xf32>
    %139 = arith.truncf %138 : vector<64x128xf32> to vector<64x128xbf16>
    %c5_89 = arith.constant 5 : index
    %c0_90 = arith.constant 0 : index
    %c0_91 = arith.constant 0 : index
    %140 = vector.load %arg4[%c5_89, %c0_90, %c0_91] : memref<9x128x128xbf16, #tpu.memory_space<vmem>>, vector<1x128x128xbf16>
    %141 = vector.shape_cast %140 : vector<1x128x128xbf16> to vector<128x128xbf16>
    %cst_92 = arith.constant dense<0.000000e+00> : vector<64x128xf32>
    %142 = tpu.matmul %139, %141, %cst_92 {dimension_numbers = #tpu.dot_dimension_numbers<[1], [0], [0], [1], [0, 0, 1, 1], [], []>} : vector<64x128xbf16>, vector<128x128xbf16>, vector<64x128xf32> -> vector<64x128xf32>
    %143 = arith.addf %136, %142 : vector<64x128xf32>
    %c12 = arith.constant 12 : index
    %c0_93 = arith.constant 0 : index
    %c0_94 = arith.constant 0 : index
    %144 = vector.load %arg9[%c12, %c0_93, %c0_94] : memref<20x10x128xbf16, #tpu.memory_space<vmem>>, vector<8x10x128xbf16>
    %145 = arith.extf %144 : vector<8x10x128xbf16> to vector<8x10x128xf32>
    %146 = vector.extract_strided_slice %145 {offsets = [0, 0, 0], sizes = [8, 8, 128], strides = [1, 1, 1]} : vector<8x10x128xf32> to vector<8x8x128xf32>
    %147 = vector.shape_cast %146 : vector<8x8x128xf32> to vector<64x128xf32>
    %148 = arith.truncf %147 : vector<64x128xf32> to vector<64x128xbf16>
    %c6_95 = arith.constant 6 : index
    %c0_96 = arith.constant 0 : index
    %c0_97 = arith.constant 0 : index
    %149 = vector.load %arg4[%c6_95, %c0_96, %c0_97] : memref<9x128x128xbf16, #tpu.memory_space<vmem>>, vector<1x128x128xbf16>
    %150 = vector.shape_cast %149 : vector<1x128x128xbf16> to vector<128x128xbf16>
    %cst_98 = arith.constant dense<0.000000e+00> : vector<64x128xf32>
    %151 = tpu.matmul %148, %150, %cst_98 {dimension_numbers = #tpu.dot_dimension_numbers<[1], [0], [0], [1], [0, 0, 1, 1], [], []>} : vector<64x128xbf16>, vector<128x128xbf16>, vector<64x128xf32> -> vector<64x128xf32>
    %152 = arith.addf %143, %151 : vector<64x128xf32>
    %153 = vector.extract_strided_slice %145 {offsets = [0, 1, 0], sizes = [8, 8, 128], strides = [1, 1, 1]} : vector<8x10x128xf32> to vector<8x8x128xf32>
    %154 = vector.shape_cast %153 : vector<8x8x128xf32> to vector<64x128xf32>
    %155 = arith.truncf %154 : vector<64x128xf32> to vector<64x128xbf16>
    %c7_99 = arith.constant 7 : index
    %c0_100 = arith.constant 0 : index
    %c0_101 = arith.constant 0 : index
    %156 = vector.load %arg4[%c7_99, %c0_100, %c0_101] : memref<9x128x128xbf16, #tpu.memory_space<vmem>>, vector<1x128x128xbf16>
    %157 = vector.shape_cast %156 : vector<1x128x128xbf16> to vector<128x128xbf16>
    %cst_102 = arith.constant dense<0.000000e+00> : vector<64x128xf32>
    %158 = tpu.matmul %155, %157, %cst_102 {dimension_numbers = #tpu.dot_dimension_numbers<[1], [0], [0], [1], [0, 0, 1, 1], [], []>} : vector<64x128xbf16>, vector<128x128xbf16>, vector<64x128xf32> -> vector<64x128xf32>
    %159 = arith.addf %152, %158 : vector<64x128xf32>
    %160 = vector.extract_strided_slice %145 {offsets = [0, 2, 0], sizes = [8, 8, 128], strides = [1, 1, 1]} : vector<8x10x128xf32> to vector<8x8x128xf32>
    %161 = vector.shape_cast %160 : vector<8x8x128xf32> to vector<64x128xf32>
    %162 = arith.truncf %161 : vector<64x128xf32> to vector<64x128xbf16>
    %c8_103 = arith.constant 8 : index
    %c0_104 = arith.constant 0 : index
    %c0_105 = arith.constant 0 : index
    %163 = vector.load %arg4[%c8_103, %c0_104, %c0_105] : memref<9x128x128xbf16, #tpu.memory_space<vmem>>, vector<1x128x128xbf16>
    %164 = vector.shape_cast %163 : vector<1x128x128xbf16> to vector<128x128xbf16>
    %cst_106 = arith.constant dense<0.000000e+00> : vector<64x128xf32>
    %165 = tpu.matmul %162, %164, %cst_106 {dimension_numbers = #tpu.dot_dimension_numbers<[1], [0], [0], [1], [0, 0, 1, 1], [], []>} : vector<64x128xbf16>, vector<128x128xbf16>, vector<64x128xf32> -> vector<64x128xf32>
    %166 = arith.addf %159, %165 : vector<64x128xf32>
    %c0_107 = arith.constant 0 : index
    %c0_108 = arith.constant 0 : index
    %167 = vector.load %arg5[%c0_107, %c0_108] : memref<1x128xf32, #tpu.memory_space<vmem>>, vector<1x128xf32>
    %168 = vector.broadcast %167 : vector<1x128xf32> to vector<64x128xf32>
    %169 = arith.addf %166, %168 : vector<64x128xf32>
    %cst_109 = arith.constant 0.000000e+00 : f32
    %170 = vector.broadcast %cst_109 : f32 to vector<64x128xf32>
    %171 = arith.maximumf %169, %170 : vector<64x128xf32>
    %172 = arith.truncf %171 : vector<64x128xf32> to vector<64x128xbf16>
    %173 = tpu.concatenate %92, %172 in 0 : vector<64x128xbf16>, vector<64x128xbf16> -> vector<128x128xbf16>
    %c0_110 = arith.constant 0 : index
    %c0_111 = arith.constant 0 : index
    %174 = vector.load %arg6[%c0_110, %c0_111] : memref<128x128xbf16, #tpu.memory_space<vmem>>, vector<128x128xbf16>
    %cst_112 = arith.constant dense<0.000000e+00> : vector<128x128xf32>
    %175 = tpu.matmul %173, %174, %cst_112 {dimension_numbers = #tpu.dot_dimension_numbers<[1], [0], [0], [1], [0, 0, 1, 1], [], []>} : vector<128x128xbf16>, vector<128x128xbf16>, vector<128x128xf32> -> vector<128x128xf32>
    %c0_113 = arith.constant 0 : index
    %c0_114 = arith.constant 0 : index
    %c0_115 = arith.constant 0 : index
    %176 = vector.load %arg1[%c0_113, %c0_114, %c0_115] : memref<2x64x128xf32, #tpu.memory_space<vmem>>, vector<2x64x128xf32>
    %177 = vector.shape_cast %176 : vector<2x64x128xf32> to vector<128x128xf32>
    %c0_116 = arith.constant 0 : index
    %c0_117 = arith.constant 0 : index
    %178 = vector.load %arg7[%c0_116, %c0_117] : memref<1x128xf32, #tpu.memory_space<vmem>>, vector<1x128xf32>
    %179 = vector.broadcast %178 : vector<1x128xf32> to vector<128x128xf32>
    %180 = arith.addf %175, %179 : vector<128x128xf32>
    %181 = arith.addf %180, %177 : vector<128x128xf32>
    %cst_118 = arith.constant 0.000000e+00 : f32
    %182 = vector.broadcast %cst_118 : f32 to vector<128x128xf32>
    %183 = arith.maximumf %181, %182 : vector<128x128xf32>
    %184 = vector.shape_cast %183 : vector<128x128xf32> to vector<2x64x128xf32>
    %c0_119 = arith.constant 0 : index
    %c0_120 = arith.constant 0 : index
    %c0_121 = arith.constant 0 : index
    %185 = vector.load %arg8[%c0_119, %c0_120, %c0_121] : memref<2x64x128xf32, #tpu.memory_space<vmem>>, vector<2x64x128xf32>
    tpu.vector_store %arg8[%c0_119, %c0_120, %c0_121], %184 {strides = array<i32>} : memref<2x64x128xf32, #tpu.memory_space<vmem>>, vector<2x64x128xf32>,
    return
  }
  func.func @transform_0(%arg0: i32) -> (i32, i32, i32) {
    %c0_i32 = arith.constant 0 : i32
    %c0_i32_0 = arith.constant 0 : i32
    %c0_i32_1 = arith.constant 0 : i32
    return %arg0, %c0_i32, %c0_i32_0 : i32, i32, i32
  }
  func.func @transform_1(%arg0: i32) -> (i32, i32) {
    %c0_i32 = arith.constant 0 : i32
    %c0_i32_0 = arith.constant 0 : i32
    %c0_i32_1 = arith.constant 0 : i32
    return %c0_i32, %c0_i32_0 : i32, i32
  }
  func.func @transform_2(%arg0: i32) -> (i32, i32) {
    %c0_i32 = arith.constant 0 : i32
    %c0_i32_0 = arith.constant 0 : i32
    %c0_i32_1 = arith.constant 0 : i32
    return %c0_i32, %c0_i32_0 : i32, i32
  }
  func.func @transform_3(%arg0: i32) -> (i32, i32, i32) {
    %c0_i32 = arith.constant 0 : i32
    %c0_i32_0 = arith.constant 0 : i32
    %c0_i32_1 = arith.constant 0 : i32
    %c0_i32_2 = arith.constant 0 : i32
    return %c0_i32, %c0_i32_0, %c0_i32_1 : i32, i32, i32
  }
  func.func @transform_4(%arg0: i32) -> (i32, i32) {
    %c0_i32 = arith.constant 0 : i32
    %c0_i32_0 = arith.constant 0 : i32
    %c0_i32_1 = arith.constant 0 : i32
    return %c0_i32, %c0_i32_0 : i32, i32
  }
  func.func @transform_5(%arg0: i32) -> (i32, i32) {
    %c0_i32 = arith.constant 0 : i32
    %c0_i32_0 = arith.constant 0 : i32
    %c0_i32_1 = arith.constant 0 : i32
    return %c0_i32, %c0_i32_0 : i32, i32
  }
  func.func @transform_6(%arg0: i32) -> (i32, i32) {
    %c0_i32 = arith.constant 0 : i32
    %c0_i32_0 = arith.constant 0 : i32
    %c0_i32_1 = arith.constant 0 : i32
    return %c0_i32, %c0_i32_0 : i32, i32
  }
  func.func @transform_7(%arg0: i32) -> (i32, i32, i32) {
    %c0_i32 = arith.constant 0 : i32
    %c0_i32_0 = arith.constant 0 : i32
    %c0_i32_1 = arith.constant 0 : i32
    return %arg0, %c0_i32, %c0_i32_0 : i32, i32, i32
  }
}

</mosaic_0001>

<llo_original>
// kernel: tpu_custom_call.1
$region0: #{tpu_custom_call.1}
  #allocation0 [shape = 'u32[]', space=smem, size = 0x4, offset = 0x4, fixed_abs, tag = 'smem constant byte address 0x4 - core index']
  #allocation1 [shape = 'u32[72,128]{1,0:T(1,128)}', space=vmem, size = 0x9000, scoped, tag = 'internal scratch']
  #allocation2 [shape = 'bf16[20,10,128]{2,1,0:T(8,128)(2,1)}', space=vmem, size = 0x14000, scoped, tag = 'scratch operand']
  %s0 = inlined_call_operand.hbm [shape: f32[2,64,128], index: 0, kind: input, shape index: {}]
  %s1 = inlined_call_operand.hbm [shape: bf16[128,128], index: 1, kind: input, shape index: {}]
  %s2 = inlined_call_operand.vmem [shape: f32[1,128], index: 2, kind: input, shape index: {}]
  %s3 = inlined_call_operand.hbm [shape: bf16[9,128,128], index: 3, kind: input, shape index: {}]
  %s4 = inlined_call_operand.vmem [shape: f32[1,128], index: 4, kind: input, shape index: {}]
  %s5 = inlined_call_operand.hbm [shape: bf16[128,128], index: 5, kind: input, shape index: {}]
  %s6 = inlined_call_operand.vmem [shape: f32[1,128], index: 6, kind: input, shape index: {}]
  %s7 = inlined_call_operand.hbm [shape: f32[2,64,128], index: 7, kind: output, shape index: {}]
  %s8 = sld [smem:[#allocation0]]
  $region54: #{tpu_custom_call.1} parent=0
    _
  %s10 = ssub.s32 1, %s8
  %s11 = scalar_select 0, %s10, %s8
  $region1: #{tpu_custom_call.1} parent=0
    #allocation3 [shape = 'u8[65536]{0}', space=vmem, size = 0x10000, scoped, tag = 'input window, operand 0, single buffered']
    #allocation4 [shape = 's32[1]{0}', space=sflag, size = 0x4, scoped, tag = 'scoped memory for tpu_custom_call.1']
    #allocation5 [shape = 's32[1]{0}', space=sflag, size = 0x4, scoped, tag = 'scoped memory for tpu_custom_call.1']
    #allocation6 [shape = 'u8[32768]{0}', space=vmem, size = 0x8000, scoped, tag = 'input window, operand 1, single buffered']
    #allocation7 [shape = 's32[1]{0}', space=sflag, size = 0x4, scoped, tag = 'scoped memory for tpu_custom_call.1']
    #allocation8 [shape = 'u8[294912]{0}', space=vmem, size = 0x48000, scoped, tag = 'input window, operand 3, single buffered']
    #allocation9 [shape = 'u8[32768]{0}', space=vmem, size = 0x8000, scoped, tag = 'input window, operand 5, single buffered']
    #allocation10 [shape = 's32[1]{0}', space=sflag, size = 0x4, scoped, tag = 'scoped memory for tpu_custom_call.1']
    #allocation11 [shape = 'u8[65536]{0}', space=vmem, size = 0x10000, scoped, tag = 'output window, operand 0, single buffered']
    %12 = vsyncpa [#allocation4], 0
    %13 = vsyncpa [#allocation7], 0
    %14 = vsyncpa [#allocation10], 0
    %15 = vsyncpa [#allocation5], 0
    // Predicated region
    $region2: #{tpu_custom_call.1} parent=1 // pred_check
      _
    $region3: #{tpu_custom_call.1} parent=1 // pred_check_branch
      %17 = sbr.rel (0) target = $region5
    $region4: #{tpu_custom_call.1} parent=1 // pred_region
      %19 = vsyncadd [#allocation4], 0
      %s20 = sshll.u32 %s0, 4
      %s21 = int_to_ptr.hbm [resolvable:$true] %s20
      %s22 = sshll.u32 [#allocation3], 4
      %s23 = int_to_ptr.vmem [resolvable:$true] %s22
      %28 = dma.hbm_to_vmem [thread:$0]  %s21, 2048, %s23, [#allocation4], 128, 128, 8
    $region5: #{tpu_custom_call.1} parent=1 // pred_fallthru
      _
    // Predicated region
    $region6: #{tpu_custom_call.1} parent=1 // pred_check
      _
    $region7: #{tpu_custom_call.1} parent=1 // pred_check_branch
      %30 = sbr.rel (0) target = $region9
    $region8: #{tpu_custom_call.1} parent=1 // pred_region
      %32 = vsyncadd [#allocation7], 0
      %s33 = sshll.u32 %s1, 4
      %s34 = int_to_ptr.hbm [resolvable:$true] %s33
      %s35 = sshll.u32 [#allocation6], 4
      %s36 = int_to_ptr.vmem [resolvable:$true] %s35
      %41 = dma.hbm_to_vmem [thread:$0]  %s34, 1024, %s36, [#allocation7], 64, 64, 4
    $region9: #{tpu_custom_call.1} parent=1 // pred_fallthru
      _
    // Predicated region
    $region10: #{tpu_custom_call.1} parent=1 // pred_check
      _
    $region11: #{tpu_custom_call.1} parent=1 // pred_check_branch
      %43 = sbr.rel (0) target = $region13
    $region12: #{tpu_custom_call.1} parent=1 // pred_region
      _
    $region13: #{tpu_custom_call.1} parent=1 // pred_fallthru
      _
    // Predicated region
    $region14: #{tpu_custom_call.1} parent=1 // pred_check
      _
    $region15: #{tpu_custom_call.1} parent=1 // pred_check_branch
      %45 = sbr.rel (0) target = $region17
    $region16: #{tpu_custom_call.1} parent=1 // pred_region
      %47 = vsyncadd [#allocation7], 0
      %s48 = sshll.u32 %s3, 4
      %s49 = int_to_ptr.hbm [resolvable:$true] %s48
      %s50 = sshll.u32 [#allocation8], 4
      %s51 = int_to_ptr.vmem [resolvable:$true] %s50
      %56 = dma.hbm_to_vmem [thread:$0]  %s49, 9216, %s51, [#allocation7], 64, 64, 4
    $region17: #{tpu_custom_call.1} parent=1 // pred_fallthru
      _
    // Predicated region
    $region18: #{tpu_custom_call.1} parent=1 // pred_check
      _
    $region19: #{tpu_custom_call.1} parent=1 // pred_check_branch
      %58 = sbr.rel (0) target = $region21
    $region20: #{tpu_custom_call.1} parent=1 // pred_region
      _
    $region21: #{tpu_custom_call.1} parent=1 // pred_fallthru
      _
    // Predicated region
    $region22: #{tpu_custom_call.1} parent=1 // pred_check
      _
    $region23: #{tpu_custom_call.1} parent=1 // pred_check_branch
      %60 = sbr.rel (0) target = $region25
    $region24: #{tpu_custom_call.1} parent=1 // pred_region
      %62 = vsyncadd [#allocation10], 0
      %s63 = sshll.u32 %s5, 4
      %s64 = int_to_ptr.hbm [resolvable:$true] %s63
      %s65 = sshll.u32 [#allocation9], 4
      %s66 = int_to_ptr.vmem [resolvable:$true] %s65
      %71 = dma.hbm_to_vmem [thread:$0]  %s64, 1024, %s66, [#allocation10], 64, 64, 4
    $region25: #{tpu_custom_call.1} parent=1 // pred_fallthru
      _
    // Predicated region
    $region26: #{tpu_custom_call.1} parent=1 // pred_check
      _
    $region27: #{tpu_custom_call.1} parent=1 // pred_check_branch
      %73 = sbr.rel (0) target = $region29
    $region28: #{tpu_custom_call.1} parent=1 // pred_region
      _
    $region29: #{tpu_custom_call.1} parent=1 // pred_fallthru
      _
    // Predicated region
    $region30: #{tpu_custom_call.1} parent=1 // pred_check
      _
    $region31: #{tpu_custom_call.1} parent=1 // pred_check_branch
      %75 = sbr.rel (0) target = $region33
    $region32: #{tpu_custom_call.1} parent=1 // pred_region
      %77 = dma.done [#allocation4], 2048
    $region33: #{tpu_custom_call.1} parent=1 // pred_fallthru
      _
    // Predicated region
    $region34: #{tpu_custom_call.1} parent=1 // pred_check
      _
    $region35: #{tpu_custom_call.1} parent=1 // pred_check_branch
      %79 = sbr.rel (0) target = $region37
    $region36: #{tpu_custom_call.1} parent=1 // pred_region
      %81 = dma.done [#allocation7], 1024
    $region37: #{tpu_custom_call.1} parent=1 // pred_fallthru
      _
    // Predicated region
    $region38: #{tpu_custom_call.1} parent=1 // pred_check
      _
    $region39: #{tpu_custom_call.1} parent=1 // pred_check_branch
      %83 = sbr.rel (0) target = $region41
    $region40: #{tpu_custom_call.1} parent=1 // pred_region
      %85 = dma.done [#allocation7], 9216
    $region41: #{tpu_custom_call.1} parent=1 // pred_fallthru
      _
    // Predicated region
    $region42: #{tpu_custom_call.1} parent=1 // pred_check
      _
    $region43: #{tpu_custom_call.1} parent=1 // pred_check_branch
      %87 = sbr.rel (0) target = $region45
    $region44: #{tpu_custom_call.1} parent=1 // pred_region
      %89 = dma.done [#allocation10], 1024
    $region45: #{tpu_custom_call.1} parent=1 // pred_fallthru
      _
    %v91 = vld [vmem:[#allocation3] sm:$0xff]
    %v92 = vld [vmem:[#allocation3 + $0x8] sm:$0xff]
    %v93 = vld [vmem:[#allocation3 + $0x10] sm:$0xff]
    %v94 = vld [vmem:[#allocation3 + $0x18] sm:$0xff]
    %v95 = vld [vmem:[#allocation3 + $0x20] sm:$0xff]
    %v96 = vld [vmem:[#allocation3 + $0x28] sm:$0xff]
    %v97 = vld [vmem:[#allocation3 + $0x30] sm:$0xff]
    %v98 = vld [vmem:[#allocation3 + $0x38] sm:$0xff]
    %v99 = vld [vmem:[#allocation3 + $0x40] sm:$0xff]
    %v100 = vld [vmem:[#allocation3 + $0x48] sm:$0xff]
    %v101 = vld [vmem:[#allocation3 + $0x50] sm:$0xff]
    %v102 = vld [vmem:[#allocation3 + $0x58] sm:$0xff]
    %v103 = vld [vmem:[#allocation3 + $0x60] sm:$0xff]
    %v104 = vld [vmem:[#allocation3 + $0x68] sm:$0xff]
    %v105 = vld [vmem:[#allocation3 + $0x70] sm:$0xff]
    %v106 = vld [vmem:[#allocation3 + $0x78] sm:$0xff]
    %v107 = vpack.c.bf16 %v92, %v91
    %v108 = vpack.c.bf16 %v94, %v93
    %v109 = vpack.c.bf16 %v96, %v95
    %v110 = vpack.c.bf16 %v98, %v97
    %v111 = vpack.c.bf16 %v100, %v99
    %v112 = vpack.c.bf16 %v102, %v101
    %v113 = vpack.c.bf16 %v104, %v103
    %v114 = vpack.c.bf16 %v106, %v105
    %v115 = vld [vmem:[#allocation6] sm:$0xf]
    %v116 = vld [vmem:[#allocation6 + $0x4] sm:$0xf]
    %v117 = vld [vmem:[#allocation6 + $0x8] sm:$0xf]
    %v118 = vld [vmem:[#allocation6 + $0xc] sm:$0xf]
    %v119 = vld [vmem:[#allocation6 + $0x10] sm:$0xf]
    %v120 = vld [vmem:[#allocation6 + $0x14] sm:$0xf]
    %v121 = vld [vmem:[#allocation6 + $0x18] sm:$0xf]
    %v122 = vld [vmem:[#allocation6 + $0x1c] sm:$0xf]
    %v123 = vld [vmem:[#allocation6 + $0x20] sm:$0xf]
    %v124 = vld [vmem:[#allocation6 + $0x24] sm:$0xf]
    %v125 = vld [vmem:[#allocation6 + $0x28] sm:$0xf]
    %v126 = vld [vmem:[#allocation6 + $0x2c] sm:$0xf]
    %v127 = vld [vmem:[#allocation6 + $0x30] sm:$0xf]
    %v128 = vld [vmem:[#allocation6 + $0x34] sm:$0xf]
    %v129 = vld [vmem:[#allocation6 + $0x38] sm:$0xf]
    %v130 = vld [vmem:[#allocation6 + $0x3c] sm:$0xf]
    %v131 = vld [vmem:[%s2] sm:$0x1]
    %v133 = vperm.slane %v131, 0
    %v151 = vunpack.c.l.b16 %v115
    %v152 = vunpack.c.l.b16 %v116
    %v153 = vunpack.c.l.b16 %v117
    %v154 = vunpack.c.l.b16 %v118
    %v155 = vunpack.c.l.b16 %v119
    %v156 = vunpack.c.l.b16 %v120
    %v157 = vunpack.c.l.b16 %v121
    %v158 = vunpack.c.l.b16 %v122
    %v159 = vunpack.c.l.b16 %v123
    %v160 = vunpack.c.l.b16 %v124
    %v161 = vunpack.c.l.b16 %v125
    %v162 = vunpack.c.l.b16 %v126
    %v163 = vunpack.c.l.b16 %v127
    %v164 = vunpack.c.l.b16 %v128
    %v165 = vunpack.c.l.b16 %v129
    %v166 = vunpack.c.l.b16 %v130
    %v167 = vpack.c.b16 %v152, %v151
    %v168 = vpack.c.b16 %v154, %v153
    %v169 = vpack.c.b16 %v156, %v155
    %v170 = vpack.c.b16 %v158, %v157
    %v171 = vpack.c.b16 %v160, %v159
    %v172 = vpack.c.b16 %v162, %v161
    %v173 = vpack.c.b16 %v164, %v163
    %v174 = vpack.c.b16 %v166, %v165
    %183 = vmatpush.bf16.msra.mxu0 %v174
    %184 = vmatpush.bf16.msra.mxu0 %v173
    %185 = vmatpush.bf16.msra.mxu0 %v172
    %186 = vmatpush.bf16.msra.mxu0 %v171
    %187 = vmatpush.bf16.msra.mxu0 %v170
    %188 = vmatpush.bf16.msra.mxu0 %v169
    %189 = vmatpush.bf16.msra.mxu0 %v168
    %190 = vmatpush.bf16.msra.mxu0 %v167
    %191 = vmatmul.bf16.gmra.mxu0 %v107
    %v192 = vpop.f32.mrf.mxu0
    %v193 = vadd.f32 %v133, %v192
    %v194 = vpop.f32.mrf.mxu0
    %v195 = vadd.f32 %v133, %v194
    %196 = vmatmul.bf16.gmra.mxu0 %v108
    %v197 = vpop.f32.mrf.mxu0
    %v198 = vadd.f32 %v133, %v197
    %v199 = vpop.f32.mrf.mxu0
    %v200 = vadd.f32 %v133, %v199
    %201 = vmatmul.bf16.gmra.mxu0 %v109
    %v202 = vpop.f32.mrf.mxu0
    %v203 = vadd.f32 %v133, %v202
    %v204 = vpop.f32.mrf.mxu0
    %v205 = vadd.f32 %v133, %v204
    %206 = vmatmul.bf16.gmra.mxu0 %v110
    %v207 = vpop.f32.mrf.mxu0
    %v208 = vadd.f32 %v133, %v207
    %v209 = vpop.f32.mrf.mxu0
    %v210 = vadd.f32 %v133, %v209
    %211 = vmatmul.bf16.gmra.mxu0 %v111
    %v212 = vpop.f32.mrf.mxu0
    %v213 = vadd.f32 %v133, %v212
    %v214 = vpop.f32.mrf.mxu0
    %v215 = vadd.f32 %v133, %v214
    %216 = vmatmul.bf16.gmra.mxu0 %v112
    %v217 = vpop.f32.mrf.mxu0
    %v218 = vadd.f32 %v133, %v217
    %v219 = vpop.f32.mrf.mxu0
    %v220 = vadd.f32 %v133, %v219
    %221 = vmatmul.bf16.gmra.mxu0 %v113
    %v222 = vpop.f32.mrf.mxu0
    %v223 = vadd.f32 %v133, %v222
    %v224 = vpop.f32.mrf.mxu0
    %v225 = vadd.f32 %v133, %v224
    %226 = vmatmul.bf16.gmra.mxu0 %v114
    %v227 = vpop.f32.mrf.mxu0
    %v228 = vadd.f32 %v133, %v227
    %v229 = vpop.f32.mrf.mxu0
    %v230 = vadd.f32 %v133, %v229
    %231 = vdwg.mxu0
    %v232 = vmax.f32 %v193, 0.0
    %v233 = vmax.f32 %v195, 0.0
    %v234 = vmax.f32 %v198, 0.0
    %v235 = vmax.f32 %v200, 0.0
    %v236 = vmax.f32 %v203, 0.0
    %v237 = vmax.f32 %v205, 0.0
    %v238 = vmax.f32 %v208, 0.0
    %v239 = vmax.f32 %v210, 0.0
    %v240 = vmax.f32 %v213, 0.0
    %v241 = vmax.f32 %v215, 0.0
    %v242 = vmax.f32 %v218, 0.0
    %v243 = vmax.f32 %v220, 0.0
    %v244 = vmax.f32 %v223, 0.0
    %v245 = vmax.f32 %v225, 0.0
    %v246 = vmax.f32 %v228, 0.0
    %v247 = vmax.f32 %v230, 0.0
    %v256 = vrot.slane %v232, 7
    %v257 = vrot.slane %v233, 7
    %v258 = vrot.slane %v234, 7
    %v259 = vrot.slane %v235, 7
    %v260 = vrot.slane %v236, 7
    %v261 = vrot.slane %v237, 7
    %v262 = vrot.slane %v238, 7
    %v263 = vrot.slane %v239, 7
    %vm272 = vcmask 1040384
    %v273 = vsel %vm272, 0.0, %v256
    %v274 = vsel %vm272, 0.0, %v257
    %v275 = vsel %vm272, 0.0, %v258
    %v276 = vsel %vm272, 0.0, %v259
    %v277 = vsel %vm272, 0.0, %v260
    %v278 = vsel %vm272, 0.0, %v261
    %v279 = vsel %vm272, 0.0, %v262
    %v280 = vsel %vm272, 0.0, %v263
    %v281 = vsel %vm272, %v256, 0.0
    %v282 = vsel %vm272, %v257, 0.0
    %v283 = vsel %vm272, %v258, 0.0
    %v284 = vsel %vm272, %v259, 0.0
    %v285 = vsel %vm272, %v260, 0.0
    %v286 = vsel %vm272, %v261, 0.0
    %v287 = vsel %vm272, %v262, 0.0
    %v288 = vsel %vm272, %v263, 0.0
    %289 = vst [vmem:[#allocation2] sm:$0xf] 0
    %290 = vst [vmem:[#allocation2 + $0x4] sm:$0x1] 0
    %s291 = scalar_lea.vmem [#allocation2], 72
    %292 = vst [vmem:[%s291] sm:$0xf] 0
    %293 = vst [vmem:[%s291 + $0x4] sm:$0x1] 0
    %v294 = vpack.c.bf16 %v273, %v273
    %v295 = vpack.c.bf16 %v281, %v281
    %v296 = vpack.c.bf16 %v274, %v274
    %v297 = vpack.c.bf16 %v282, %v282
    %v298 = vpack.c.bf16 %v275, %v275
    %v299 = vpack.c.bf16 %v283, %v283
    %v300 = vpack.c.bf16 %v276, %v276
    %v301 = vpack.c.bf16 %v284, %v284
    %v302 = vpack.c.bf16 %v277, %v277
    %v303 = vpack.c.bf16 %v285, %v285
    %v304 = vpack.c.bf16 %v278, %v278
    %v305 = vpack.c.bf16 %v286, %v286
    %v306 = vpack.c.bf16 %v279, %v279
    %v307 = vpack.c.bf16 %v287, %v287
    %v308 = vpack.c.bf16 %v280, %v280
    %v309 = vpack.c.bf16 %v288, %v288
    %s310 = scalar_lea.vmem [#allocation2], 8
    %311 = vst [vmem:[%s310] sm:$0xf] %v294
    %312 = vst [vmem:[%s310 + $0x4] sm:$0x1] %v295
    %313 = vst [vmem:[%s310 + $0x8] sm:$0xf] %v296
    %314 = vst [vmem:[%s310 + $0xc] sm:$0x1] %v297
    %315 = vst [vmem:[%s310 + $0x10] sm:$0xf] %v298
    %316 = vst [vmem:[%s310 + $0x14] sm:$0x1] %v299
    %317 = vst [vmem:[%s310 + $0x18] sm:$0xf] %v300
    %318 = vst [vmem:[%s310 + $0x1c] sm:$0x1] %v301
    %319 = vst [vmem:[%s310 + $0x20] sm:$0xf] %v302
    %320 = vst [vmem:[%s310 + $0x24] sm:$0x1] %v303
    %321 = vst [vmem:[%s310 + $0x28] sm:$0xf] %v304
    %322 = vst [vmem:[%s310 + $0x2c] sm:$0x1] %v305
    %323 = vst [vmem:[%s310 + $0x30] sm:$0xf] %v306
    %324 = vst [vmem:[%s310 + $0x34] sm:$0x1] %v307
    %325 = vst [vmem:[%s310 + $0x38] sm:$0xf] %v308
    %326 = vst [vmem:[%s310 + $0x3c] sm:$0x1] %v309
    %v327 = vld [vmem:[#allocation2] sm:$0xf]
    %v328 = vld [vmem:[#allocation2 + $0x4] sm:$0x1]
    %v329 = vld [vmem:[#allocation2 + $0x8] sm:$0xf]
    %v330 = vld [vmem:[#allocation2 + $0xc] sm:$0x1]
    %v331 = vld [vmem:[#allocation2 + $0x10] sm:$0xf]
    %v332 = vld [vmem:[#allocation2 + $0x14] sm:$0x1]
    %v333 = vld [vmem:[#allocation2 + $0x18] sm:$0xf]
    %v334 = vld [vmem:[#allocation2 + $0x1c] sm:$0x1]
    %v335 = vld [vmem:[#allocation2 + $0x20] sm:$0xf]
    %v336 = vld [vmem:[#allocation2 + $0x24] sm:$0x1]
    %v337 = vld [vmem:[#allocation2 + $0x28] sm:$0xf]
    %v338 = vld [vmem:[#allocation2 + $0x2c] sm:$0x1]
    %v339 = vld [vmem:[#allocation2 + $0x30] sm:$0xf]
    %v340 = vld [vmem:[#allocation2 + $0x34] sm:$0x1]
    %v341 = vld [vmem:[#allocation2 + $0x38] sm:$0xf]
    %v342 = vld [vmem:[#allocation2 + $0x3c] sm:$0x1]
    %v343 = vunpack.c.l.bf16 %v327
    %v344 = vunpack.c.l.bf16 %v328
    %v345 = vunpack.c.l.bf16 %v329
    %v346 = vunpack.c.l.bf16 %v330
    %v347 = vunpack.c.l.bf16 %v331
    %v348 = vunpack.c.l.bf16 %v332
    %v349 = vunpack.c.l.bf16 %v333
    %v350 = vunpack.c.l.bf16 %v334
    %v351 = vunpack.c.l.bf16 %v335
    %v352 = vunpack.c.l.bf16 %v336
    %v353 = vunpack.c.l.bf16 %v337
    %v354 = vunpack.c.l.bf16 %v338
    %v355 = vunpack.c.l.bf16 %v339
    %v356 = vunpack.c.l.bf16 %v340
    %v357 = vunpack.c.l.bf16 %v341
    %v358 = vunpack.c.l.bf16 %v342
    %v359 = vpack.c.bf16 %v345, %v343
    %v360 = vpack.c.bf16 %v349, %v347
    %v361 = vpack.c.bf16 %v353, %v351
    %v362 = vpack.c.bf16 %v357, %v355
    %v363 = vld [vmem:[#allocation8] sm:$0xf]
    %v364 = vld [vmem:[#allocation8 + $0x4] sm:$0xf]
    %v365 = vld [vmem:[#allocation8 + $0x8] sm:$0xf]
    %v366 = vld [vmem:[#allocation8 + $0xc] sm:$0xf]
    %v367 = vld [vmem:[#allocation8 + $0x10] sm:$0xf]
    %v368 = vld [vmem:[#allocation8 + $0x14] sm:$0xf]
    %v369 = vld [vmem:[#allocation8 + $0x18] sm:$0xf]
    %v370 = vld [vmem:[#allocation8 + $0x1c] sm:$0xf]
    %v371 = vld [vmem:[#allocation8 + $0x20] sm:$0xf]
    %v372 = vld [vmem:[#allocation8 + $0x24] sm:$0xf]
    %v373 = vld [vmem:[#allocation8 + $0x28] sm:$0xf]
    %v374 = vld [vmem:[#allocation8 + $0x2c] sm:$0xf]
    %v375 = vld [vmem:[#allocation8 + $0x30] sm:$0xf]
    %v376 = vld [vmem:[#allocation8 + $0x34] sm:$0xf]
    %v377 = vld [vmem:[#allocation8 + $0x38] sm:$0xf]
    %v378 = vld [vmem:[#allocation8 + $0x3c] sm:$0xf]
    %vm395 = vcmask 1046528
    %v396 = vrot.slane %v343, 1
    %v397 = vrot.slane %v344, 1
    %v398 = vsel %vm395, %v396, %v397
    %v399 = vrot.slane %v345, 1
    %v400 = vrot.slane %v346, 1
    %v401 = vsel %vm395, %v399, %v400
    %v402 = vrot.slane %v347, 1
    %v403 = vrot.slane %v348, 1
    %v404 = vsel %vm395, %v402, %v403
    %v405 = vrot.slane %v349, 1
    %v406 = vrot.slane %v350, 1
    %v407 = vsel %vm395, %v405, %v406
    %v408 = vrot.slane %v351, 1
    %v409 = vrot.slane %v352, 1
    %v410 = vsel %vm395, %v408, %v409
    %v411 = vrot.slane %v353, 1
    %v412 = vrot.slane %v354, 1
    %v413 = vsel %vm395, %v411, %v412
    %v414 = vrot.slane %v355, 1
    %v415 = vrot.slane %v356, 1
    %v416 = vsel %vm395, %v414, %v415
    %v417 = vrot.slane %v357, 1
    %v418 = vrot.slane %v358, 1
    %v419 = vsel %vm395, %v417, %v418
    %v428 = vpack.c.bf16 %v401, %v398
    %v429 = vpack.c.bf16 %v407, %v404
    %v430 = vpack.c.bf16 %v413, %v410
    %v431 = vpack.c.bf16 %v419, %v416
    %s432 = scalar_lea.vmem [#allocation8], 64
    %v433 = vld [vmem:[%s432] sm:$0xf]
    %v434 = vld [vmem:[%s432 + $0x4] sm:$0xf]
    %v435 = vld [vmem:[%s432 + $0x8] sm:$0xf]
    %v436 = vld [vmem:[%s432 + $0xc] sm:$0xf]
    %v437 = vld [vmem:[%s432 + $0x10] sm:$0xf]
    %v438 = vld [vmem:[%s432 + $0x14] sm:$0xf]
    %v439 = vld [vmem:[%s432 + $0x18] sm:$0xf]
    %v440 = vld [vmem:[%s432 + $0x1c] sm:$0xf]
    %v441 = vld [vmem:[%s432 + $0x20] sm:$0xf]
    %v442 = vld [vmem:[%s432 + $0x24] sm:$0xf]
    %v443 = vld [vmem:[%s432 + $0x28] sm:$0xf]
    %v444 = vld [vmem:[%s432 + $0x2c] sm:$0xf]
    %v445 = vld [vmem:[%s432 + $0x30] sm:$0xf]
    %v446 = vld [vmem:[%s432 + $0x34] sm:$0xf]
    %v447 = vld [vmem:[%s432 + $0x38] sm:$0xf]
    %v448 = vld [vmem:[%s432 + $0x3c] sm:$0xf]
    %v465 = vunpack.c.l.b16 %v433
    %v466 = vunpack.c.l.b16 %v434
    %v467 = vunpack.c.l.b16 %v435
    %v468 = vunpack.c.l.b16 %v436
    %v469 = vunpack.c.l.b16 %v437
    %v470 = vunpack.c.l.b16 %v438
    %v471 = vunpack.c.l.b16 %v439
    %v472 = vunpack.c.l.b16 %v440
    %v473 = vunpack.c.l.b16 %v441
    %v474 = vunpack.c.l.b16 %v442
    %v475 = vunpack.c.l.b16 %v443
    %v476 = vunpack.c.l.b16 %v444
    %v477 = vunpack.c.l.b16 %v445
    %v478 = vunpack.c.l.b16 %v446
    %v479 = vunpack.c.l.b16 %v447
    %v480 = vunpack.c.l.b16 %v448
    %v481 = vpack.c.b16 %v466, %v465
    %v482 = vpack.c.b16 %v468, %v467
    %v483 = vpack.c.b16 %v470, %v469
    %v484 = vpack.c.b16 %v472, %v471
    %v485 = vpack.c.b16 %v474, %v473
    %v486 = vpack.c.b16 %v476, %v475
    %v487 = vpack.c.b16 %v478, %v477
    %v488 = vpack.c.b16 %v480, %v479
    %497 = vmatpush.bf16.msra.mxu0 %v488
    %498 = vmatpush.bf16.msra.mxu0 %v487
    %499 = vmatpush.bf16.msra.mxu0 %v486
    %500 = vmatpush.bf16.msra.mxu0 %v485
    %501 = vmatpush.bf16.msra.mxu0 %v484
    %502 = vmatpush.bf16.msra.mxu0 %v483
    %503 = vmatpush.bf16.msra.mxu0 %v482
    %504 = vmatpush.bf16.msra.mxu0 %v481
    %505 = vmatmul.bf16.gmra.mxu0 %v428
    %v506 = vpop.f32.mrf.mxu0
    %v507 = vadd.f32 0.0, %v506
    %v508 = vpop.f32.mrf.mxu0
    %v509 = vadd.f32 0.0, %v508
    %510 = vmatmul.bf16.gmra.mxu0 %v429
    %v511 = vpop.f32.mrf.mxu0
    %v512 = vadd.f32 0.0, %v511
    %v513 = vpop.f32.mrf.mxu0
    %v514 = vadd.f32 0.0, %v513
    %515 = vmatmul.bf16.gmra.mxu0 %v430
    %v516 = vpop.f32.mrf.mxu0
    %v517 = vadd.f32 0.0, %v516
    %v518 = vpop.f32.mrf.mxu0
    %v519 = vadd.f32 0.0, %v518
    %520 = vmatmul.bf16.gmra.mxu0 %v431
    %v521 = vpop.f32.mrf.mxu0
    %v522 = vadd.f32 0.0, %v521
    %v523 = vpop.f32.mrf.mxu0
    %v524 = vadd.f32 0.0, %v523
    %525 = vdwg.mxu0
    %v542 = vunpack.c.l.b16 %v363
    %v543 = vunpack.c.l.b16 %v364
    %v544 = vunpack.c.l.b16 %v365
    %v545 = vunpack.c.l.b16 %v366
    %v546 = vunpack.c.l.b16 %v367
    %v547 = vunpack.c.l.b16 %v368
    %v548 = vunpack.c.l.b16 %v369
    %v549 = vunpack.c.l.b16 %v370
    %v550 = vunpack.c.l.b16 %v371
    %v551 = vunpack.c.l.b16 %v372
    %v552 = vunpack.c.l.b16 %v373
    %v553 = vunpack.c.l.b16 %v374
    %v554 = vunpack.c.l.b16 %v375
    %v555 = vunpack.c.l.b16 %v376
    %v556 = vunpack.c.l.b16 %v377
    %v557 = vunpack.c.l.b16 %v378
    %v558 = vpack.c.b16 %v543, %v542
    %v559 = vpack.c.b16 %v545, %v544
    %v560 = vpack.c.b16 %v547, %v546
    %v561 = vpack.c.b16 %v549, %v548
    %v562 = vpack.c.b16 %v551, %v550
    %v563 = vpack.c.b16 %v553, %v552
    %v564 = vpack.c.b16 %v555, %v554
    %v565 = vpack.c.b16 %v557, %v556
    %574 = vmatpush.bf16.msra.mxu0 %v565
    %575 = vmatpush.bf16.msra.mxu0 %v564
    %576 = vmatpush.bf16.msra.mxu0 %v563
    %577 = vmatpush.bf16.msra.mxu0 %v562
    %578 = vmatpush.bf16.msra.mxu0 %v561
    %579 = vmatpush.bf16.msra.mxu0 %v560
    %580 = vmatpush.bf16.msra.mxu0 %v559
    %581 = vmatpush.bf16.msra.mxu0 %v558
    %582 = vmatmul.bf16.gmra.mxu0 %v359
    %v583 = vpop.f32.mrf.mxu0
    %v584 = vadd.f32 %v507, %v583
    %v585 = vpop.f32.mrf.mxu0
    %v586 = vadd.f32 %v509, %v585
    %587 = vmatmul.bf16.gmra.mxu0 %v360
    %v588 = vpop.f32.mrf.mxu0
    %v589 = vadd.f32 %v512, %v588
    %v590 = vpop.f32.mrf.mxu0
    %v591 = vadd.f32 %v514, %v590
    %592 = vmatmul.bf16.gmra.mxu0 %v361
    %v593 = vpop.f32.mrf.mxu0
    %v594 = vadd.f32 %v517, %v593
    %v595 = vpop.f32.mrf.mxu0
    %v596 = vadd.f32 %v519, %v595
    %597 = vmatmul.bf16.gmra.mxu0 %v362
    %v598 = vpop.f32.mrf.mxu0
    %v599 = vadd.f32 %v522, %v598
    %v600 = vpop.f32.mrf.mxu0
    %v601 = vadd.f32 %v524, %v600
    %602 = vdwg.mxu0
    %vm603 = vcmask 1045504
    %v604 = vrot.slane %v343, 2
    %v605 = vrot.slane %v344, 2
    %v606 = vsel %vm603, %v604, %v605
    %v607 = vrot.slane %v345, 2
    %v608 = vrot.slane %v346, 2
    %v609 = vsel %vm603, %v607, %v608
    %v610 = vrot.slane %v347, 2
    %v611 = vrot.slane %v348, 2
    %v612 = vsel %vm603, %v610, %v611
    %v613 = vrot.slane %v349, 2
    %v614 = vrot.slane %v350, 2
    %v615 = vsel %vm603, %v613, %v614
    %v616 = vrot.slane %v351, 2
    %v617 = vrot.slane %v352, 2
    %v618 = vsel %vm603, %v616, %v617
    %v619 = vrot.slane %v353, 2
    %v620 = vrot.slane %v354, 2
    %v621 = vsel %vm603, %v619, %v620
    %v622 = vrot.slane %v355, 2
    %v623 = vrot.slane %v356, 2
    %v624 = vsel %vm603, %v622, %v623
    %v625 = vrot.slane %v357, 2
    %v626 = vrot.slane %v358, 2
    %v627 = vsel %vm603, %v625, %v626
    %v636 = vpack.c.bf16 %v609, %v606
    %v637 = vpack.c.bf16 %v615, %v612
    %v638 = vpack.c.bf16 %v621, %v618
    %v639 = vpack.c.bf16 %v627, %v624
    %s640 = scalar_lea.vmem [#allocation8], 128
    %v641 = vld [vmem:[%s640] sm:$0xf]
    %v642 = vld [vmem:[%s640 + $0x4] sm:$0xf]
    %v643 = vld [vmem:[%s640 + $0x8] sm:$0xf]
    %v644 = vld [vmem:[%s640 + $0xc] sm:$0xf]
    %v645 = vld [vmem:[%s640 + $0x10] sm:$0xf]
    %v646 = vld [vmem:[%s640 + $0x14] sm:$0xf]
    %v647 = vld [vmem:[%s640 + $0x18] sm:$0xf]
    %v648 = vld [vmem:[%s640 + $0x1c] sm:$0xf]
    %v649 = vld [vmem:[%s640 + $0x20] sm:$0xf]
    %v650 = vld [vmem:[%s640 + $0x24] sm:$0xf]
    %v651 = vld [vmem:[%s640 + $0x28] sm:$0xf]
    %v652 = vld [vmem:[%s640 + $0x2c] sm:$0xf]
    %v653 = vld [vmem:[%s640 + $0x30] sm:$0xf]
    %v654 = vld [vmem:[%s640 + $0x34] sm:$0xf]
    %v655 = vld [vmem:[%s640 + $0x38] sm:$0xf]
    %v656 = vld [vmem:[%s640 + $0x3c] sm:$0xf]
    %v673 = vunpack.c.l.b16 %v641
    %v674 = vunpack.c.l.b16 %v642
    %v675 = vunpack.c.l.b16 %v643
    %v676 = vunpack.c.l.b16 %v644
    %v677 = vunpack.c.l.b16 %v645
    %v678 = vunpack.c.l.b16 %v646
    %v679 = vunpack.c.l.b16 %v647
    %v680 = vunpack.c.l.b16 %v648
    %v681 = vunpack.c.l.b16 %v649
    %v682 = vunpack.c.l.b16 %v650
    %v683 = vunpack.c.l.b16 %v651
    %v684 = vunpack.c.l.b16 %v652
    %v685 = vunpack.c.l.b16 %v653
    %v686 = vunpack.c.l.b16 %v654
    %v687 = vunpack.c.l.b16 %v655
    %v688 = vunpack.c.l.b16 %v656
    %v689 = vpack.c.b16 %v674, %v673
    %v690 = vpack.c.b16 %v676, %v675
    %v691 = vpack.c.b16 %v678, %v677
    %v692 = vpack.c.b16 %v680, %v679
    %v693 = vpack.c.b16 %v682, %v681
    %v694 = vpack.c.b16 %v684, %v683
    %v695 = vpack.c.b16 %v686, %v685
    %v696 = vpack.c.b16 %v688, %v687
    %705 = vmatpush.bf16.msra.mxu0 %v696
    %706 = vmatpush.bf16.msra.mxu0 %v695
    %707 = vmatpush.bf16.msra.mxu0 %v694
    %708 = vmatpush.bf16.msra.mxu0 %v693
    %709 = vmatpush.bf16.msra.mxu0 %v692
    %710 = vmatpush.bf16.msra.mxu0 %v691
    %711 = vmatpush.bf16.msra.mxu0 %v690
    %712 = vmatpush.bf16.msra.mxu0 %v689
    %713 = vmatmul.bf16.gmra.mxu0 %v636
    %v714 = vpop.f32.mrf.mxu0
    %v715 = vadd.f32 0.0, %v714
    %v716 = vpop.f32.mrf.mxu0
    %v717 = vadd.f32 0.0, %v716
    %718 = vmatmul.bf16.gmra.mxu0 %v637
    %v719 = vpop.f32.mrf.mxu0
    %v720 = vadd.f32 0.0, %v719
    %v721 = vpop.f32.mrf.mxu0
    %v722 = vadd.f32 0.0, %v721
    %723 = vmatmul.bf16.gmra.mxu0 %v638
    %v724 = vpop.f32.mrf.mxu0
    %v725 = vadd.f32 0.0, %v724
    %v726 = vpop.f32.mrf.mxu0
    %v727 = vadd.f32 0.0, %v726
    %728 = vmatmul.bf16.gmra.mxu0 %v639
    %v729 = vpop.f32.mrf.mxu0
    %v730 = vadd.f32 0.0, %v729
    %v731 = vpop.f32.mrf.mxu0
    %v732 = vadd.f32 0.0, %v731
    %733 = vdwg.mxu0
    %v734 = vadd.f32 %v584, %v715
    %v735 = vadd.f32 %v586, %v717
    %v736 = vadd.f32 %v589, %v720
    %v737 = vadd.f32 %v591, %v722
    %v738 = vadd.f32 %v594, %v725
    %v739 = vadd.f32 %v596, %v727
    %v740 = vadd.f32 %v599, %v730
    %v741 = vadd.f32 %v601, %v732
    %v742 = vld [vmem:[%s310] sm:$0xf]
    %v743 = vld [vmem:[%s310 + $0x4] sm:$0x1]
    %v744 = vld [vmem:[%s310 + $0x8] sm:$0xf]
    %v745 = vld [vmem:[%s310 + $0xc] sm:$0x1]
    %v746 = vld [vmem:[%s310 + $0x10] sm:$0xf]
    %v747 = vld [vmem:[%s310 + $0x14] sm:$0x1]
    %v748 = vld [vmem:[%s310 + $0x18] sm:$0xf]
    %v749 = vld [vmem:[%s310 + $0x1c] sm:$0x1]
    %v750 = vld [vmem:[%s310 + $0x20] sm:$0xf]
    %v751 = vld [vmem:[%s310 + $0x24] sm:$0x1]
    %v752 = vld [vmem:[%s310 + $0x28] sm:$0xf]
    %v753 = vld [vmem:[%s310 + $0x2c] sm:$0x1]
    %v754 = vld [vmem:[%s310 + $0x30] sm:$0xf]
    %v755 = vld [vmem:[%s310 + $0x34] sm:$0x1]
    %v756 = vld [vmem:[%s310 + $0x38] sm:$0xf]
    %v757 = vld [vmem:[%s310 + $0x3c] sm:$0x1]
    %v758 = vunpack.c.l.bf16 %v742
    %v759 = vunpack.c.l.bf16 %v743
    %v760 = vunpack.c.l.bf16 %v744
    %v761 = vunpack.c.l.bf16 %v745
    %v762 = vunpack.c.l.bf16 %v746
    %v763 = vunpack.c.l.bf16 %v747
    %v764 = vunpack.c.l.bf16 %v748
    %v765 = vunpack.c.l.bf16 %v749
    %v766 = vunpack.c.l.bf16 %v750
    %v767 = vunpack.c.l.bf16 %v751
    %v768 = vunpack.c.l.bf16 %v752
    %v769 = vunpack.c.l.bf16 %v753
    %v770 = vunpack.c.l.bf16 %v754
    %v771 = vunpack.c.l.bf16 %v755
    %v772 = vunpack.c.l.bf16 %v756
    %v773 = vunpack.c.l.bf16 %v757
    %v774 = vpack.c.bf16 %v760, %v758
    %v775 = vpack.c.bf16 %v764, %v762
    %v776 = vpack.c.bf16 %v768, %v766
    %v777 = vpack.c.bf16 %v772, %v770
    %s778 = scalar_lea.vmem [#allocation8], 192
    %v779 = vld [vmem:[%s778] sm:$0xf]
    %v780 = vld [vmem:[%s778 + $0x4] sm:$0xf]
    %v781 = vld [vmem:[%s778 + $0x8] sm:$0xf]
    %v782 = vld [vmem:[%s778 + $0xc] sm:$0xf]
    %v783 = vld [vmem:[%s778 + $0x10] sm:$0xf]
    %v784 = vld [vmem:[%s778 + $0x14] sm:$0xf]
    %v785 = vld [vmem:[%s778 + $0x18] sm:$0xf]
    %v786 = vld [vmem:[%s778 + $0x1c] sm:$0xf]
    %v787 = vld [vmem:[%s778 + $0x20] sm:$0xf]
    %v788 = vld [vmem:[%s778 + $0x24] sm:$0xf]
    %v789 = vld [vmem:[%s778 + $0x28] sm:$0xf]
    %v790 = vld [vmem:[%s778 + $0x2c] sm:$0xf]
    %v791 = vld [vmem:[%s778 + $0x30] sm:$0xf]
    %v792 = vld [vmem:[%s778 + $0x34] sm:$0xf]
    %v793 = vld [vmem:[%s778 + $0x38] sm:$0xf]
    %v794 = vld [vmem:[%s778 + $0x3c] sm:$0xf]
    %v811 = vunpack.c.l.b16 %v779
    %v812 = vunpack.c.l.b16 %v780
    %v813 = vunpack.c.l.b16 %v781
    %v814 = vunpack.c.l.b16 %v782
    %v815 = vunpack.c.l.b16 %v783
    %v816 = vunpack.c.l.b16 %v784
    %v817 = vunpack.c.l.b16 %v785
    %v818 = vunpack.c.l.b16 %v786
    %v819 = vunpack.c.l.b16 %v787
    %v820 = vunpack.c.l.b16 %v788
    %v821 = vunpack.c.l.b16 %v789
    %v822 = vunpack.c.l.b16 %v790
    %v823 = vunpack.c.l.b16 %v791
    %v824 = vunpack.c.l.b16 %v792
    %v825 = vunpack.c.l.b16 %v793
    %v826 = vunpack.c.l.b16 %v794
    %v827 = vpack.c.b16 %v812, %v811
    %v828 = vpack.c.b16 %v814, %v813
    %v829 = vpack.c.b16 %v816, %v815
    %v830 = vpack.c.b16 %v818, %v817
    %v831 = vpack.c.b16 %v820, %v819
    %v832 = vpack.c.b16 %v822, %v821
    %v833 = vpack.c.b16 %v824, %v823
    %v834 = vpack.c.b16 %v826, %v825
    %843 = vmatpush.bf16.msra.mxu0 %v834
    %844 = vmatpush.bf16.msra.mxu0 %v833
    %845 = vmatpush.bf16.msra.mxu0 %v832
    %846 = vmatpush.bf16.msra.mxu0 %v831
    %847 = vmatpush.bf16.msra.mxu0 %v830
    %848 = vmatpush.bf16.msra.mxu0 %v829
    %849 = vmatpush.bf16.msra.mxu0 %v828
    %850 = vmatpush.bf16.msra.mxu0 %v827
    %851 = vmatmul.bf16.gmra.mxu0 %v774
    %v852 = vpop.f32.mrf.mxu0
    %v853 = vadd.f32 0.0, %v852
    %v854 = vpop.f32.mrf.mxu0
    %v855 = vadd.f32 0.0, %v854
    %856 = vmatmul.bf16.gmra.mxu0 %v775
    %v857 = vpop.f32.mrf.mxu0
    %v858 = vadd.f32 0.0, %v857
    %v859 = vpop.f32.mrf.mxu0
    %v860 = vadd.f32 0.0, %v859
    %861 = vmatmul.bf16.gmra.mxu0 %v776
    %v862 = vpop.f32.mrf.mxu0
    %v863 = vadd.f32 0.0, %v862
    %v864 = vpop.f32.mrf.mxu0
    %v865 = vadd.f32 0.0, %v864
    %866 = vmatmul.bf16.gmra.mxu0 %v777
    %v867 = vpop.f32.mrf.mxu0
    %v868 = vadd.f32 0.0, %v867
    %v869 = vpop.f32.mrf.mxu0
    %v870 = vadd.f32 0.0, %v869
    %871 = vdwg.mxu0
    %v872 = vadd.f32 %v734, %v853
    %v873 = vadd.f32 %v735, %v855
    %v874 = vadd.f32 %v736, %v858
    %v875 = vadd.f32 %v737, %v860
    %v876 = vadd.f32 %v738, %v863
    %v877 = vadd.f32 %v739, %v865
    %v878 = vadd.f32 %v740, %v868
    %v879 = vadd.f32 %v741, %v870
    %v896 = vrot.slane %v758, 1
    %v897 = vrot.slane %v759, 1
    %v898 = vsel %vm395, %v896, %v897
    %v899 = vrot.slane %v760, 1
    %v900 = vrot.slane %v761, 1
    %v901 = vsel %vm395, %v899, %v900
    %v902 = vrot.slane %v762, 1
    %v903 = vrot.slane %v763, 1
    %v904 = vsel %vm395, %v902, %v903
    %v905 = vrot.slane %v764, 1
    %v906 = vrot.slane %v765, 1
    %v907 = vsel %vm395, %v905, %v906
    %v908 = vrot.slane %v766, 1
    %v909 = vrot.slane %v767, 1
    %v910 = vsel %vm395, %v908, %v909
    %v911 = vrot.slane %v768, 1
    %v912 = vrot.slane %v769, 1
    %v913 = vsel %vm395, %v911, %v912
    %v914 = vrot.slane %v770, 1
    %v915 = vrot.slane %v771, 1
    %v916 = vsel %vm395, %v914, %v915
    %v917 = vrot.slane %v772, 1
    %v918 = vrot.slane %v773, 1
    %v919 = vsel %vm395, %v917, %v918
    %v928 = vpack.c.bf16 %v901, %v898
    %v929 = vpack.c.bf16 %v907, %v904
    %v930 = vpack.c.bf16 %v913, %v910
    %v931 = vpack.c.bf16 %v919, %v916
    %s932 = scalar_lea.vmem [#allocation8], 256
    %v933 = vld [vmem:[%s932] sm:$0xf]
    %v934 = vld [vmem:[%s932 + $0x4] sm:$0xf]
    %v935 = vld [vmem:[%s932 + $0x8] sm:$0xf]
    %v936 = vld [vmem:[%s932 + $0xc] sm:$0xf]
    %v937 = vld [vmem:[%s932 + $0x10] sm:$0xf]
    %v938 = vld [vmem:[%s932 + $0x14] sm:$0xf]
    %v939 = vld [vmem:[%s932 + $0x18] sm:$0xf]
    %v940 = vld [vmem:[%s932 + $0x1c] sm:$0xf]
    %v941 = vld [vmem:[%s932 + $0x20] sm:$0xf]
    %v942 = vld [vmem:[%s932 + $0x24] sm:$0xf]
    %v943 = vld [vmem:[%s932 + $0x28] sm:$0xf]
    %v944 = vld [vmem:[%s932 + $0x2c] sm:$0xf]
    %v945 = vld [vmem:[%s932 + $0x30] sm:$0xf]
    %v946 = vld [vmem:[%s932 + $0x34] sm:$0xf]
    %v947 = vld [vmem:[%s932 + $0x38] sm:$0xf]
    %v948 = vld [vmem:[%s932 + $0x3c] sm:$0xf]
    %v965 = vunpack.c.l.b16 %v933
    %v966 = vunpack.c.l.b16 %v934
    %v967 = vunpack.c.l.b16 %v935
    %v968 = vunpack.c.l.b16 %v936
    %v969 = vunpack.c.l.b16 %v937
    %v970 = vunpack.c.l.b16 %v938
    %v971 = vunpack.c.l.b16 %v939
    %v972 = vunpack.c.l.b16 %v940
    %v973 = vunpack.c.l.b16 %v941
    %v974 = vunpack.c.l.b16 %v942
    %v975 = vunpack.c.l.b16 %v943
    %v976 = vunpack.c.l.b16 %v944
    %v977 = vunpack.c.l.b16 %v945
    %v978 = vunpack.c.l.b16 %v946
    %v979 = vunpack.c.l.b16 %v947
    %v980 = vunpack.c.l.b16 %v948
    %v981 = vpack.c.b16 %v966, %v965
    %v982 = vpack.c.b16 %v968, %v967
    %v983 = vpack.c.b16 %v970, %v969
    %v984 = vpack.c.b16 %v972, %v971
    %v985 = vpack.c.b16 %v974, %v973
    %v986 = vpack.c.b16 %v976, %v975
    %v987 = vpack.c.b16 %v978, %v977
    %v988 = vpack.c.b16 %v980, %v979
    %997 = vmatpush.bf16.msra.mxu0 %v988
    %998 = vmatpush.bf16.msra.mxu0 %v987
    %999 = vmatpush.bf16.msra.mxu0 %v986
    %1000 = vmatpush.bf16.msra.mxu0 %v985
    %1001 = vmatpush.bf16.msra.mxu0 %v984
    %1002 = vmatpush.bf16.msra.mxu0 %v983
    %1003 = vmatpush.bf16.msra.mxu0 %v982
    %1004 = vmatpush.bf16.msra.mxu0 %v981
    %1005 = vmatmul.bf16.gmra.mxu0 %v928
    %v1006 = vpop.f32.mrf.mxu0
    %v1007 = vadd.f32 0.0, %v1006
    %v1008 = vpop.f32.mrf.mxu0
    %v1009 = vadd.f32 0.0, %v1008
    %1010 = vmatmul.bf16.gmra.mxu0 %v929
    %v1011 = vpop.f32.mrf.mxu0
    %v1012 = vadd.f32 0.0, %v1011
    %v1013 = vpop.f32.mrf.mxu0
    %v1014 = vadd.f32 0.0, %v1013
    %1015 = vmatmul.bf16.gmra.mxu0 %v930
    %v1016 = vpop.f32.mrf.mxu0
    %v1017 = vadd.f32 0.0, %v1016
    %v1018 = vpop.f32.mrf.mxu0
    %v1019 = vadd.f32 0.0, %v1018
    %1020 = vmatmul.bf16.gmra.mxu0 %v931
    %v1021 = vpop.f32.mrf.mxu0
    %v1022 = vadd.f32 0.0, %v1021
    %v1023 = vpop.f32.mrf.mxu0
    %v1024 = vadd.f32 0.0, %v1023
    %1025 = vdwg.mxu0
    %v1026 = vadd.f32 %v872, %v1007
    %v1027 = vadd.f32 %v873, %v1009
    %v1028 = vadd.f32 %v874, %v1012
    %v1029 = vadd.f32 %v875, %v1014
    %v1030 = vadd.f32 %v876, %v1017
    %v1031 = vadd.f32 %v877, %v1019
    %v1032 = vadd.f32 %v878, %v1022
    %v1033 = vadd.f32 %v879, %v1024
    %v1034 = vrot.slane %v758, 2
    %v1035 = vrot.slane %v759, 2
    %v1036 = vsel %vm603, %v1034, %v1035
    %v1037 = vrot.slane %v760, 2
    %v1038 = vrot.slane %v761, 2
    %v1039 = vsel %vm603, %v1037, %v1038
    %v1040 = vrot.slane %v762, 2
    %v1041 = vrot.slane %v763, 2
    %v1042 = vsel %vm603, %v1040, %v1041
    %v1043 = vrot.slane %v764, 2
    %v1044 = vrot.slane %v765, 2
    %v1045 = vsel %vm603, %v1043, %v1044
    %v1046 = vrot.slane %v766, 2
    %v1047 = vrot.slane %v767, 2
    %v1048 = vsel %vm603, %v1046, %v1047
    %v1049 = vrot.slane %v768, 2
    %v1050 = vrot.slane %v769, 2
    %v1051 = vsel %vm603, %v1049, %v1050
    %v1052 = vrot.slane %v770, 2
    %v1053 = vrot.slane %v771, 2
    %v1054 = vsel %vm603, %v1052, %v1053
    %v1055 = vrot.slane %v772, 2
    %v1056 = vrot.slane %v773, 2
    %v1057 = vsel %vm603, %v1055, %v1056
    %v1066 = vpack.c.bf16 %v1039, %v1036
    %v1067 = vpack.c.bf16 %v1045, %v1042
    %v1068 = vpack.c.bf16 %v1051, %v1048
    %v1069 = vpack.c.bf16 %v1057, %v1054
    %s1070 = scalar_lea.vmem [#allocation8], 320
    %v1071 = vld [vmem:[%s1070] sm:$0xf]
    %v1072 = vld [vmem:[%s1070 + $0x4] sm:$0xf]
    %v1073 = vld [vmem:[%s1070 + $0x8] sm:$0xf]
    %v1074 = vld [vmem:[%s1070 + $0xc] sm:$0xf]
    %v1075 = vld [vmem:[%s1070 + $0x10] sm:$0xf]
    %v1076 = vld [vmem:[%s1070 + $0x14] sm:$0xf]
    %v1077 = vld [vmem:[%s1070 + $0x18] sm:$0xf]
    %v1078 = vld [vmem:[%s1070 + $0x1c] sm:$0xf]
    %v1079 = vld [vmem:[%s1070 + $0x20] sm:$0xf]
    %v1080 = vld [vmem:[%s1070 + $0x24] sm:$0xf]
    %v1081 = vld [vmem:[%s1070 + $0x28] sm:$0xf]
    %v1082 = vld [vmem:[%s1070 + $0x2c] sm:$0xf]
    %v1083 = vld [vmem:[%s1070 + $0x30] sm:$0xf]
    %v1084 = vld [vmem:[%s1070 + $0x34] sm:$0xf]
    %v1085 = vld [vmem:[%s1070 + $0x38] sm:$0xf]
    %v1086 = vld [vmem:[%s1070 + $0x3c] sm:$0xf]
    %v1103 = vunpack.c.l.b16 %v1071
    %v1104 = vunpack.c.l.b16 %v1072
    %v1105 = vunpack.c.l.b16 %v1073
    %v1106 = vunpack.c.l.b16 %v1074
    %v1107 = vunpack.c.l.b16 %v1075
    %v1108 = vunpack.c.l.b16 %v1076
    %v1109 = vunpack.c.l.b16 %v1077
    %v1110 = vunpack.c.l.b16 %v1078
    %v1111 = vunpack.c.l.b16 %v1079
    %v1112 = vunpack.c.l.b16 %v1080
    %v1113 = vunpack.c.l.b16 %v1081
    %v1114 = vunpack.c.l.b16 %v1082
    %v1115 = vunpack.c.l.b16 %v1083
    %v1116 = vunpack.c.l.b16 %v1084
    %v1117 = vunpack.c.l.b16 %v1085
    %v1118 = vunpack.c.l.b16 %v1086
    %v1119 = vpack.c.b16 %v1104, %v1103
    %v1120 = vpack.c.b16 %v1106, %v1105
    %v1121 = vpack.c.b16 %v1108, %v1107
    %v1122 = vpack.c.b16 %v1110, %v1109
    %v1123 = vpack.c.b16 %v1112, %v1111
    %v1124 = vpack.c.b16 %v1114, %v1113
    %v1125 = vpack.c.b16 %v1116, %v1115
    %v1126 = vpack.c.b16 %v1118, %v1117
    %1135 = vmatpush.bf16.msra.mxu0 %v1126
    %1136 = vmatpush.bf16.msra.mxu0 %v1125
    %1137 = vmatpush.bf16.msra.mxu0 %v1124
    %1138 = vmatpush.bf16.msra.mxu0 %v1123
    %1139 = vmatpush.bf16.msra.mxu0 %v1122
    %1140 = vmatpush.bf16.msra.mxu0 %v1121
    %1141 = vmatpush.bf16.msra.mxu0 %v1120
    %1142 = vmatpush.bf16.msra.mxu0 %v1119
    %1143 = vmatmul.bf16.gmra.mxu0 %v1066
    %v1144 = vpop.f32.mrf.mxu0
    %v1145 = vadd.f32 0.0, %v1144
    %v1146 = vpop.f32.mrf.mxu0
    %v1147 = vadd.f32 0.0, %v1146
    %1148 = vmatmul.bf16.gmra.mxu0 %v1067
    %v1149 = vpop.f32.mrf.mxu0
    %v1150 = vadd.f32 0.0, %v1149
    %v1151 = vpop.f32.mrf.mxu0
    %v1152 = vadd.f32 0.0, %v1151
    %1153 = vmatmul.bf16.gmra.mxu0 %v1068
    %v1154 = vpop.f32.mrf.mxu0
    %v1155 = vadd.f32 0.0, %v1154
    %v1156 = vpop.f32.mrf.mxu0
    %v1157 = vadd.f32 0.0, %v1156
    %1158 = vmatmul.bf16.gmra.mxu0 %v1069
    %v1159 = vpop.f32.mrf.mxu0
    %v1160 = vadd.f32 0.0, %v1159
    %v1161 = vpop.f32.mrf.mxu0
    %v1162 = vadd.f32 0.0, %v1161
    %1163 = vdwg.mxu0
    %v1164 = vadd.f32 %v1026, %v1145
    %v1165 = vadd.f32 %v1027, %v1147
    %v1166 = vadd.f32 %v1028, %v1150
    %v1167 = vadd.f32 %v1029, %v1152
    %v1168 = vadd.f32 %v1030, %v1155
    %v1169 = vadd.f32 %v1031, %v1157
    %v1170 = vadd.f32 %v1032, %v1160
    %v1171 = vadd.f32 %v1033, %v1162
    %s1172 = scalar_lea.vmem [#allocation2], 16
    %v1173 = vld [vmem:[%s1172] sm:$0xf]
    %v1174 = vld [vmem:[%s1172 + $0x4] sm:$0x1]
    %v1175 = vld [vmem:[%s1172 + $0x8] sm:$0xf]
    %v1176 = vld [vmem:[%s1172 + $0xc] sm:$0x1]
    %v1177 = vld [vmem:[%s1172 + $0x10] sm:$0xf]
    %v1178 = vld [vmem:[%s1172 + $0x14] sm:$0x1]
    %v1179 = vld [vmem:[%s1172 + $0x18] sm:$0xf]
    %v1180 = vld [vmem:[%s1172 + $0x1c] sm:$0x1]
    %v1181 = vld [vmem:[%s1172 + $0x20] sm:$0xf]
    %v1182 = vld [vmem:[%s1172 + $0x24] sm:$0x1]
    %v1183 = vld [vmem:[%s1172 + $0x28] sm:$0xf]
    %v1184 = vld [vmem:[%s1172 + $0x2c] sm:$0x1]
    %v1185 = vld [vmem:[%s1172 + $0x30] sm:$0xf]
    %v1186 = vld [vmem:[%s1172 + $0x34] sm:$0x1]
    %v1187 = vld [vmem:[%s1172 + $0x38] sm:$0xf]
    %v1188 = vld [vmem:[%s1172 + $0x3c] sm:$0x1]
    %v1189 = vunpack.c.l.bf16 %v1173
    %v1190 = vunpack.c.l.bf16 %v1174
    %v1191 = vunpack.c.l.bf16 %v1175
    %v1192 = vunpack.c.l.bf16 %v1176
    %v1193 = vunpack.c.l.bf16 %v1177
    %v1194 = vunpack.c.l.bf16 %v1178
    %v1195 = vunpack.c.l.bf16 %v1179
    %v1196 = vunpack.c.l.bf16 %v1180
    %v1197 = vunpack.c.l.bf16 %v1181
    %v1198 = vunpack.c.l.bf16 %v1182
    %v1199 = vunpack.c.l.bf16 %v1183
    %v1200 = vunpack.c.l.bf16 %v1184
    %v1201 = vunpack.c.l.bf16 %v1185
    %v1202 = vunpack.c.l.bf16 %v1186
    %v1203 = vunpack.c.l.bf16 %v1187
    %v1204 = vunpack.c.l.bf16 %v1188
    %v1205 = vpack.c.bf16 %v1191, %v1189
    %v1206 = vpack.c.bf16 %v1195, %v1193
    %v1207 = vpack.c.bf16 %v1199, %v1197
    %v1208 = vpack.c.bf16 %v1203, %v1201
    %s1209 = scalar_lea.vmem [#allocation8], 384
    %v1210 = vld [vmem:[%s1209] sm:$0xf]
    %v1211 = vld [vmem:[%s1209 + $0x4] sm:$0xf]
    %v1212 = vld [vmem:[%s1209 + $0x8] sm:$0xf]
    %v1213 = vld [vmem:[%s1209 + $0xc] sm:$0xf]
    %v1214 = vld [vmem:[%s1209 + $0x10] sm:$0xf]
    %v1215 = vld [vmem:[%s1209 + $0x14] sm:$0xf]
    %v1216 = vld [vmem:[%s1209 + $0x18] sm:$0xf]
    %v1217 = vld [vmem:[%s1209 + $0x1c] sm:$0xf]
    %v1218 = vld [vmem:[%s1209 + $0x20] sm:$0xf]
    %v1219 = vld [vmem:[%s1209 + $0x24] sm:$0xf]
    %v1220 = vld [vmem:[%s1209 + $0x28] sm:$0xf]
    %v1221 = vld [vmem:[%s1209 + $0x2c] sm:$0xf]
    %v1222 = vld [vmem:[%s1209 + $0x30] sm:$0xf]
    %v1223 = vld [vmem:[%s1209 + $0x34] sm:$0xf]
    %v1224 = vld [vmem:[%s1209 + $0x38] sm:$0xf]
    %v1225 = vld [vmem:[%s1209 + $0x3c] sm:$0xf]
    %v1242 = vunpack.c.l.b16 %v1210
    %v1243 = vunpack.c.l.b16 %v1211
    %v1244 = vunpack.c.l.b16 %v1212
    %v1245 = vunpack.c.l.b16 %v1213
    %v1246 = vunpack.c.l.b16 %v1214
    %v1247 = vunpack.c.l.b16 %v1215
    %v1248 = vunpack.c.l.b16 %v1216
    %v1249 = vunpack.c.l.b16 %v1217
    %v1250 = vunpack.c.l.b16 %v1218
    %v1251 = vunpack.c.l.b16 %v1219
    %v1252 = vunpack.c.l.b16 %v1220
    %v1253 = vunpack.c.l.b16 %v1221
    %v1254 = vunpack.c.l.b16 %v1222
    %v1255 = vunpack.c.l.b16 %v1223
    %v1256 = vunpack.c.l.b16 %v1224
    %v1257 = vunpack.c.l.b16 %v1225
    %v1258 = vpack.c.b16 %v1243, %v1242
    %v1259 = vpack.c.b16 %v1245, %v1244
    %v1260 = vpack.c.b16 %v1247, %v1246
    %v1261 = vpack.c.b16 %v1249, %v1248
    %v1262 = vpack.c.b16 %v1251, %v1250
    %v1263 = vpack.c.b16 %v1253, %v1252
    %v1264 = vpack.c.b16 %v1255, %v1254
    %v1265 = vpack.c.b16 %v1257, %v1256
    %1274 = vmatpush.bf16.msra.mxu0 %v1265
    %1275 = vmatpush.bf16.msra.mxu0 %v1264
    %1276 = vmatpush.bf16.msra.mxu0 %v1263
    %1277 = vmatpush.bf16.msra.mxu0 %v1262
    %1278 = vmatpush.bf16.msra.mxu0 %v1261
    %1279 = vmatpush.bf16.msra.mxu0 %v1260
    %1280 = vmatpush.bf16.msra.mxu0 %v1259
    %1281 = vmatpush.bf16.msra.mxu0 %v1258
    %1282 = vmatmul.bf16.gmra.mxu0 %v1205
    %v1283 = vpop.f32.mrf.mxu0
    %v1284 = vadd.f32 0.0, %v1283
    %v1285 = vpop.f32.mrf.mxu0
    %v1286 = vadd.f32 0.0, %v1285
    %1287 = vmatmul.bf16.gmra.mxu0 %v1206
    %v1288 = vpop.f32.mrf.mxu0
    %v1289 = vadd.f32 0.0, %v1288
    %v1290 = vpop.f32.mrf.mxu0
    %v1291 = vadd.f32 0.0, %v1290
    %1292 = vmatmul.bf16.gmra.mxu0 %v1207
    %v1293 = vpop.f32.mrf.mxu0
    %v1294 = vadd.f32 0.0, %v1293
    %v1295 = vpop.f32.mrf.mxu0
    %v1296 = vadd.f32 0.0, %v1295
    %1297 = vmatmul.bf16.gmra.mxu0 %v1208
    %v1298 = vpop.f32.mrf.mxu0
    %v1299 = vadd.f32 0.0, %v1298
    %v1300 = vpop.f32.mrf.mxu0
    %v1301 = vadd.f32 0.0, %v1300
    %1302 = vdwg.mxu0
    %v1303 = vadd.f32 %v1164, %v1284
    %v1304 = vadd.f32 %v1165, %v1286
    %v1305 = vadd.f32 %v1166, %v1289
    %v1306 = vadd.f32 %v1167, %v1291
    %v1307 = vadd.f32 %v1168, %v1294
    %v1308 = vadd.f32 %v1169, %v1296
    %v1309 = vadd.f32 %v1170, %v1299
    %v1310 = vadd.f32 %v1171, %v1301
    %v1327 = vrot.slane %v1189, 1
    %v1328 = vrot.slane %v1190, 1
    %v1329 = vsel %vm395, %v1327, %v1328
    %v1330 = vrot.slane %v1191, 1
    %v1331 = vrot.slane %v1192, 1
    %v1332 = vsel %vm395, %v1330, %v1331
    %v1333 = vrot.slane %v1193, 1
    %v1334 = vrot.slane %v1194, 1
    %v1335 = vsel %vm395, %v1333, %v1334
    %v1336 = vrot.slane %v1195, 1
    %v1337 = vrot.slane %v1196, 1
    %v1338 = vsel %vm395, %v1336, %v1337
    %v1339 = vrot.slane %v1197, 1
    %v1340 = vrot.slane %v1198, 1
    %v1341 = vsel %vm395, %v1339, %v1340
    %v1342 = vrot.slane %v1199, 1
    %v1343 = vrot.slane %v1200, 1
    %v1344 = vsel %vm395, %v1342, %v1343
    %v1345 = vrot.slane %v1201, 1
    %v1346 = vrot.slane %v1202, 1
    %v1347 = vsel %vm395, %v1345, %v1346
    %v1348 = vrot.slane %v1203, 1
    %v1349 = vrot.slane %v1204, 1
    %v1350 = vsel %vm395, %v1348, %v1349
    %v1359 = vpack.c.bf16 %v1332, %v1329
    %v1360 = vpack.c.bf16 %v1338, %v1335
    %v1361 = vpack.c.bf16 %v1344, %v1341
    %v1362 = vpack.c.bf16 %v1350, %v1347
    %s1363 = scalar_lea.vmem [#allocation8], 448
    %v1364 = vld [vmem:[%s1363] sm:$0xf]
    %v1365 = vld [vmem:[%s1363 + $0x4] sm:$0xf]
    %v1366 = vld [vmem:[%s1363 + $0x8] sm:$0xf]
    %v1367 = vld [vmem:[%s1363 + $0xc] sm:$0xf]
    %v1368 = vld [vmem:[%s1363 + $0x10] sm:$0xf]
    %v1369 = vld [vmem:[%s1363 + $0x14] sm:$0xf]
    %v1370 = vld [vmem:[%s1363 + $0x18] sm:$0xf]
    %v1371 = vld [vmem:[%s1363 + $0x1c] sm:$0xf]
    %v1372 = vld [vmem:[%s1363 + $0x20] sm:$0xf]
    %v1373 = vld [vmem:[%s1363 + $0x24] sm:$0xf]
    %v1374 = vld [vmem:[%s1363 + $0x28] sm:$0xf]
    %v1375 = vld [vmem:[%s1363 + $0x2c] sm:$0xf]
    %v1376 = vld [vmem:[%s1363 + $0x30] sm:$0xf]
    %v1377 = vld [vmem:[%s1363 + $0x34] sm:$0xf]
    %v1378 = vld [vmem:[%s1363 + $0x38] sm:$0xf]
    %v1379 = vld [vmem:[%s1363 + $0x3c] sm:$0xf]
    %v1396 = vunpack.c.l.b16 %v1364
    %v1397 = vunpack.c.l.b16 %v1365
    %v1398 = vunpack.c.l.b16 %v1366
    %v1399 = vunpack.c.l.b16 %v1367
    %v1400 = vunpack.c.l.b16 %v1368
    %v1401 = vunpack.c.l.b16 %v1369
    %v1402 = vunpack.c.l.b16 %v1370
    %v1403 = vunpack.c.l.b16 %v1371
    %v1404 = vunpack.c.l.b16 %v1372
    %v1405 = vunpack.c.l.b16 %v1373
    %v1406 = vunpack.c.l.b16 %v1374
    %v1407 = vunpack.c.l.b16 %v1375
    %v1408 = vunpack.c.l.b16 %v1376
    %v1409 = vunpack.c.l.b16 %v1377
    %v1410 = vunpack.c.l.b16 %v1378
    %v1411 = vunpack.c.l.b16 %v1379
    %v1412 = vpack.c.b16 %v1397, %v1396
    %v1413 = vpack.c.b16 %v1399, %v1398
    %v1414 = vpack.c.b16 %v1401, %v1400
    %v1415 = vpack.c.b16 %v1403, %v1402
    %v1416 = vpack.c.b16 %v1405, %v1404
    %v1417 = vpack.c.b16 %v1407, %v1406
    %v1418 = vpack.c.b16 %v1409, %v1408
    %v1419 = vpack.c.b16 %v1411, %v1410
    %1428 = vmatpush.bf16.msra.mxu0 %v1419
    %1429 = vmatpush.bf16.msra.mxu0 %v1418
    %1430 = vmatpush.bf16.msra.mxu0 %v1417
    %1431 = vmatpush.bf16.msra.mxu0 %v1416
    %1432 = vmatpush.bf16.msra.mxu0 %v1415
    %1433 = vmatpush.bf16.msra.mxu0 %v1414
    %1434 = vmatpush.bf16.msra.mxu0 %v1413
    %1435 = vmatpush.bf16.msra.mxu0 %v1412
    %1436 = vmatmul.bf16.gmra.mxu0 %v1359
    %v1437 = vpop.f32.mrf.mxu0
    %v1438 = vadd.f32 0.0, %v1437
    %v1439 = vpop.f32.mrf.mxu0
    %v1440 = vadd.f32 0.0, %v1439
    %1441 = vmatmul.bf16.gmra.mxu0 %v1360
    %v1442 = vpop.f32.mrf.mxu0
    %v1443 = vadd.f32 0.0, %v1442
    %v1444 = vpop.f32.mrf.mxu0
    %v1445 = vadd.f32 0.0, %v1444
    %1446 = vmatmul.bf16.gmra.mxu0 %v1361
    %v1447 = vpop.f32.mrf.mxu0
    %v1448 = vadd.f32 0.0, %v1447
    %v1449 = vpop.f32.mrf.mxu0
    %v1450 = vadd.f32 0.0, %v1449
    %1451 = vmatmul.bf16.gmra.mxu0 %v1362
    %v1452 = vpop.f32.mrf.mxu0
    %v1453 = vadd.f32 0.0, %v1452
    %v1454 = vpop.f32.mrf.mxu0
    %v1455 = vadd.f32 0.0, %v1454
    %1456 = vdwg.mxu0
    %v1457 = vadd.f32 %v1303, %v1438
    %v1458 = vadd.f32 %v1304, %v1440
    %v1459 = vadd.f32 %v1305, %v1443
    %v1460 = vadd.f32 %v1306, %v1445
    %v1461 = vadd.f32 %v1307, %v1448
    %v1462 = vadd.f32 %v1308, %v1450
    %v1463 = vadd.f32 %v1309, %v1453
    %v1464 = vadd.f32 %v1310, %v1455
    %v1465 = vrot.slane %v1189, 2
    %v1466 = vrot.slane %v1190, 2
    %v1467 = vsel %vm603, %v1465, %v1466
    %v1468 = vrot.slane %v1191, 2
    %v1469 = vrot.slane %v1192, 2
    %v1470 = vsel %vm603, %v1468, %v1469
    %v1471 = vrot.slane %v1193, 2
    %v1472 = vrot.slane %v1194, 2
    %v1473 = vsel %vm603, %v1471, %v1472
    %v1474 = vrot.slane %v1195, 2
    %v1475 = vrot.slane %v1196, 2
    %v1476 = vsel %vm603, %v1474, %v1475
    %v1477 = vrot.slane %v1197, 2
    %v1478 = vrot.slane %v1198, 2
    %v1479 = vsel %vm603, %v1477, %v1478
    %v1480 = vrot.slane %v1199, 2
    %v1481 = vrot.slane %v1200, 2
    %v1482 = vsel %vm603, %v1480, %v1481
    %v1483 = vrot.slane %v1201, 2
    %v1484 = vrot.slane %v1202, 2
    %v1485 = vsel %vm603, %v1483, %v1484
    %v1486 = vrot.slane %v1203, 2
    %v1487 = vrot.slane %v1204, 2
    %v1488 = vsel %vm603, %v1486, %v1487
    %v1497 = vpack.c.bf16 %v1470, %v1467
    %v1498 = vpack.c.bf16 %v1476, %v1473
    %v1499 = vpack.c.bf16 %v1482, %v1479
    %v1500 = vpack.c.bf16 %v1488, %v1485
    %s1501 = scalar_lea.vmem [#allocation8], 512
    %v1502 = vld [vmem:[%s1501] sm:$0xf]
    %v1503 = vld [vmem:[%s1501 + $0x4] sm:$0xf]
    %v1504 = vld [vmem:[%s1501 + $0x8] sm:$0xf]
    %v1505 = vld [vmem:[%s1501 + $0xc] sm:$0xf]
    %v1506 = vld [vmem:[%s1501 + $0x10] sm:$0xf]
    %v1507 = vld [vmem:[%s1501 + $0x14] sm:$0xf]
    %v1508 = vld [vmem:[%s1501 + $0x18] sm:$0xf]
    %v1509 = vld [vmem:[%s1501 + $0x1c] sm:$0xf]
    %v1510 = vld [vmem:[%s1501 + $0x20] sm:$0xf]
    %v1511 = vld [vmem:[%s1501 + $0x24] sm:$0xf]
    %v1512 = vld [vmem:[%s1501 + $0x28] sm:$0xf]
    %v1513 = vld [vmem:[%s1501 + $0x2c] sm:$0xf]
    %v1514 = vld [vmem:[%s1501 + $0x30] sm:$0xf]
    %v1515 = vld [vmem:[%s1501 + $0x34] sm:$0xf]
    %v1516 = vld [vmem:[%s1501 + $0x38] sm:$0xf]
    %v1517 = vld [vmem:[%s1501 + $0x3c] sm:$0xf]
    %v1534 = vunpack.c.l.b16 %v1502
    %v1535 = vunpack.c.l.b16 %v1503
    %v1536 = vunpack.c.l.b16 %v1504
    %v1537 = vunpack.c.l.b16 %v1505
    %v1538 = vunpack.c.l.b16 %v1506
    %v1539 = vunpack.c.l.b16 %v1507
    %v1540 = vunpack.c.l.b16 %v1508
    %v1541 = vunpack.c.l.b16 %v1509
    %v1542 = vunpack.c.l.b16 %v1510
    %v1543 = vunpack.c.l.b16 %v1511
    %v1544 = vunpack.c.l.b16 %v1512
    %v1545 = vunpack.c.l.b16 %v1513
    %v1546 = vunpack.c.l.b16 %v1514
    %v1547 = vunpack.c.l.b16 %v1515
    %v1548 = vunpack.c.l.b16 %v1516
    %v1549 = vunpack.c.l.b16 %v1517
    %v1550 = vpack.c.b16 %v1535, %v1534
    %v1551 = vpack.c.b16 %v1537, %v1536
    %v1552 = vpack.c.b16 %v1539, %v1538
    %v1553 = vpack.c.b16 %v1541, %v1540
    %v1554 = vpack.c.b16 %v1543, %v1542
    %v1555 = vpack.c.b16 %v1545, %v1544
    %v1556 = vpack.c.b16 %v1547, %v1546
    %v1557 = vpack.c.b16 %v1549, %v1548
    %1566 = vmatpush.bf16.msra.mxu0 %v1557
    %1567 = vmatpush.bf16.msra.mxu0 %v1556
    %1568 = vmatpush.bf16.msra.mxu0 %v1555
    %1569 = vmatpush.bf16.msra.mxu0 %v1554
    %1570 = vmatpush.bf16.msra.mxu0 %v1553
    %1571 = vmatpush.bf16.msra.mxu0 %v1552
    %1572 = vmatpush.bf16.msra.mxu0 %v1551
    %1573 = vmatpush.bf16.msra.mxu0 %v1550
    %1574 = vmatmul.bf16.gmra.mxu0 %v1497
    %v1575 = vpop.f32.mrf.mxu0
    %v1576 = vadd.f32 0.0, %v1575
    %v1577 = vpop.f32.mrf.mxu0
    %v1578 = vadd.f32 0.0, %v1577
    %1579 = vmatmul.bf16.gmra.mxu0 %v1498
    %v1580 = vpop.f32.mrf.mxu0
    %v1581 = vadd.f32 0.0, %v1580
    %v1582 = vpop.f32.mrf.mxu0
    %v1583 = vadd.f32 0.0, %v1582
    %1584 = vmatmul.bf16.gmra.mxu0 %v1499
    %v1585 = vpop.f32.mrf.mxu0
    %v1586 = vadd.f32 0.0, %v1585
    %v1587 = vpop.f32.mrf.mxu0
    %v1588 = vadd.f32 0.0, %v1587
    %1589 = vmatmul.bf16.gmra.mxu0 %v1500
    %v1590 = vpop.f32.mrf.mxu0
    %v1591 = vadd.f32 0.0, %v1590
    %v1592 = vpop.f32.mrf.mxu0
    %v1593 = vadd.f32 0.0, %v1592
    %1594 = vdwg.mxu0
    %v1595 = vadd.f32 %v1457, %v1576
    %v1596 = vadd.f32 %v1458, %v1578
    %v1597 = vadd.f32 %v1459, %v1581
    %v1598 = vadd.f32 %v1460, %v1583
    %v1599 = vadd.f32 %v1461, %v1586
    %v1600 = vadd.f32 %v1462, %v1588
    %v1601 = vadd.f32 %v1463, %v1591
    %v1602 = vadd.f32 %v1464, %v1593
    %v1603 = vld [vmem:[%s4] sm:$0x1]
    %v1605 = vperm.slane %v1603, 0
    %v1607 = vadd.f32 %v1595, %v1605
    %v1608 = vadd.f32 %v1596, %v1605
    %v1609 = vadd.f32 %v1597, %v1605
    %v1610 = vadd.f32 %v1598, %v1605
    %v1611 = vadd.f32 %v1599, %v1605
    %v1612 = vadd.f32 %v1600, %v1605
    %v1613 = vadd.f32 %v1601, %v1605
    %v1614 = vadd.f32 %v1602, %v1605
    %v1615 = vmax.f32 %v1607, 0.0
    %v1616 = vmax.f32 %v1608, 0.0
    %v1617 = vmax.f32 %v1609, 0.0
    %v1618 = vmax.f32 %v1610, 0.0
    %v1619 = vmax.f32 %v1611, 0.0
    %v1620 = vmax.f32 %v1612, 0.0
    %v1621 = vmax.f32 %v1613, 0.0
    %v1622 = vmax.f32 %v1614, 0.0
    %v1623 = vpack.c.bf16 %v1615, %v1615
    %v1624 = vpack.c.bf16 %v1616, %v1616
    %v1625 = vpack.c.bf16 %v1617, %v1617
    %v1626 = vpack.c.bf16 %v1618, %v1618
    %v1627 = vpack.c.bf16 %v1619, %v1619
    %v1628 = vpack.c.bf16 %v1620, %v1620
    %v1629 = vpack.c.bf16 %v1621, %v1621
    %v1630 = vpack.c.bf16 %v1622, %v1622
    %v1639 = vrot.slane %v240, 7
    %v1640 = vrot.slane %v241, 7
    %v1641 = vrot.slane %v242, 7
    %v1642 = vrot.slane %v243, 7
    %v1643 = vrot.slane %v244, 7
    %v1644 = vrot.slane %v245, 7
    %v1645 = vrot.slane %v246, 7
    %v1646 = vrot.slane %v247, 7
    %v1655 = vsel %vm272, 0.0, %v1639
    %v1656 = vsel %vm272, 0.0, %v1640
    %v1657 = vsel %vm272, 0.0, %v1641
    %v1658 = vsel %vm272, 0.0, %v1642
    %v1659 = vsel %vm272, 0.0, %v1643
    %v1660 = vsel %vm272, 0.0, %v1644
    %v1661 = vsel %vm272, 0.0, %v1645
    %v1662 = vsel %vm272, 0.0, %v1646
    %v1663 = vsel %vm272, %v1639, 0.0
    %v1664 = vsel %vm272, %v1640, 0.0
    %v1665 = vsel %vm272, %v1641, 0.0
    %v1666 = vsel %vm272, %v1642, 0.0
    %v1667 = vsel %vm272, %v1643, 0.0
    %v1668 = vsel %vm272, %v1644, 0.0
    %v1669 = vsel %vm272, %v1645, 0.0
    %v1670 = vsel %vm272, %v1646, 0.0
    %s1671 = scalar_lea.vmem [#allocation2], 80
    %1672 = vst [vmem:[%s1671] sm:$0xf] 0
    %1673 = vst [vmem:[%s1671 + $0x4] sm:$0x1] 0
    %s1674 = scalar_lea.vmem [#allocation2], 152
    %1675 = vst [vmem:[%s1674] sm:$0xf] 0
    %1676 = vst [vmem:[%s1674 + $0x4] sm:$0x1] 0
    %v1677 = vpack.c.bf16 %v1655, %v1655
    %v1678 = vpack.c.bf16 %v1663, %v1663
    %v1679 = vpack.c.bf16 %v1656, %v1656
    %v1680 = vpack.c.bf16 %v1664, %v1664
    %v1681 = vpack.c.bf16 %v1657, %v1657
    %v1682 = vpack.c.bf16 %v1665, %v1665
    %v1683 = vpack.c.bf16 %v1658, %v1658
    %v1684 = vpack.c.bf16 %v1666, %v1666
    %v1685 = vpack.c.bf16 %v1659, %v1659
    %v1686 = vpack.c.bf16 %v1667, %v1667
    %v1687 = vpack.c.bf16 %v1660, %v1660
    %v1688 = vpack.c.bf16 %v1668, %v1668
    %v1689 = vpack.c.bf16 %v1661, %v1661
    %v1690 = vpack.c.bf16 %v1669, %v1669
    %v1691 = vpack.c.bf16 %v1662, %v1662
    %v1692 = vpack.c.bf16 %v1670, %v1670
    %s1693 = scalar_lea.vmem [#allocation2], 88
    %1694 = vst [vmem:[%s1693] sm:$0xf] %v1677
    %1695 = vst [vmem:[%s1693 + $0x4] sm:$0x1] %v1678
    %1696 = vst [vmem:[%s1693 + $0x8] sm:$0xf] %v1679
    %1697 = vst [vmem:[%s1693 + $0xc] sm:$0x1] %v1680
    %1698 = vst [vmem:[%s1693 + $0x10] sm:$0xf] %v1681
    %1699 = vst [vmem:[%s1693 + $0x14] sm:$0x1] %v1682
    %1700 = vst [vmem:[%s1693 + $0x18] sm:$0xf] %v1683
    %1701 = vst [vmem:[%s1693 + $0x1c] sm:$0x1] %v1684
    %1702 = vst [vmem:[%s1693 + $0x20] sm:$0xf] %v1685
    %1703 = vst [vmem:[%s1693 + $0x24] sm:$0x1] %v1686
    %1704 = vst [vmem:[%s1693 + $0x28] sm:$0xf] %v1687
    %1705 = vst [vmem:[%s1693 + $0x2c] sm:$0x1] %v1688
    %1706 = vst [vmem:[%s1693 + $0x30] sm:$0xf] %v1689
    %1707 = vst [vmem:[%s1693 + $0x34] sm:$0x1] %v1690
    %1708 = vst [vmem:[%s1693 + $0x38] sm:$0xf] %v1691
    %1709 = vst [vmem:[%s1693 + $0x3c] sm:$0x1] %v1692
    %v1710 = vld [vmem:[%s1671] sm:$0xf]
    %v1711 = vld [vmem:[%s1671 + $0x4] sm:$0x1]
    %v1712 = vld [vmem:[%s1671 + $0x8] sm:$0xf]
    %v1713 = vld [vmem:[%s1671 + $0xc] sm:$0x1]
    %v1714 = vld [vmem:[%s1671 + $0x10] sm:$0xf]
    %v1715 = vld [vmem:[%s1671 + $0x14] sm:$0x1]
    %v1716 = vld [vmem:[%s1671 + $0x18] sm:$0xf]
    %v1717 = vld [vmem:[%s1671 + $0x1c] sm:$0x1]
    %v1718 = vld [vmem:[%s1671 + $0x20] sm:$0xf]
    %v1719 = vld [vmem:[%s1671 + $0x24] sm:$0x1]
    %v1720 = vld [vmem:[%s1671 + $0x28] sm:$0xf]
    %v1721 = vld [vmem:[%s1671 + $0x2c] sm:$0x1]
    %v1722 = vld [vmem:[%s1671 + $0x30] sm:$0xf]
    %v1723 = vld [vmem:[%s1671 + $0x34] sm:$0x1]
    %v1724 = vld [vmem:[%s1671 + $0x38] sm:$0xf]
    %v1725 = vld [vmem:[%s1671 + $0x3c] sm:$0x1]
    %v1726 = vunpack.c.l.bf16 %v1710
    %v1727 = vunpack.c.l.bf16 %v1711
    %v1728 = vunpack.c.l.bf16 %v1712
    %v1729 = vunpack.c.l.bf16 %v1713
    %v1730 = vunpack.c.l.bf16 %v1714
    %v1731 = vunpack.c.l.bf16 %v1715
    %v1732 = vunpack.c.l.bf16 %v1716
    %v1733 = vunpack.c.l.bf16 %v1717
    %v1734 = vunpack.c.l.bf16 %v1718
    %v1735 = vunpack.c.l.bf16 %v1719
    %v1736 = vunpack.c.l.bf16 %v1720
    %v1737 = vunpack.c.l.bf16 %v1721
    %v1738 = vunpack.c.l.bf16 %v1722
    %v1739 = vunpack.c.l.bf16 %v1723
    %v1740 = vunpack.c.l.bf16 %v1724
    %v1741 = vunpack.c.l.bf16 %v1725
    %v1742 = vpack.c.bf16 %v1728, %v1726
    %v1743 = vpack.c.bf16 %v1732, %v1730
    %v1744 = vpack.c.bf16 %v1736, %v1734
    %v1745 = vpack.c.bf16 %v1740, %v1738
    %v1746 = vld [vmem:[#allocation8] sm:$0xf]
    %v1747 = vld [vmem:[#allocation8 + $0x4] sm:$0xf]
    %v1748 = vld [vmem:[#allocation8 + $0x8] sm:$0xf]
    %v1749 = vld [vmem:[#allocation8 + $0xc] sm:$0xf]
    %v1750 = vld [vmem:[#allocation8 + $0x10] sm:$0xf]
    %v1751 = vld [vmem:[#allocation8 + $0x14] sm:$0xf]
    %v1752 = vld [vmem:[#allocation8 + $0x18] sm:$0xf]
    %v1753 = vld [vmem:[#allocation8 + $0x1c] sm:$0xf]
    %v1754 = vld [vmem:[#allocation8 + $0x20] sm:$0xf]
    %v1755 = vld [vmem:[#allocation8 + $0x24] sm:$0xf]
    %v1756 = vld [vmem:[#allocation8 + $0x28] sm:$0xf]
    %v1757 = vld [vmem:[#allocation8 + $0x2c] sm:$0xf]
    %v1758 = vld [vmem:[#allocation8 + $0x30] sm:$0xf]
    %v1759 = vld [vmem:[#allocation8 + $0x34] sm:$0xf]
    %v1760 = vld [vmem:[#allocation8 + $0x38] sm:$0xf]
    %v1761 = vld [vmem:[#allocation8 + $0x3c] sm:$0xf]
    %v1778 = vrot.slane %v1726, 1
    %v1779 = vrot.slane %v1727, 1
    %v1780 = vsel %vm395, %v1778, %v1779
    %v1781 = vrot.slane %v1728, 1
    %v1782 = vrot.slane %v1729, 1
    %v1783 = vsel %vm395, %v1781, %v1782
    %v1784 = vrot.slane %v1730, 1
    %v1785 = vrot.slane %v1731, 1
    %v1786 = vsel %vm395, %v1784, %v1785
    %v1787 = vrot.slane %v1732, 1
    %v1788 = vrot.slane %v1733, 1
    %v1789 = vsel %vm395, %v1787, %v1788
    %v1790 = vrot.slane %v1734, 1
    %v1791 = vrot.slane %v1735, 1
    %v1792 = vsel %vm395, %v1790, %v1791
    %v1793 = vrot.slane %v1736, 1
    %v1794 = vrot.slane %v1737, 1
    %v1795 = vsel %vm395, %v1793, %v1794
    %v1796 = vrot.slane %v1738, 1
    %v1797 = vrot.slane %v1739, 1
    %v1798 = vsel %vm395, %v1796, %v1797
    %v1799 = vrot.slane %v1740, 1
    %v1800 = vrot.slane %v1741, 1
    %v1801 = vsel %vm395, %v1799, %v1800
    %v1810 = vpack.c.bf16 %v1783, %v1780
    %v1811 = vpack.c.bf16 %v1789, %v1786
    %v1812 = vpack.c.bf16 %v1795, %v1792
    %v1813 = vpack.c.bf16 %v1801, %v1798
    %v1814 = vld [vmem:[%s432] sm:$0xf]
    %v1815 = vld [vmem:[%s432 + $0x4] sm:$0xf]
    %v1816 = vld [vmem:[%s432 + $0x8] sm:$0xf]
    %v1817 = vld [vmem:[%s432 + $0xc] sm:$0xf]
    %v1818 = vld [vmem:[%s432 + $0x10] sm:$0xf]
    %v1819 = vld [vmem:[%s432 + $0x14] sm:$0xf]
    %v1820 = vld [vmem:[%s432 + $0x18] sm:$0xf]
    %v1821 = vld [vmem:[%s432 + $0x1c] sm:$0xf]
    %v1822 = vld [vmem:[%s432 + $0x20] sm:$0xf]
    %v1823 = vld [vmem:[%s432 + $0x24] sm:$0xf]
    %v1824 = vld [vmem:[%s432 + $0x28] sm:$0xf]
    %v1825 = vld [vmem:[%s432 + $0x2c] sm:$0xf]
    %v1826 = vld [vmem:[%s432 + $0x30] sm:$0xf]
    %v1827 = vld [vmem:[%s432 + $0x34] sm:$0xf]
    %v1828 = vld [vmem:[%s432 + $0x38] sm:$0xf]
    %v1829 = vld [vmem:[%s432 + $0x3c] sm:$0xf]
    %v1846 = vunpack.c.l.b16 %v1814
    %v1847 = vunpack.c.l.b16 %v1815
    %v1848 = vunpack.c.l.b16 %v1816
    %v1849 = vunpack.c.l.b16 %v1817
    %v1850 = vunpack.c.l.b16 %v1818
    %v1851 = vunpack.c.l.b16 %v1819
    %v1852 = vunpack.c.l.b16 %v1820
    %v1853 = vunpack.c.l.b16 %v1821
    %v1854 = vunpack.c.l.b16 %v1822
    %v1855 = vunpack.c.l.b16 %v1823
    %v1856 = vunpack.c.l.b16 %v1824
    %v1857 = vunpack.c.l.b16 %v1825
    %v1858 = vunpack.c.l.b16 %v1826
    %v1859 = vunpack.c.l.b16 %v1827
    %v1860 = vunpack.c.l.b16 %v1828
    %v1861 = vunpack.c.l.b16 %v1829
    %v1862 = vpack.c.b16 %v1847, %v1846
    %v1863 = vpack.c.b16 %v1849, %v1848
    %v1864 = vpack.c.b16 %v1851, %v1850
    %v1865 = vpack.c.b16 %v1853, %v1852
    %v1866 = vpack.c.b16 %v1855, %v1854
    %v1867 = vpack.c.b16 %v1857, %v1856
    %v1868 = vpack.c.b16 %v1859, %v1858
    %v1869 = vpack.c.b16 %v1861, %v1860
    %1878 = vmatpush.bf16.msra.mxu0 %v1869
    %1879 = vmatpush.bf16.msra.mxu0 %v1868
    %1880 = vmatpush.bf16.msra.mxu0 %v1867
    %1881 = vmatpush.bf16.msra.mxu0 %v1866
    %1882 = vmatpush.bf16.msra.mxu0 %v1865
    %1883 = vmatpush.bf16.msra.mxu0 %v1864
    %1884 = vmatpush.bf16.msra.mxu0 %v1863
    %1885 = vmatpush.bf16.msra.mxu0 %v1862
    %1886 = vmatmul.bf16.gmra.mxu0 %v1810
    %v1887 = vpop.f32.mrf.mxu0
    %v1888 = vadd.f32 0.0, %v1887
    %v1889 = vpop.f32.mrf.mxu0
    %v1890 = vadd.f32 0.0, %v1889
    %1891 = vmatmul.bf16.gmra.mxu0 %v1811
    %v1892 = vpop.f32.mrf.mxu0
    %v1893 = vadd.f32 0.0, %v1892
    %v1894 = vpop.f32.mrf.mxu0
    %v1895 = vadd.f32 0.0, %v1894
    %1896 = vmatmul.bf16.gmra.mxu0 %v1812
    %v1897 = vpop.f32.mrf.mxu0
    %v1898 = vadd.f32 0.0, %v1897
    %v1899 = vpop.f32.mrf.mxu0
    %v1900 = vadd.f32 0.0, %v1899
    %1901 = vmatmul.bf16.gmra.mxu0 %v1813
    %v1902 = vpop.f32.mrf.mxu0
    %v1903 = vadd.f32 0.0, %v1902
    %v1904 = vpop.f32.mrf.mxu0
    %v1905 = vadd.f32 0.0, %v1904
    %1906 = vdwg.mxu0
    %v1923 = vunpack.c.l.b16 %v1746
    %v1924 = vunpack.c.l.b16 %v1747
    %v1925 = vunpack.c.l.b16 %v1748
    %v1926 = vunpack.c.l.b16 %v1749
    %v1927 = vunpack.c.l.b16 %v1750
    %v1928 = vunpack.c.l.b16 %v1751
    %v1929 = vunpack.c.l.b16 %v1752
    %v1930 = vunpack.c.l.b16 %v1753
    %v1931 = vunpack.c.l.b16 %v1754
    %v1932 = vunpack.c.l.b16 %v1755
    %v1933 = vunpack.c.l.b16 %v1756
    %v1934 = vunpack.c.l.b16 %v1757
    %v1935 = vunpack.c.l.b16 %v1758
    %v1936 = vunpack.c.l.b16 %v1759
    %v1937 = vunpack.c.l.b16 %v1760
    %v1938 = vunpack.c.l.b16 %v1761
    %v1939 = vpack.c.b16 %v1924, %v1923
    %v1940 = vpack.c.b16 %v1926, %v1925
    %v1941 = vpack.c.b16 %v1928, %v1927
    %v1942 = vpack.c.b16 %v1930, %v1929
    %v1943 = vpack.c.b16 %v1932, %v1931
    %v1944 = vpack.c.b16 %v1934, %v1933
    %v1945 = vpack.c.b16 %v1936, %v1935
    %v1946 = vpack.c.b16 %v1938, %v1937
    %1955 = vmatpush.bf16.msra.mxu0 %v1946
    %1956 = vmatpush.bf16.msra.mxu0 %v1945
    %1957 = vmatpush.bf16.msra.mxu0 %v1944
    %1958 = vmatpush.bf16.msra.mxu0 %v1943
    %1959 = vmatpush.bf16.msra.mxu0 %v1942
    %1960 = vmatpush.bf16.msra.mxu0 %v1941
    %1961 = vmatpush.bf16.msra.mxu0 %v1940
    %1962 = vmatpush.bf16.msra.mxu0 %v1939
    %1963 = vmatmul.bf16.gmra.mxu0 %v1742
    %v1964 = vpop.f32.mrf.mxu0
    %v1965 = vadd.f32 %v1888, %v1964
    %v1966 = vpop.f32.mrf.mxu0
    %v1967 = vadd.f32 %v1890, %v1966
    %1968 = vmatmul.bf16.gmra.mxu0 %v1743
    %v1969 = vpop.f32.mrf.mxu0
    %v1970 = vadd.f32 %v1893, %v1969
    %v1971 = vpop.f32.mrf.mxu0
    %v1972 = vadd.f32 %v1895, %v1971
    %1973 = vmatmul.bf16.gmra.mxu0 %v1744
    %v1974 = vpop.f32.mrf.mxu0
    %v1975 = vadd.f32 %v1898, %v1974
    %v1976 = vpop.f32.mrf.mxu0
    %v1977 = vadd.f32 %v1900, %v1976
    %1978 = vmatmul.bf16.gmra.mxu0 %v1745
    %v1979 = vpop.f32.mrf.mxu0
    %v1980 = vadd.f32 %v1903, %v1979
    %v1981 = vpop.f32.mrf.mxu0
    %v1982 = vadd.f32 %v1905, %v1981
    %1983 = vdwg.mxu0
    %v1984 = vrot.slane %v1726, 2
    %v1985 = vrot.slane %v1727, 2
    %v1986 = vsel %vm603, %v1984, %v1985
    %v1987 = vrot.slane %v1728, 2
    %v1988 = vrot.slane %v1729, 2
    %v1989 = vsel %vm603, %v1987, %v1988
    %v1990 = vrot.slane %v1730, 2
    %v1991 = vrot.slane %v1731, 2
    %v1992 = vsel %vm603, %v1990, %v1991
    %v1993 = vrot.slane %v1732, 2
    %v1994 = vrot.slane %v1733, 2
    %v1995 = vsel %vm603, %v1993, %v1994
    %v1996 = vrot.slane %v1734, 2
    %v1997 = vrot.slane %v1735, 2
    %v1998 = vsel %vm603, %v1996, %v1997
    %v1999 = vrot.slane %v1736, 2
    %v2000 = vrot.slane %v1737, 2
    %v2001 = vsel %vm603, %v1999, %v2000
    %v2002 = vrot.slane %v1738, 2
    %v2003 = vrot.slane %v1739, 2
    %v2004 = vsel %vm603, %v2002, %v2003
    %v2005 = vrot.slane %v1740, 2
    %v2006 = vrot.slane %v1741, 2
    %v2007 = vsel %vm603, %v2005, %v2006
    %v2016 = vpack.c.bf16 %v1989, %v1986
    %v2017 = vpack.c.bf16 %v1995, %v1992
    %v2018 = vpack.c.bf16 %v2001, %v1998
    %v2019 = vpack.c.bf16 %v2007, %v2004
    %v2020 = vld [vmem:[%s640] sm:$0xf]
    %v2021 = vld [vmem:[%s640 + $0x4] sm:$0xf]
    %v2022 = vld [vmem:[%s640 + $0x8] sm:$0xf]
    %v2023 = vld [vmem:[%s640 + $0xc] sm:$0xf]
    %v2024 = vld [vmem:[%s640 + $0x10] sm:$0xf]
    %v2025 = vld [vmem:[%s640 + $0x14] sm:$0xf]
    %v2026 = vld [vmem:[%s640 + $0x18] sm:$0xf]
    %v2027 = vld [vmem:[%s640 + $0x1c] sm:$0xf]
    %v2028 = vld [vmem:[%s640 + $0x20] sm:$0xf]
    %v2029 = vld [vmem:[%s640 + $0x24] sm:$0xf]
    %v2030 = vld [vmem:[%s640 + $0x28] sm:$0xf]
    %v2031 = vld [vmem:[%s640 + $0x2c] sm:$0xf]
    %v2032 = vld [vmem:[%s640 + $0x30] sm:$0xf]
    %v2033 = vld [vmem:[%s640 + $0x34] sm:$0xf]
    %v2034 = vld [vmem:[%s640 + $0x38] sm:$0xf]
    %v2035 = vld [vmem:[%s640 + $0x3c] sm:$0xf]
    %v2052 = vunpack.c.l.b16 %v2020
    %v2053 = vunpack.c.l.b16 %v2021
    %v2054 = vunpack.c.l.b16 %v2022
    %v2055 = vunpack.c.l.b16 %v2023
    %v2056 = vunpack.c.l.b16 %v2024
    %v2057 = vunpack.c.l.b16 %v2025
    %v2058 = vunpack.c.l.b16 %v2026
    %v2059 = vunpack.c.l.b16 %v2027
    %v2060 = vunpack.c.l.b16 %v2028
    %v2061 = vunpack.c.l.b16 %v2029
    %v2062 = vunpack.c.l.b16 %v2030
    %v2063 = vunpack.c.l.b16 %v2031
    %v2064 = vunpack.c.l.b16 %v2032
    %v2065 = vunpack.c.l.b16 %v2033
    %v2066 = vunpack.c.l.b16 %v2034
    %v2067 = vunpack.c.l.b16 %v2035
    %v2068 = vpack.c.b16 %v2053, %v2052
    %v2069 = vpack.c.b16 %v2055, %v2054
    %v2070 = vpack.c.b16 %v2057, %v2056
    %v2071 = vpack.c.b16 %v2059, %v2058
    %v2072 = vpack.c.b16 %v2061, %v2060
    %v2073 = vpack.c.b16 %v2063, %v2062
    %v2074 = vpack.c.b16 %v2065, %v2064
    %v2075 = vpack.c.b16 %v2067, %v2066
    %2084 = vmatpush.bf16.msra.mxu0 %v2075
    %2085 = vmatpush.bf16.msra.mxu0 %v2074
    %2086 = vmatpush.bf16.msra.mxu0 %v2073
    %2087 = vmatpush.bf16.msra.mxu0 %v2072
    %2088 = vmatpush.bf16.msra.mxu0 %v2071
    %2089 = vmatpush.bf16.msra.mxu0 %v2070
    %2090 = vmatpush.bf16.msra.mxu0 %v2069
    %2091 = vmatpush.bf16.msra.mxu0 %v2068
    %2092 = vmatmul.bf16.gmra.mxu0 %v2016
    %v2093 = vpop.f32.mrf.mxu0
    %v2094 = vadd.f32 0.0, %v2093
    %v2095 = vpop.f32.mrf.mxu0
    %v2096 = vadd.f32 0.0, %v2095
    %2097 = vmatmul.bf16.gmra.mxu0 %v2017
    %v2098 = vpop.f32.mrf.mxu0
    %v2099 = vadd.f32 0.0, %v2098
    %v2100 = vpop.f32.mrf.mxu0
    %v2101 = vadd.f32 0.0, %v2100
    %2102 = vmatmul.bf16.gmra.mxu0 %v2018
    %v2103 = vpop.f32.mrf.mxu0
    %v2104 = vadd.f32 0.0, %v2103
    %v2105 = vpop.f32.mrf.mxu0
    %v2106 = vadd.f32 0.0, %v2105
    %2107 = vmatmul.bf16.gmra.mxu0 %v2019
    %v2108 = vpop.f32.mrf.mxu0
    %v2109 = vadd.f32 0.0, %v2108
    %v2110 = vpop.f32.mrf.mxu0
    %v2111 = vadd.f32 0.0, %v2110
    %2112 = vdwg.mxu0
    %v2113 = vadd.f32 %v1965, %v2094
    %v2114 = vadd.f32 %v1967, %v2096
    %v2115 = vadd.f32 %v1970, %v2099
    %v2116 = vadd.f32 %v1972, %v2101
    %v2117 = vadd.f32 %v1975, %v2104
    %v2118 = vadd.f32 %v1977, %v2106
    %v2119 = vadd.f32 %v1980, %v2109
    %v2120 = vadd.f32 %v1982, %v2111
    %v2121 = vld [vmem:[%s1693] sm:$0xf]
    %v2122 = vld [vmem:[%s1693 + $0x4] sm:$0x1]
    %v2123 = vld [vmem:[%s1693 + $0x8] sm:$0xf]
    %v2124 = vld [vmem:[%s1693 + $0xc] sm:$0x1]
    %v2125 = vld [vmem:[%s1693 + $0x10] sm:$0xf]
    %v2126 = vld [vmem:[%s1693 + $0x14] sm:$0x1]
    %v2127 = vld [vmem:[%s1693 + $0x18] sm:$0xf]
    %v2128 = vld [vmem:[%s1693 + $0x1c] sm:$0x1]
    %v2129 = vld [vmem:[%s1693 + $0x20] sm:$0xf]
    %v2130 = vld [vmem:[%s1693 + $0x24] sm:$0x1]
    %v2131 = vld [vmem:[%s1693 + $0x28] sm:$0xf]
    %v2132 = vld [vmem:[%s1693 + $0x2c] sm:$0x1]
    %v2133 = vld [vmem:[%s1693 + $0x30] sm:$0xf]
    %v2134 = vld [vmem:[%s1693 + $0x34] sm:$0x1]
    %v2135 = vld [vmem:[%s1693 + $0x38] sm:$0xf]
    %v2136 = vld [vmem:[%s1693 + $0x3c] sm:$0x1]
    %v2137 = vunpack.c.l.bf16 %v2121
    %v2138 = vunpack.c.l.bf16 %v2122
    %v2139 = vunpack.c.l.bf16 %v2123
    %v2140 = vunpack.c.l.bf16 %v2124
    %v2141 = vunpack.c.l.bf16 %v2125
    %v2142 = vunpack.c.l.bf16 %v2126
    %v2143 = vunpack.c.l.bf16 %v2127
    %v2144 = vunpack.c.l.bf16 %v2128
    %v2145 = vunpack.c.l.bf16 %v2129
    %v2146 = vunpack.c.l.bf16 %v2130
    %v2147 = vunpack.c.l.bf16 %v2131
    %v2148 = vunpack.c.l.bf16 %v2132
    %v2149 = vunpack.c.l.bf16 %v2133
    %v2150 = vunpack.c.l.bf16 %v2134
    %v2151 = vunpack.c.l.bf16 %v2135
    %v2152 = vunpack.c.l.bf16 %v2136
    %v2153 = vpack.c.bf16 %v2139, %v2137
    %v2154 = vpack.c.bf16 %v2143, %v2141
    %v2155 = vpack.c.bf16 %v2147, %v2145
    %v2156 = vpack.c.bf16 %v2151, %v2149
    %v2157 = vld [vmem:[%s778] sm:$0xf]
    %v2158 = vld [vmem:[%s778 + $0x4] sm:$0xf]
    %v2159 = vld [vmem:[%s778 + $0x8] sm:$0xf]
    %v2160 = vld [vmem:[%s778 + $0xc] sm:$0xf]
    %v2161 = vld [vmem:[%s778 + $0x10] sm:$0xf]
    %v2162 = vld [vmem:[%s778 + $0x14] sm:$0xf]
    %v2163 = vld [vmem:[%s778 + $0x18] sm:$0xf]
    %v2164 = vld [vmem:[%s778 + $0x1c] sm:$0xf]
    %v2165 = vld [vmem:[%s778 + $0x20] sm:$0xf]
    %v2166 = vld [vmem:[%s778 + $0x24] sm:$0xf]
    %v2167 = vld [vmem:[%s778 + $0x28] sm:$0xf]
    %v2168 = vld [vmem:[%s778 + $0x2c] sm:$0xf]
    %v2169 = vld [vmem:[%s778 + $0x30] sm:$0xf]
    %v2170 = vld [vmem:[%s778 + $0x34] sm:$0xf]
    %v2171 = vld [vmem:[%s778 + $0x38] sm:$0xf]
    %v2172 = vld [vmem:[%s778 + $0x3c] sm:$0xf]
    %v2189 = vunpack.c.l.b16 %v2157
    %v2190 = vunpack.c.l.b16 %v2158
    %v2191 = vunpack.c.l.b16 %v2159
    %v2192 = vunpack.c.l.b16 %v2160
    %v2193 = vunpack.c.l.b16 %v2161
    %v2194 = vunpack.c.l.b16 %v2162
    %v2195 = vunpack.c.l.b16 %v2163
    %v2196 = vunpack.c.l.b16 %v2164
    %v2197 = vunpack.c.l.b16 %v2165
    %v2198 = vunpack.c.l.b16 %v2166
    %v2199 = vunpack.c.l.b16 %v2167
    %v2200 = vunpack.c.l.b16 %v2168
    %v2201 = vunpack.c.l.b16 %v2169
    %v2202 = vunpack.c.l.b16 %v2170
    %v2203 = vunpack.c.l.b16 %v2171
    %v2204 = vunpack.c.l.b16 %v2172
    %v2205 = vpack.c.b16 %v2190, %v2189
    %v2206 = vpack.c.b16 %v2192, %v2191
    %v2207 = vpack.c.b16 %v2194, %v2193
    %v2208 = vpack.c.b16 %v2196, %v2195
    %v2209 = vpack.c.b16 %v2198, %v2197
    %v2210 = vpack.c.b16 %v2200, %v2199
    %v2211 = vpack.c.b16 %v2202, %v2201
    %v2212 = vpack.c.b16 %v2204, %v2203
    %2221 = vmatpush.bf16.msra.mxu0 %v2212
    %2222 = vmatpush.bf16.msra.mxu0 %v2211
    %2223 = vmatpush.bf16.msra.mxu0 %v2210
    %2224 = vmatpush.bf16.msra.mxu0 %v2209
    %2225 = vmatpush.bf16.msra.mxu0 %v2208
    %2226 = vmatpush.bf16.msra.mxu0 %v2207
    %2227 = vmatpush.bf16.msra.mxu0 %v2206
    %2228 = vmatpush.bf16.msra.mxu0 %v2205
    %2229 = vmatmul.bf16.gmra.mxu0 %v2153
    %v2230 = vpop.f32.mrf.mxu0
    %v2231 = vadd.f32 0.0, %v2230
    %v2232 = vpop.f32.mrf.mxu0
    %v2233 = vadd.f32 0.0, %v2232
    %2234 = vmatmul.bf16.gmra.mxu0 %v2154
    %v2235 = vpop.f32.mrf.mxu0
    %v2236 = vadd.f32 0.0, %v2235
    %v2237 = vpop.f32.mrf.mxu0
    %v2238 = vadd.f32 0.0, %v2237
    %2239 = vmatmul.bf16.gmra.mxu0 %v2155
    %v2240 = vpop.f32.mrf.mxu0
    %v2241 = vadd.f32 0.0, %v2240
    %v2242 = vpop.f32.mrf.mxu0
    %v2243 = vadd.f32 0.0, %v2242
    %2244 = vmatmul.bf16.gmra.mxu0 %v2156
    %v2245 = vpop.f32.mrf.mxu0
    %v2246 = vadd.f32 0.0, %v2245
    %v2247 = vpop.f32.mrf.mxu0
    %v2248 = vadd.f32 0.0, %v2247
    %2249 = vdwg.mxu0
    %v2250 = vadd.f32 %v2113, %v2231
    %v2251 = vadd.f32 %v2114, %v2233
    %v2252 = vadd.f32 %v2115, %v2236
    %v2253 = vadd.f32 %v2116, %v2238
    %v2254 = vadd.f32 %v2117, %v2241
    %v2255 = vadd.f32 %v2118, %v2243
    %v2256 = vadd.f32 %v2119, %v2246
    %v2257 = vadd.f32 %v2120, %v2248
    %v2274 = vrot.slane %v2137, 1
    %v2275 = vrot.slane %v2138, 1
    %v2276 = vsel %vm395, %v2274, %v2275
    %v2277 = vrot.slane %v2139, 1
    %v2278 = vrot.slane %v2140, 1
    %v2279 = vsel %vm395, %v2277, %v2278
    %v2280 = vrot.slane %v2141, 1
    %v2281 = vrot.slane %v2142, 1
    %v2282 = vsel %vm395, %v2280, %v2281
    %v2283 = vrot.slane %v2143, 1
    %v2284 = vrot.slane %v2144, 1
    %v2285 = vsel %vm395, %v2283, %v2284
    %v2286 = vrot.slane %v2145, 1
    %v2287 = vrot.slane %v2146, 1
    %v2288 = vsel %vm395, %v2286, %v2287
    %v2289 = vrot.slane %v2147, 1
    %v2290 = vrot.slane %v2148, 1
    %v2291 = vsel %vm395, %v2289, %v2290
    %v2292 = vrot.slane %v2149, 1
    %v2293 = vrot.slane %v2150, 1
    %v2294 = vsel %vm395, %v2292, %v2293
    %v2295 = vrot.slane %v2151, 1
    %v2296 = vrot.slane %v2152, 1
    %v2297 = vsel %vm395, %v2295, %v2296
    %v2306 = vpack.c.bf16 %v2279, %v2276
    %v2307 = vpack.c.bf16 %v2285, %v2282
    %v2308 = vpack.c.bf16 %v2291, %v2288
    %v2309 = vpack.c.bf16 %v2297, %v2294
    %v2310 = vld [vmem:[%s932] sm:$0xf]
    %v2311 = vld [vmem:[%s932 + $0x4] sm:$0xf]
    %v2312 = vld [vmem:[%s932 + $0x8] sm:$0xf]
    %v2313 = vld [vmem:[%s932 + $0xc] sm:$0xf]
    %v2314 = vld [vmem:[%s932 + $0x10] sm:$0xf]
    %v2315 = vld [vmem:[%s932 + $0x14] sm:$0xf]
    %v2316 = vld [vmem:[%s932 + $0x18] sm:$0xf]
    %v2317 = vld [vmem:[%s932 + $0x1c] sm:$0xf]
    %v2318 = vld [vmem:[%s932 + $0x20] sm:$0xf]
    %v2319 = vld [vmem:[%s932 + $0x24] sm:$0xf]
    %v2320 = vld [vmem:[%s932 + $0x28] sm:$0xf]
    %v2321 = vld [vmem:[%s932 + $0x2c] sm:$0xf]
    %v2322 = vld [vmem:[%s932 + $0x30] sm:$0xf]
    %v2323 = vld [vmem:[%s932 + $0x34] sm:$0xf]
    %v2324 = vld [vmem:[%s932 + $0x38] sm:$0xf]
    %v2325 = vld [vmem:[%s932 + $0x3c] sm:$0xf]
    %v2342 = vunpack.c.l.b16 %v2310
    %v2343 = vunpack.c.l.b16 %v2311
    %v2344 = vunpack.c.l.b16 %v2312
    %v2345 = vunpack.c.l.b16 %v2313
    %v2346 = vunpack.c.l.b16 %v2314
    %v2347 = vunpack.c.l.b16 %v2315
    %v2348 = vunpack.c.l.b16 %v2316
    %v2349 = vunpack.c.l.b16 %v2317
    %v2350 = vunpack.c.l.b16 %v2318
    %v2351 = vunpack.c.l.b16 %v2319
    %v2352 = vunpack.c.l.b16 %v2320
    %v2353 = vunpack.c.l.b16 %v2321
    %v2354 = vunpack.c.l.b16 %v2322
    %v2355 = vunpack.c.l.b16 %v2323
    %v2356 = vunpack.c.l.b16 %v2324
    %v2357 = vunpack.c.l.b16 %v2325
    %v2358 = vpack.c.b16 %v2343, %v2342
    %v2359 = vpack.c.b16 %v2345, %v2344
    %v2360 = vpack.c.b16 %v2347, %v2346
    %v2361 = vpack.c.b16 %v2349, %v2348
    %v2362 = vpack.c.b16 %v2351, %v2350
    %v2363 = vpack.c.b16 %v2353, %v2352
    %v2364 = vpack.c.b16 %v2355, %v2354
    %v2365 = vpack.c.b16 %v2357, %v2356
    %2374 = vmatpush.bf16.msra.mxu0 %v2365
    %2375 = vmatpush.bf16.msra.mxu0 %v2364
    %2376 = vmatpush.bf16.msra.mxu0 %v2363
    %2377 = vmatpush.bf16.msra.mxu0 %v2362
    %2378 = vmatpush.bf16.msra.mxu0 %v2361
    %2379 = vmatpush.bf16.msra.mxu0 %v2360
    %2380 = vmatpush.bf16.msra.mxu0 %v2359
    %2381 = vmatpush.bf16.msra.mxu0 %v2358
    %2382 = vmatmul.bf16.gmra.mxu0 %v2306
    %v2383 = vpop.f32.mrf.mxu0
    %v2384 = vadd.f32 0.0, %v2383
    %v2385 = vpop.f32.mrf.mxu0
    %v2386 = vadd.f32 0.0, %v2385
    %2387 = vmatmul.bf16.gmra.mxu0 %v2307
    %v2388 = vpop.f32.mrf.mxu0
    %v2389 = vadd.f32 0.0, %v2388
    %v2390 = vpop.f32.mrf.mxu0
    %v2391 = vadd.f32 0.0, %v2390
    %2392 = vmatmul.bf16.gmra.mxu0 %v2308
    %v2393 = vpop.f32.mrf.mxu0
    %v2394 = vadd.f32 0.0, %v2393
    %v2395 = vpop.f32.mrf.mxu0
    %v2396 = vadd.f32 0.0, %v2395
    %2397 = vmatmul.bf16.gmra.mxu0 %v2309
    %v2398 = vpop.f32.mrf.mxu0
    %v2399 = vadd.f32 0.0, %v2398
    %v2400 = vpop.f32.mrf.mxu0
    %v2401 = vadd.f32 0.0, %v2400
    %2402 = vdwg.mxu0
    %v2403 = vadd.f32 %v2250, %v2384
    %v2404 = vadd.f32 %v2251, %v2386
    %v2405 = vadd.f32 %v2252, %v2389
    %v2406 = vadd.f32 %v2253, %v2391
    %v2407 = vadd.f32 %v2254, %v2394
    %v2408 = vadd.f32 %v2255, %v2396
    %v2409 = vadd.f32 %v2256, %v2399
    %v2410 = vadd.f32 %v2257, %v2401
    %v2411 = vrot.slane %v2137, 2
    %v2412 = vrot.slane %v2138, 2
    %v2413 = vsel %vm603, %v2411, %v2412
    %v2414 = vrot.slane %v2139, 2
    %v2415 = vrot.slane %v2140, 2
    %v2416 = vsel %vm603, %v2414, %v2415
    %v2417 = vrot.slane %v2141, 2
    %v2418 = vrot.slane %v2142, 2
    %v2419 = vsel %vm603, %v2417, %v2418
    %v2420 = vrot.slane %v2143, 2
    %v2421 = vrot.slane %v2144, 2
    %v2422 = vsel %vm603, %v2420, %v2421
    %v2423 = vrot.slane %v2145, 2
    %v2424 = vrot.slane %v2146, 2
    %v2425 = vsel %vm603, %v2423, %v2424
    %v2426 = vrot.slane %v2147, 2
    %v2427 = vrot.slane %v2148, 2
    %v2428 = vsel %vm603, %v2426, %v2427
    %v2429 = vrot.slane %v2149, 2
    %v2430 = vrot.slane %v2150, 2
    %v2431 = vsel %vm603, %v2429, %v2430
    %v2432 = vrot.slane %v2151, 2
    %v2433 = vrot.slane %v2152, 2
    %v2434 = vsel %vm603, %v2432, %v2433
    %v2443 = vpack.c.bf16 %v2416, %v2413
    %v2444 = vpack.c.bf16 %v2422, %v2419
    %v2445 = vpack.c.bf16 %v2428, %v2425
    %v2446 = vpack.c.bf16 %v2434, %v2431
    %v2447 = vld [vmem:[%s1070] sm:$0xf]
    %v2448 = vld [vmem:[%s1070 + $0x4] sm:$0xf]
    %v2449 = vld [vmem:[%s1070 + $0x8] sm:$0xf]
    %v2450 = vld [vmem:[%s1070 + $0xc] sm:$0xf]
    %v2451 = vld [vmem:[%s1070 + $0x10] sm:$0xf]
    %v2452 = vld [vmem:[%s1070 + $0x14] sm:$0xf]
    %v2453 = vld [vmem:[%s1070 + $0x18] sm:$0xf]
    %v2454 = vld [vmem:[%s1070 + $0x1c] sm:$0xf]
    %v2455 = vld [vmem:[%s1070 + $0x20] sm:$0xf]
    %v2456 = vld [vmem:[%s1070 + $0x24] sm:$0xf]
    %v2457 = vld [vmem:[%s1070 + $0x28] sm:$0xf]
    %v2458 = vld [vmem:[%s1070 + $0x2c] sm:$0xf]
    %v2459 = vld [vmem:[%s1070 + $0x30] sm:$0xf]
    %v2460 = vld [vmem:[%s1070 + $0x34] sm:$0xf]
    %v2461 = vld [vmem:[%s1070 + $0x38] sm:$0xf]
    %v2462 = vld [vmem:[%s1070 + $0x3c] sm:$0xf]
    %v2479 = vunpack.c.l.b16 %v2447
    %v2480 = vunpack.c.l.b16 %v2448
    %v2481 = vunpack.c.l.b16 %v2449
    %v2482 = vunpack.c.l.b16 %v2450
    %v2483 = vunpack.c.l.b16 %v2451
    %v2484 = vunpack.c.l.b16 %v2452
    %v2485 = vunpack.c.l.b16 %v2453
    %v2486 = vunpack.c.l.b16 %v2454
    %v2487 = vunpack.c.l.b16 %v2455
    %v2488 = vunpack.c.l.b16 %v2456
    %v2489 = vunpack.c.l.b16 %v2457
    %v2490 = vunpack.c.l.b16 %v2458
    %v2491 = vunpack.c.l.b16 %v2459
    %v2492 = vunpack.c.l.b16 %v2460
    %v2493 = vunpack.c.l.b16 %v2461
    %v2494 = vunpack.c.l.b16 %v2462
    %v2495 = vpack.c.b16 %v2480, %v2479
    %v2496 = vpack.c.b16 %v2482, %v2481
    %v2497 = vpack.c.b16 %v2484, %v2483
    %v2498 = vpack.c.b16 %v2486, %v2485
    %v2499 = vpack.c.b16 %v2488, %v2487
    %v2500 = vpack.c.b16 %v2490, %v2489
    %v2501 = vpack.c.b16 %v2492, %v2491
    %v2502 = vpack.c.b16 %v2494, %v2493
    %2511 = vmatpush.bf16.msra.mxu0 %v2502
    %2512 = vmatpush.bf16.msra.mxu0 %v2501
    %2513 = vmatpush.bf16.msra.mxu0 %v2500
    %2514 = vmatpush.bf16.msra.mxu0 %v2499
    %2515 = vmatpush.bf16.msra.mxu0 %v2498
    %2516 = vmatpush.bf16.msra.mxu0 %v2497
    %2517 = vmatpush.bf16.msra.mxu0 %v2496
    %2518 = vmatpush.bf16.msra.mxu0 %v2495
    %2519 = vmatmul.bf16.gmra.mxu0 %v2443
    %v2520 = vpop.f32.mrf.mxu0
    %v2521 = vadd.f32 0.0, %v2520
    %v2522 = vpop.f32.mrf.mxu0
    %v2523 = vadd.f32 0.0, %v2522
    %2524 = vmatmul.bf16.gmra.mxu0 %v2444
    %v2525 = vpop.f32.mrf.mxu0
    %v2526 = vadd.f32 0.0, %v2525
    %v2527 = vpop.f32.mrf.mxu0
    %v2528 = vadd.f32 0.0, %v2527
    %2529 = vmatmul.bf16.gmra.mxu0 %v2445
    %v2530 = vpop.f32.mrf.mxu0
    %v2531 = vadd.f32 0.0, %v2530
    %v2532 = vpop.f32.mrf.mxu0
    %v2533 = vadd.f32 0.0, %v2532
    %2534 = vmatmul.bf16.gmra.mxu0 %v2446
    %v2535 = vpop.f32.mrf.mxu0
    %v2536 = vadd.f32 0.0, %v2535
    %v2537 = vpop.f32.mrf.mxu0
    %v2538 = vadd.f32 0.0, %v2537
    %2539 = vdwg.mxu0
    %v2540 = vadd.f32 %v2403, %v2521
    %v2541 = vadd.f32 %v2404, %v2523
    %v2542 = vadd.f32 %v2405, %v2526
    %v2543 = vadd.f32 %v2406, %v2528
    %v2544 = vadd.f32 %v2407, %v2531
    %v2545 = vadd.f32 %v2408, %v2533
    %v2546 = vadd.f32 %v2409, %v2536
    %v2547 = vadd.f32 %v2410, %v2538
    %s2548 = scalar_lea.vmem [#allocation2], 96
    %v2549 = vld [vmem:[%s2548] sm:$0xf]
    %v2550 = vld [vmem:[%s2548 + $0x4] sm:$0x1]
    %v2551 = vld [vmem:[%s2548 + $0x8] sm:$0xf]
    %v2552 = vld [vmem:[%s2548 + $0xc] sm:$0x1]
    %v2553 = vld [vmem:[%s2548 + $0x10] sm:$0xf]
    %v2554 = vld [vmem:[%s2548 + $0x14] sm:$0x1]
    %v2555 = vld [vmem:[%s2548 + $0x18] sm:$0xf]
    %v2556 = vld [vmem:[%s2548 + $0x1c] sm:$0x1]
    %v2557 = vld [vmem:[%s2548 + $0x20] sm:$0xf]
    %v2558 = vld [vmem:[%s2548 + $0x24] sm:$0x1]
    %v2559 = vld [vmem:[%s2548 + $0x28] sm:$0xf]
    %v2560 = vld [vmem:[%s2548 + $0x2c] sm:$0x1]
    %v2561 = vld [vmem:[%s2548 + $0x30] sm:$0xf]
    %v2562 = vld [vmem:[%s2548 + $0x34] sm:$0x1]
    %v2563 = vld [vmem:[%s2548 + $0x38] sm:$0xf]
    %v2564 = vld [vmem:[%s2548 + $0x3c] sm:$0x1]
    %v2565 = vunpack.c.l.bf16 %v2549
    %v2566 = vunpack.c.l.bf16 %v2550
    %v2567 = vunpack.c.l.bf16 %v2551
    %v2568 = vunpack.c.l.bf16 %v2552
    %v2569 = vunpack.c.l.bf16 %v2553
    %v2570 = vunpack.c.l.bf16 %v2554
    %v2571 = vunpack.c.l.bf16 %v2555
    %v2572 = vunpack.c.l.bf16 %v2556
    %v2573 = vunpack.c.l.bf16 %v2557
    %v2574 = vunpack.c.l.bf16 %v2558
    %v2575 = vunpack.c.l.bf16 %v2559
    %v2576 = vunpack.c.l.bf16 %v2560
    %v2577 = vunpack.c.l.bf16 %v2561
    %v2578 = vunpack.c.l.bf16 %v2562
    %v2579 = vunpack.c.l.bf16 %v2563
    %v2580 = vunpack.c.l.bf16 %v2564
    %v2581 = vpack.c.bf16 %v2567, %v2565
    %v2582 = vpack.c.bf16 %v2571, %v2569
    %v2583 = vpack.c.bf16 %v2575, %v2573
    %v2584 = vpack.c.bf16 %v2579, %v2577
    %v2585 = vld [vmem:[%s1209] sm:$0xf]
    %v2586 = vld [vmem:[%s1209 + $0x4] sm:$0xf]
    %v2587 = vld [vmem:[%s1209 + $0x8] sm:$0xf]
    %v2588 = vld [vmem:[%s1209 + $0xc] sm:$0xf]
    %v2589 = vld [vmem:[%s1209 + $0x10] sm:$0xf]
    %v2590 = vld [vmem:[%s1209 + $0x14] sm:$0xf]
    %v2591 = vld [vmem:[%s1209 + $0x18] sm:$0xf]
    %v2592 = vld [vmem:[%s1209 + $0x1c] sm:$0xf]
    %v2593 = vld [vmem:[%s1209 + $0x20] sm:$0xf]
    %v2594 = vld [vmem:[%s1209 + $0x24] sm:$0xf]
    %v2595 = vld [vmem:[%s1209 + $0x28] sm:$0xf]
    %v2596 = vld [vmem:[%s1209 + $0x2c] sm:$0xf]
    %v2597 = vld [vmem:[%s1209 + $0x30] sm:$0xf]
    %v2598 = vld [vmem:[%s1209 + $0x34] sm:$0xf]
    %v2599 = vld [vmem:[%s1209 + $0x38] sm:$0xf]
    %v2600 = vld [vmem:[%s1209 + $0x3c] sm:$0xf]
    %v2617 = vunpack.c.l.b16 %v2585
    %v2618 = vunpack.c.l.b16 %v2586
    %v2619 = vunpack.c.l.b16 %v2587
    %v2620 = vunpack.c.l.b16 %v2588
    %v2621 = vunpack.c.l.b16 %v2589
    %v2622 = vunpack.c.l.b16 %v2590
    %v2623 = vunpack.c.l.b16 %v2591
    %v2624 = vunpack.c.l.b16 %v2592
    %v2625 = vunpack.c.l.b16 %v2593
    %v2626 = vunpack.c.l.b16 %v2594
    %v2627 = vunpack.c.l.b16 %v2595
    %v2628 = vunpack.c.l.b16 %v2596
    %v2629 = vunpack.c.l.b16 %v2597
    %v2630 = vunpack.c.l.b16 %v2598
    %v2631 = vunpack.c.l.b16 %v2599
    %v2632 = vunpack.c.l.b16 %v2600
    %v2633 = vpack.c.b16 %v2618, %v2617
    %v2634 = vpack.c.b16 %v2620, %v2619
    %v2635 = vpack.c.b16 %v2622, %v2621
    %v2636 = vpack.c.b16 %v2624, %v2623
    %v2637 = vpack.c.b16 %v2626, %v2625
    %v2638 = vpack.c.b16 %v2628, %v2627
    %v2639 = vpack.c.b16 %v2630, %v2629
    %v2640 = vpack.c.b16 %v2632, %v2631
    %2649 = vmatpush.bf16.msra.mxu0 %v2640
    %2650 = vmatpush.bf16.msra.mxu0 %v2639
    %2651 = vmatpush.bf16.msra.mxu0 %v2638
    %2652 = vmatpush.bf16.msra.mxu0 %v2637
    %2653 = vmatpush.bf16.msra.mxu0 %v2636
    %2654 = vmatpush.bf16.msra.mxu0 %v2635
    %2655 = vmatpush.bf16.msra.mxu0 %v2634
    %2656 = vmatpush.bf16.msra.mxu0 %v2633
    %2657 = vmatmul.bf16.gmra.mxu0 %v2581
    %v2658 = vpop.f32.mrf.mxu0
    %v2659 = vadd.f32 0.0, %v2658
    %v2660 = vpop.f32.mrf.mxu0
    %v2661 = vadd.f32 0.0, %v2660
    %2662 = vmatmul.bf16.gmra.mxu0 %v2582
    %v2663 = vpop.f32.mrf.mxu0
    %v2664 = vadd.f32 0.0, %v2663
    %v2665 = vpop.f32.mrf.mxu0
    %v2666 = vadd.f32 0.0, %v2665
    %2667 = vmatmul.bf16.gmra.mxu0 %v2583
    %v2668 = vpop.f32.mrf.mxu0
    %v2669 = vadd.f32 0.0, %v2668
    %v2670 = vpop.f32.mrf.mxu0
    %v2671 = vadd.f32 0.0, %v2670
    %2672 = vmatmul.bf16.gmra.mxu0 %v2584
    %v2673 = vpop.f32.mrf.mxu0
    %v2674 = vadd.f32 0.0, %v2673
    %v2675 = vpop.f32.mrf.mxu0
    %v2676 = vadd.f32 0.0, %v2675
    %2677 = vdwg.mxu0
    %v2678 = vadd.f32 %v2540, %v2659
    %v2679 = vadd.f32 %v2541, %v2661
    %v2680 = vadd.f32 %v2542, %v2664
    %v2681 = vadd.f32 %v2543, %v2666
    %v2682 = vadd.f32 %v2544, %v2669
    %v2683 = vadd.f32 %v2545, %v2671
    %v2684 = vadd.f32 %v2546, %v2674
    %v2685 = vadd.f32 %v2547, %v2676
    %v2702 = vrot.slane %v2565, 1
    %v2703 = vrot.slane %v2566, 1
    %v2704 = vsel %vm395, %v2702, %v2703
    %v2705 = vrot.slane %v2567, 1
    %v2706 = vrot.slane %v2568, 1
    %v2707 = vsel %vm395, %v2705, %v2706
    %v2708 = vrot.slane %v2569, 1
    %v2709 = vrot.slane %v2570, 1
    %v2710 = vsel %vm395, %v2708, %v2709
    %v2711 = vrot.slane %v2571, 1
    %v2712 = vrot.slane %v2572, 1
    %v2713 = vsel %vm395, %v2711, %v2712
    %v2714 = vrot.slane %v2573, 1
    %v2715 = vrot.slane %v2574, 1
    %v2716 = vsel %vm395, %v2714, %v2715
    %v2717 = vrot.slane %v2575, 1
    %v2718 = vrot.slane %v2576, 1
    %v2719 = vsel %vm395, %v2717, %v2718
    %v2720 = vrot.slane %v2577, 1
    %v2721 = vrot.slane %v2578, 1
    %v2722 = vsel %vm395, %v2720, %v2721
    %v2723 = vrot.slane %v2579, 1
    %v2724 = vrot.slane %v2580, 1
    %v2725 = vsel %vm395, %v2723, %v2724
    %v2734 = vpack.c.bf16 %v2707, %v2704
    %v2735 = vpack.c.bf16 %v2713, %v2710
    %v2736 = vpack.c.bf16 %v2719, %v2716
    %v2737 = vpack.c.bf16 %v2725, %v2722
    %v2738 = vld [vmem:[%s1363] sm:$0xf]
    %v2739 = vld [vmem:[%s1363 + $0x4] sm:$0xf]
    %v2740 = vld [vmem:[%s1363 + $0x8] sm:$0xf]
    %v2741 = vld [vmem:[%s1363 + $0xc] sm:$0xf]
    %v2742 = vld [vmem:[%s1363 + $0x10] sm:$0xf]
    %v2743 = vld [vmem:[%s1363 + $0x14] sm:$0xf]
    %v2744 = vld [vmem:[%s1363 + $0x18] sm:$0xf]
    %v2745 = vld [vmem:[%s1363 + $0x1c] sm:$0xf]
    %v2746 = vld [vmem:[%s1363 + $0x20] sm:$0xf]
    %v2747 = vld [vmem:[%s1363 + $0x24] sm:$0xf]
    %v2748 = vld [vmem:[%s1363 + $0x28] sm:$0xf]
    %v2749 = vld [vmem:[%s1363 + $0x2c] sm:$0xf]
    %v2750 = vld [vmem:[%s1363 + $0x30] sm:$0xf]
    %v2751 = vld [vmem:[%s1363 + $0x34] sm:$0xf]
    %v2752 = vld [vmem:[%s1363 + $0x38] sm:$0xf]
    %v2753 = vld [vmem:[%s1363 + $0x3c] sm:$0xf]
    %v2770 = vunpack.c.l.b16 %v2738
    %v2771 = vunpack.c.l.b16 %v2739
    %v2772 = vunpack.c.l.b16 %v2740
    %v2773 = vunpack.c.l.b16 %v2741
    %v2774 = vunpack.c.l.b16 %v2742
    %v2775 = vunpack.c.l.b16 %v2743
    %v2776 = vunpack.c.l.b16 %v2744
    %v2777 = vunpack.c.l.b16 %v2745
    %v2778 = vunpack.c.l.b16 %v2746
    %v2779 = vunpack.c.l.b16 %v2747
    %v2780 = vunpack.c.l.b16 %v2748
    %v2781 = vunpack.c.l.b16 %v2749
    %v2782 = vunpack.c.l.b16 %v2750
    %v2783 = vunpack.c.l.b16 %v2751
    %v2784 = vunpack.c.l.b16 %v2752
    %v2785 = vunpack.c.l.b16 %v2753
    %v2786 = vpack.c.b16 %v2771, %v2770
    %v2787 = vpack.c.b16 %v2773, %v2772
    %v2788 = vpack.c.b16 %v2775, %v2774
    %v2789 = vpack.c.b16 %v2777, %v2776
    %v2790 = vpack.c.b16 %v2779, %v2778
    %v2791 = vpack.c.b16 %v2781, %v2780
    %v2792 = vpack.c.b16 %v2783, %v2782
    %v2793 = vpack.c.b16 %v2785, %v2784
    %2802 = vmatpush.bf16.msra.mxu0 %v2793
    %2803 = vmatpush.bf16.msra.mxu0 %v2792
    %2804 = vmatpush.bf16.msra.mxu0 %v2791
    %2805 = vmatpush.bf16.msra.mxu0 %v2790
    %2806 = vmatpush.bf16.msra.mxu0 %v2789
    %2807 = vmatpush.bf16.msra.mxu0 %v2788
    %2808 = vmatpush.bf16.msra.mxu0 %v2787
    %2809 = vmatpush.bf16.msra.mxu0 %v2786
    %2810 = vmatmul.bf16.gmra.mxu0 %v2734
    %v2811 = vpop.f32.mrf.mxu0
    %v2812 = vadd.f32 0.0, %v2811
    %v2813 = vpop.f32.mrf.mxu0
    %v2814 = vadd.f32 0.0, %v2813
    %2815 = vmatmul.bf16.gmra.mxu0 %v2735
    %v2816 = vpop.f32.mrf.mxu0
    %v2817 = vadd.f32 0.0, %v2816
    %v2818 = vpop.f32.mrf.mxu0
    %v2819 = vadd.f32 0.0, %v2818
    %2820 = vmatmul.bf16.gmra.mxu0 %v2736
    %v2821 = vpop.f32.mrf.mxu0
    %v2822 = vadd.f32 0.0, %v2821
    %v2823 = vpop.f32.mrf.mxu0
    %v2824 = vadd.f32 0.0, %v2823
    %2825 = vmatmul.bf16.gmra.mxu0 %v2737
    %v2826 = vpop.f32.mrf.mxu0
    %v2827 = vadd.f32 0.0, %v2826
    %v2828 = vpop.f32.mrf.mxu0
    %v2829 = vadd.f32 0.0, %v2828
    %2830 = vdwg.mxu0
    %v2831 = vadd.f32 %v2678, %v2812
    %v2832 = vadd.f32 %v2679, %v2814
    %v2833 = vadd.f32 %v2680, %v2817
    %v2834 = vadd.f32 %v2681, %v2819
    %v2835 = vadd.f32 %v2682, %v2822
    %v2836 = vadd.f32 %v2683, %v2824
    %v2837 = vadd.f32 %v2684, %v2827
    %v2838 = vadd.f32 %v2685, %v2829
    %v2839 = vrot.slane %v2565, 2
    %v2840 = vrot.slane %v2566, 2
    %v2841 = vsel %vm603, %v2839, %v2840
    %v2842 = vrot.slane %v2567, 2
    %v2843 = vrot.slane %v2568, 2
    %v2844 = vsel %vm603, %v2842, %v2843
    %v2845 = vrot.slane %v2569, 2
    %v2846 = vrot.slane %v2570, 2
    %v2847 = vsel %vm603, %v2845, %v2846
    %v2848 = vrot.slane %v2571, 2
    %v2849 = vrot.slane %v2572, 2
    %v2850 = vsel %vm603, %v2848, %v2849
    %v2851 = vrot.slane %v2573, 2
    %v2852 = vrot.slane %v2574, 2
    %v2853 = vsel %vm603, %v2851, %v2852
    %v2854 = vrot.slane %v2575, 2
    %v2855 = vrot.slane %v2576, 2
    %v2856 = vsel %vm603, %v2854, %v2855
    %v2857 = vrot.slane %v2577, 2
    %v2858 = vrot.slane %v2578, 2
    %v2859 = vsel %vm603, %v2857, %v2858
    %v2860 = vrot.slane %v2579, 2
    %v2861 = vrot.slane %v2580, 2
    %v2862 = vsel %vm603, %v2860, %v2861
    %v2871 = vpack.c.bf16 %v2844, %v2841
    %v2872 = vpack.c.bf16 %v2850, %v2847
    %v2873 = vpack.c.bf16 %v2856, %v2853
    %v2874 = vpack.c.bf16 %v2862, %v2859
    %v2875 = vld [vmem:[%s1501] sm:$0xf]
    %v2876 = vld [vmem:[%s1501 + $0x4] sm:$0xf]
    %v2877 = vld [vmem:[%s1501 + $0x8] sm:$0xf]
    %v2878 = vld [vmem:[%s1501 + $0xc] sm:$0xf]
    %v2879 = vld [vmem:[%s1501 + $0x10] sm:$0xf]
    %v2880 = vld [vmem:[%s1501 + $0x14] sm:$0xf]
    %v2881 = vld [vmem:[%s1501 + $0x18] sm:$0xf]
    %v2882 = vld [vmem:[%s1501 + $0x1c] sm:$0xf]
    %v2883 = vld [vmem:[%s1501 + $0x20] sm:$0xf]
    %v2884 = vld [vmem:[%s1501 + $0x24] sm:$0xf]
    %v2885 = vld [vmem:[%s1501 + $0x28] sm:$0xf]
    %v2886 = vld [vmem:[%s1501 + $0x2c] sm:$0xf]
    %v2887 = vld [vmem:[%s1501 + $0x30] sm:$0xf]
    %v2888 = vld [vmem:[%s1501 + $0x34] sm:$0xf]
    %v2889 = vld [vmem:[%s1501 + $0x38] sm:$0xf]
    %v2890 = vld [vmem:[%s1501 + $0x3c] sm:$0xf]
    %v2907 = vunpack.c.l.b16 %v2875
    %v2908 = vunpack.c.l.b16 %v2876
    %v2909 = vunpack.c.l.b16 %v2877
    %v2910 = vunpack.c.l.b16 %v2878
    %v2911 = vunpack.c.l.b16 %v2879
    %v2912 = vunpack.c.l.b16 %v2880
    %v2913 = vunpack.c.l.b16 %v2881
    %v2914 = vunpack.c.l.b16 %v2882
    %v2915 = vunpack.c.l.b16 %v2883
    %v2916 = vunpack.c.l.b16 %v2884
    %v2917 = vunpack.c.l.b16 %v2885
    %v2918 = vunpack.c.l.b16 %v2886
    %v2919 = vunpack.c.l.b16 %v2887
    %v2920 = vunpack.c.l.b16 %v2888
    %v2921 = vunpack.c.l.b16 %v2889
    %v2922 = vunpack.c.l.b16 %v2890
    %v2923 = vpack.c.b16 %v2908, %v2907
    %v2924 = vpack.c.b16 %v2910, %v2909
    %v2925 = vpack.c.b16 %v2912, %v2911
    %v2926 = vpack.c.b16 %v2914, %v2913
    %v2927 = vpack.c.b16 %v2916, %v2915
    %v2928 = vpack.c.b16 %v2918, %v2917
    %v2929 = vpack.c.b16 %v2920, %v2919
    %v2930 = vpack.c.b16 %v2922, %v2921
    %2939 = vmatpush.bf16.msra.mxu0 %v2930
    %2940 = vmatpush.bf16.msra.mxu0 %v2929
    %2941 = vmatpush.bf16.msra.mxu0 %v2928
    %2942 = vmatpush.bf16.msra.mxu0 %v2927
    %2943 = vmatpush.bf16.msra.mxu0 %v2926
    %2944 = vmatpush.bf16.msra.mxu0 %v2925
    %2945 = vmatpush.bf16.msra.mxu0 %v2924
    %2946 = vmatpush.bf16.msra.mxu0 %v2923
    %2947 = vmatmul.bf16.gmra.mxu0 %v2871
    %v2948 = vpop.f32.mrf.mxu0
    %v2949 = vadd.f32 0.0, %v2948
    %v2950 = vpop.f32.mrf.mxu0
    %v2951 = vadd.f32 0.0, %v2950
    %2952 = vmatmul.bf16.gmra.mxu0 %v2872
    %v2953 = vpop.f32.mrf.mxu0
    %v2954 = vadd.f32 0.0, %v2953
    %v2955 = vpop.f32.mrf.mxu0
    %v2956 = vadd.f32 0.0, %v2955
    %2957 = vmatmul.bf16.gmra.mxu0 %v2873
    %v2958 = vpop.f32.mrf.mxu0
    %v2959 = vadd.f32 0.0, %v2958
    %v2960 = vpop.f32.mrf.mxu0
    %v2961 = vadd.f32 0.0, %v2960
    %2962 = vmatmul.bf16.gmra.mxu0 %v2874
    %v2963 = vpop.f32.mrf.mxu0
    %v2964 = vadd.f32 0.0, %v2963
    %v2965 = vpop.f32.mrf.mxu0
    %v2966 = vadd.f32 0.0, %v2965
    %2967 = vdwg.mxu0
    %v2968 = vadd.f32 %v2831, %v2949
    %v2969 = vadd.f32 %v2832, %v2951
    %v2970 = vadd.f32 %v2833, %v2954
    %v2971 = vadd.f32 %v2834, %v2956
    %v2972 = vadd.f32 %v2835, %v2959
    %v2973 = vadd.f32 %v2836, %v2961
    %v2974 = vadd.f32 %v2837, %v2964
    %v2975 = vadd.f32 %v2838, %v2966
    %v2976 = vld [vmem:[%s4] sm:$0x1]
    %v2978 = vperm.slane %v2976, 0
    %v2980 = vadd.f32 %v2968, %v2978
    %v2981 = vadd.f32 %v2969, %v2978
    %v2982 = vadd.f32 %v2970, %v2978
    %v2983 = vadd.f32 %v2971, %v2978
    %v2984 = vadd.f32 %v2972, %v2978
    %v2985 = vadd.f32 %v2973, %v2978
    %v2986 = vadd.f32 %v2974, %v2978
    %v2987 = vadd.f32 %v2975, %v2978
    %v2988 = vmax.f32 %v2980, 0.0
    %v2989 = vmax.f32 %v2981, 0.0
    %v2990 = vmax.f32 %v2982, 0.0
    %v2991 = vmax.f32 %v2983, 0.0
    %v2992 = vmax.f32 %v2984, 0.0
    %v2993 = vmax.f32 %v2985, 0.0
    %v2994 = vmax.f32 %v2986, 0.0
    %v2995 = vmax.f32 %v2987, 0.0
    %v2996 = vpack.c.bf16 %v2988, %v2988
    %v2997 = vpack.c.bf16 %v2989, %v2989
    %v2998 = vpack.c.bf16 %v2990, %v2990
    %v2999 = vpack.c.bf16 %v2991, %v2991
    %v3000 = vpack.c.bf16 %v2992, %v2992
    %v3001 = vpack.c.bf16 %v2993, %v2993
    %v3002 = vpack.c.bf16 %v2994, %v2994
    %v3003 = vpack.c.bf16 %v2995, %v2995
    %v3012 = vunpack.c.l.b16 %v1623
    %v3013 = vunpack.c.l.b16 %v1624
    %v3014 = vunpack.c.l.b16 %v1625
    %v3015 = vunpack.c.l.b16 %v1626
    %v3016 = vunpack.c.l.b16 %v1627
    %v3017 = vunpack.c.l.b16 %v1628
    %v3018 = vunpack.c.l.b16 %v1629
    %v3019 = vunpack.c.l.b16 %v1630
    %v3020 = vpack.c.b16 %v3013, %v3012
    %v3021 = vpack.c.b16 %v3015, %v3014
    %v3022 = vpack.c.b16 %v3017, %v3016
    %v3023 = vpack.c.b16 %v3019, %v3018
    %v3036 = vunpack.c.l.b16 %v2996
    %v3037 = vunpack.c.l.b16 %v2997
    %v3038 = vunpack.c.l.b16 %v2998
    %v3039 = vunpack.c.l.b16 %v2999
    %v3040 = vunpack.c.l.b16 %v3000
    %v3041 = vunpack.c.l.b16 %v3001
    %v3042 = vunpack.c.l.b16 %v3002
    %v3043 = vunpack.c.l.b16 %v3003
    %v3044 = vpack.c.b16 %v3037, %v3036
    %v3045 = vpack.c.b16 %v3039, %v3038
    %v3046 = vpack.c.b16 %v3041, %v3040
    %v3047 = vpack.c.b16 %v3043, %v3042
    %v3052 = vld [vmem:[#allocation9] sm:$0xf]
    %v3053 = vld [vmem:[#allocation9 + $0x4] sm:$0xf]
    %v3054 = vld [vmem:[#allocation9 + $0x8] sm:$0xf]
    %v3055 = vld [vmem:[#allocation9 + $0xc] sm:$0xf]
    %v3056 = vld [vmem:[#allocation9 + $0x10] sm:$0xf]
    %v3057 = vld [vmem:[#allocation9 + $0x14] sm:$0xf]
    %v3058 = vld [vmem:[#allocation9 + $0x18] sm:$0xf]
    %v3059 = vld [vmem:[#allocation9 + $0x1c] sm:$0xf]
    %v3060 = vld [vmem:[#allocation9 + $0x20] sm:$0xf]
    %v3061 = vld [vmem:[#allocation9 + $0x24] sm:$0xf]
    %v3062 = vld [vmem:[#allocation9 + $0x28] sm:$0xf]
    %v3063 = vld [vmem:[#allocation9 + $0x2c] sm:$0xf]
    %v3064 = vld [vmem:[#allocation9 + $0x30] sm:$0xf]
    %v3065 = vld [vmem:[#allocation9 + $0x34] sm:$0xf]
    %v3066 = vld [vmem:[#allocation9 + $0x38] sm:$0xf]
    %v3067 = vld [vmem:[#allocation9 + $0x3c] sm:$0xf]
    %v3068 = vld [vmem:[#allocation3] sm:$0xff]
    %v3069 = vld [vmem:[#allocation3 + $0x8] sm:$0xff]
    %v3070 = vld [vmem:[#allocation3 + $0x10] sm:$0xff]
    %v3071 = vld [vmem:[#allocation3 + $0x18] sm:$0xff]
    %v3072 = vld [vmem:[#allocation3 + $0x20] sm:$0xff]
    %v3073 = vld [vmem:[#allocation3 + $0x28] sm:$0xff]
    %v3074 = vld [vmem:[#allocation3 + $0x30] sm:$0xff]
    %v3075 = vld [vmem:[#allocation3 + $0x38] sm:$0xff]
    %v3076 = vld [vmem:[#allocation3 + $0x40] sm:$0xff]
    %v3077 = vld [vmem:[#allocation3 + $0x48] sm:$0xff]
    %v3078 = vld [vmem:[#allocation3 + $0x50] sm:$0xff]
    %v3079 = vld [vmem:[#allocation3 + $0x58] sm:$0xff]
    %v3080 = vld [vmem:[#allocation3 + $0x60] sm:$0xff]
    %v3081 = vld [vmem:[#allocation3 + $0x68] sm:$0xff]
    %v3082 = vld [vmem:[#allocation3 + $0x70] sm:$0xff]
    %v3083 = vld [vmem:[#allocation3 + $0x78] sm:$0xff]
    %v3084 = vld [vmem:[%s6] sm:$0x1]
    %v3086 = vperm.slane %v3084, 0
    %v3104 = vunpack.c.l.b16 %v3052
    %v3105 = vunpack.c.l.b16 %v3053
    %v3106 = vunpack.c.l.b16 %v3054
    %v3107 = vunpack.c.l.b16 %v3055
    %v3108 = vunpack.c.l.b16 %v3056
    %v3109 = vunpack.c.l.b16 %v3057
    %v3110 = vunpack.c.l.b16 %v3058
    %v3111 = vunpack.c.l.b16 %v3059
    %v3112 = vunpack.c.l.b16 %v3060
    %v3113 = vunpack.c.l.b16 %v3061
    %v3114 = vunpack.c.l.b16 %v3062
    %v3115 = vunpack.c.l.b16 %v3063
    %v3116 = vunpack.c.l.b16 %v3064
    %v3117 = vunpack.c.l.b16 %v3065
    %v3118 = vunpack.c.l.b16 %v3066
    %v3119 = vunpack.c.l.b16 %v3067
    %v3120 = vpack.c.b16 %v3105, %v3104
    %v3121 = vpack.c.b16 %v3107, %v3106
    %v3122 = vpack.c.b16 %v3109, %v3108
    %v3123 = vpack.c.b16 %v3111, %v3110
    %v3124 = vpack.c.b16 %v3113, %v3112
    %v3125 = vpack.c.b16 %v3115, %v3114
    %v3126 = vpack.c.b16 %v3117, %v3116
    %v3127 = vpack.c.b16 %v3119, %v3118
    %3136 = vmatpush.bf16.msra.mxu0 %v3127
    %3137 = vmatpush.bf16.msra.mxu0 %v3126
    %3138 = vmatpush.bf16.msra.mxu0 %v3125
    %3139 = vmatpush.bf16.msra.mxu0 %v3124
    %3140 = vmatpush.bf16.msra.mxu0 %v3123
    %3141 = vmatpush.bf16.msra.mxu0 %v3122
    %3142 = vmatpush.bf16.msra.mxu0 %v3121
    %3143 = vmatpush.bf16.msra.mxu0 %v3120
    %3144 = vmatmul.bf16.gmra.mxu0 %v3020
    %v3145 = vpop.f32.mrf.mxu0
    %v3146 = vadd.f32 %v3086, %v3145
    %v3147 = vpop.f32.mrf.mxu0
    %v3148 = vadd.f32 %v3086, %v3147
    %3149 = vmatmul.bf16.gmra.mxu0 %v3021
    %v3150 = vpop.f32.mrf.mxu0
    %v3151 = vadd.f32 %v3086, %v3150
    %v3152 = vpop.f32.mrf.mxu0
    %v3153 = vadd.f32 %v3086, %v3152
    %3154 = vmatmul.bf16.gmra.mxu0 %v3022
    %v3155 = vpop.f32.mrf.mxu0
    %v3156 = vadd.f32 %v3086, %v3155
    %v3157 = vpop.f32.mrf.mxu0
    %v3158 = vadd.f32 %v3086, %v3157
    %3159 = vmatmul.bf16.gmra.mxu0 %v3023
    %v3160 = vpop.f32.mrf.mxu0
    %v3161 = vadd.f32 %v3086, %v3160
    %v3162 = vpop.f32.mrf.mxu0
    %v3163 = vadd.f32 %v3086, %v3162
    %3164 = vmatmul.bf16.gmra.mxu0 %v3044
    %v3165 = vpop.f32.mrf.mxu0
    %v3166 = vadd.f32 %v3086, %v3165
    %v3167 = vpop.f32.mrf.mxu0
    %v3168 = vadd.f32 %v3086, %v3167
    %3169 = vmatmul.bf16.gmra.mxu0 %v3045
    %v3170 = vpop.f32.mrf.mxu0
    %v3171 = vadd.f32 %v3086, %v3170
    %v3172 = vpop.f32.mrf.mxu0
    %v3173 = vadd.f32 %v3086, %v3172
    %3174 = vmatmul.bf16.gmra.mxu0 %v3046
    %v3175 = vpop.f32.mrf.mxu0
    %v3176 = vadd.f32 %v3086, %v3175
    %v3177 = vpop.f32.mrf.mxu0
    %v3178 = vadd.f32 %v3086, %v3177
    %3179 = vmatmul.bf16.gmra.mxu0 %v3047
    %v3180 = vpop.f32.mrf.mxu0
    %v3181 = vadd.f32 %v3086, %v3180
    %v3182 = vpop.f32.mrf.mxu0
    %v3183 = vadd.f32 %v3086, %v3182
    %3184 = vdwg.mxu0
    %v3185 = vadd.f32 %v3146, %v3068
    %v3186 = vadd.f32 %v3148, %v3069
    %v3187 = vadd.f32 %v3151, %v3070
    %v3188 = vadd.f32 %v3153, %v3071
    %v3189 = vadd.f32 %v3156, %v3072
    %v3190 = vadd.f32 %v3158, %v3073
    %v3191 = vadd.f32 %v3161, %v3074
    %v3192 = vadd.f32 %v3163, %v3075
    %v3193 = vadd.f32 %v3166, %v3076
    %v3194 = vadd.f32 %v3168, %v3077
    %v3195 = vadd.f32 %v3171, %v3078
    %v3196 = vadd.f32 %v3173, %v3079
    %v3197 = vadd.f32 %v3176, %v3080
    %v3198 = vadd.f32 %v3178, %v3081
    %v3199 = vadd.f32 %v3181, %v3082
    %v3200 = vadd.f32 %v3183, %v3083
    %v3201 = vmax.f32 %v3185, 0.0
    %v3202 = vmax.f32 %v3186, 0.0
    %v3203 = vmax.f32 %v3187, 0.0
    %v3204 = vmax.f32 %v3188, 0.0
    %v3205 = vmax.f32 %v3189, 0.0
    %v3206 = vmax.f32 %v3190, 0.0
    %v3207 = vmax.f32 %v3191, 0.0
    %v3208 = vmax.f32 %v3192, 0.0
    %v3209 = vmax.f32 %v3193, 0.0
    %v3210 = vmax.f32 %v3194, 0.0
    %v3211 = vmax.f32 %v3195, 0.0
    %v3212 = vmax.f32 %v3196, 0.0
    %v3213 = vmax.f32 %v3197, 0.0
    %v3214 = vmax.f32 %v3198, 0.0
    %v3215 = vmax.f32 %v3199, 0.0
    %v3216 = vmax.f32 %v3200, 0.0
    %3217 = vst [vmem:[#allocation11] sm:$0xff] %v3201
    %3218 = vst [vmem:[#allocation11 + $0x8] sm:$0xff] %v3202
    %3219 = vst [vmem:[#allocation11 + $0x10] sm:$0xff] %v3203
    %3220 = vst [vmem:[#allocation11 + $0x18] sm:$0xff] %v3204
    %3221 = vst [vmem:[#allocation11 + $0x20] sm:$0xff] %v3205
    %3222 = vst [vmem:[#allocation11 + $0x28] sm:$0xff] %v3206
    %3223 = vst [vmem:[#allocation11 + $0x30] sm:$0xff] %v3207
    %3224 = vst [vmem:[#allocation11 + $0x38] sm:$0xff] %v3208
    %3225 = vst [vmem:[#allocation11 + $0x40] sm:$0xff] %v3209
    %3226 = vst [vmem:[#allocation11 + $0x48] sm:$0xff] %v3210
    %3227 = vst [vmem:[#allocation11 + $0x50] sm:$0xff] %v3211
    %3228 = vst [vmem:[#allocation11 + $0x58] sm:$0xff] %v3212
    %3229 = vst [vmem:[#allocation11 + $0x60] sm:$0xff] %v3213
    %3230 = vst [vmem:[#allocation11 + $0x68] sm:$0xff] %v3214
    %3231 = vst [vmem:[#allocation11 + $0x70] sm:$0xff] %v3215
    %3232 = vst [vmem:[#allocation11 + $0x78] sm:$0xff] %v3216
    // Predicated region
    $region46: #{tpu_custom_call.1} parent=1 // pred_check
      _
    $region47: #{tpu_custom_call.1} parent=1 // pred_check_branch
      %3234 = sbr.rel (0) target = $region49
    $region48: #{tpu_custom_call.1} parent=1 // pred_region
      %3236 = vsyncadd [#allocation5], 0
      %s3237 = sshll.u32 [#allocation11], 4
      %s3238 = int_to_ptr.vmem [resolvable:$true] %s3237
      %s3239 = sshll.u32 %s7, 4
      %s3240 = int_to_ptr.hbm [resolvable:$true] %s3239
      %3245 = dma.vmem_to_hbm [thread:$0]  %s3238, 2048, %s3240, [#allocation5], 128, 128, 8
    $region49: #{tpu_custom_call.1} parent=1 // pred_fallthru
      _
    // Predicated region
    $region50: #{tpu_custom_call.1} parent=1 // pred_check
      _
    $region51: #{tpu_custom_call.1} parent=1 // pred_check_branch
      %3247 = sbr.rel (0) target = $region53
    $region52: #{tpu_custom_call.1} parent=1 // pred_region
      %3249 = dma.done [#allocation5], 2048
    $region53: #{tpu_custom_call.1} parent=1 // pred_fallthru
      _
    %3250 = vsyncpa [#allocation4], 1
    %3251 = vsyncpa [#allocation7], 1
    %3252 = vsyncpa [#allocation10], 1
    %3253 = vsyncpa [#allocation5], 1

</llo_original>
